<compile_context>
chip_gen: v7x
topology: tpu7x:2x2x1
jax: 0.10.0
libtpu: 0.0.40
codegen_flags: <defaults>
</compile_context>

<pallas_src>
import functools
import math

import jax
import jax.numpy as jnp
from jax.experimental import pallas as pl
from jax.experimental.pallas import tpu as pltpu


def _round_up(x, m):
    return (x + m - 1) // m * m


def _as_pair(v):
    return (v, v) if isinstance(v, int) else tuple(v)


def _vmem_limit_bytes():
    """Per-generation scoped-VMEM limit with headroom (review: ~48 MiB-class on v7x,
    up to ~96 MiB on v5e/v6e)."""
    try:
        cap = int(pltpu.get_tpu_info().vmem_capacity_bytes)
        return int(min(max(cap - 16 * 1024 * 1024, 32 * 1024 * 1024), 96 * 1024 * 1024))
    except Exception:
        return 48 * 1024 * 1024  # safe on every generation (v7x physical VMEM is 64 MiB)


# --------------------- Pass 1: fused conv + BN-stat partials ---------------------

def _conv_stats_kernel(x_ref, w_ref, y_ref, stats_ref, *, kh, kw, th, ow, oh, oh_pad):
    """One (th*ow, cout_tile) conv-output tile for image b = program_id(0),
    Cout tile co = program_id(1), row tile t = program_id(2).

    kw taps are folded into the matmul K dim: per kernel row i a single (th, wp, cin)
    strip is sliced from the resident padded image and contracted as
    (th*ow, kw*cin) x (kw*cin, cout_tile).  BN partial statistics (sum, sum-of-squares)
    are emitted per tile from the f32 accumulator (before the bf16 downcast)."""
    t = pl.program_id(2)
    cin = x_ref.shape[-1]
    cout_tile = y_ref.shape[-1]

    acc = jnp.zeros((th * ow, cout_tile), jnp.float32)
    for i in range(kh):
        strip = x_ref[0, pl.ds(t * th + i, th), :, :]          # (th, wp, cin), 1 slice / kh
        if kw == 1:
            a = strip.reshape(th * ow, cin)
        else:
            taps = [jax.lax.slice_in_dim(strip, j, j + ow, axis=1) for j in range(kw)]
            a = jnp.concatenate(taps, axis=-1).reshape(th * ow, kw * cin)
        acc = acc + jnp.dot(a, w_ref[i], preferred_element_type=jnp.float32)

    def emit(vals):                                            # vals: f32 (th*ow, cout_tile)
        y_ref[0] = vals.astype(y_ref.dtype)                    # bf16 intermediate
        s1 = jnp.sum(vals, axis=0, keepdims=True)
        s2 = jnp.sum(vals * vals, axis=0, keepdims=True)
        stats_ref[0, 0] = jnp.concatenate([s1, s2], axis=0)    # (2, cout_tile), one store

    if oh_pad == oh:
        emit(acc)
    else:
        # Only the last row tile contains OH padding; mask it there so padded rows do not
        # pollute the BN statistics (the rows themselves are sliced away on the host).
        last = pl.num_programs(2) - 1

        @pl.when(t < last)
        def _():
            emit(acc)

        @pl.when(t == last)
        def _():
            row = jax.lax.broadcasted_iota(jnp.int32, (th * ow, 1), 0)
            oy = t * th + row // ow
            emit(jnp.where(oy < oh, acc, 0.0))


# --------------------- Pass 2: fused BN affine + ReLU (in place, bf16) ---------------------

def _bn_relu_kernel(y_ref, scale_ref, shift_ref, o_ref):
    y = y_ref[...].astype(jnp.float32)                         # epilogue math in f32
    o_ref[...] = jnp.maximum(y * scale_ref[...] + shift_ref[...], 0.0).astype(o_ref.dtype)


# ------------------------------- NHWC / bf16 core path -------------------------------

@functools.partial(jax.jit, static_argnames=("stride", "padding", "eps"))
def basic_conv2d_nhwc(x_nhwc, weight_oihw, gamma, beta, *, stride=1, padding=0, eps=1e-3):
    """BasicConv2d on an NHWC activation (bf16 in / bf16 out): no per-layer layout
    transposes, so Inception layers can be chained NHWC + bf16 end to end."""
    sh, sw = _as_pair(stride)
    ph, pw = _as_pair(padding)
    if (sh, sw) != (1, 1):
        # TODO(synk): stride>1 convs (Inception stem / reduction blocks) need strided
        # window loads in the tap-folded kernel; not implemented here.
        raise NotImplementedError("basic_conv2d: only stride=1 is implemented")

    n, h, w, cin = x_nhwc.shape
    cout, _, kh, kw = weight_oihw.shape
    oh = h + 2 * ph - kh + 1
    ow = w + 2 * pw - kw + 1

    vmem_limit = _vmem_limit_bytes()

    # ---- tiling: lane-dense Cout tiles (MXU N width), sublane-clean row tiles ----
    cout_pad = _round_up(cout, 128)
    cout_tile = 256 if cout_pad % 256 == 0 else 128
    num_co = cout_pad // cout_tile

    th_unit = 8 // math.gcd(ow, 8)                 # smallest th with (th*ow) % 8 == 0
    # Row budget keyed to the Cout tile so the f32 accumulator + bf16 output tile stay
    # small even for the wide Inception layers (VMEM headroom on v7x).
    rows_target = max(th_unit, min(2048, (4 * 1024 * 1024) // (cout_tile * 4)))
    th = (rows_target // ow) // th_unit * th_unit
    th = min(max(th, th_unit), _round_up(oh, th_unit))
    oh_pad = _round_up(oh, th)
    num_t = oh_pad // th
    trows = th * ow
    rows = oh_pad * ow

    # ---- layout prep: spatial zero-pad only (activation already NHWC) ----
    x_bf16 = x_nhwc.astype(jnp.bfloat16)
    hp = oh_pad + kh - 1                           # covers the padded row tiles as well
    wp = w + 2 * pw
    # TODO(synk): fold the spatial zero-pad into the kernel (index clamping) to drop this
    # extra HBM round trip entirely.
    x_pad = jnp.pad(x_bf16, ((0, 0), (ph, hp - h - ph), (pw, pw), (0, 0)))

    # (Cout, Cin, KH, KW) -> (KH, KW*Cin, Cout_pad): kw folded into the matmul K dim.
    w_mat = jnp.transpose(weight_oihw, (2, 3, 1, 0)).reshape(kh, kw * cin, cout)
    w_mat = jnp.pad(w_mat, ((0, 0), (0, 0), (0, cout_pad - cout))).astype(jnp.bfloat16)

    kernel = functools.partial(_conv_stats_kernel, kh=kh, kw=kw, th=th, ow=ow,
                               oh=oh, oh_pad=oh_pad)
    flops = 2 * n * rows * kh * kw * cin * cout_pad
    bytes_acc = (x_pad.size * 2 * num_co + w_mat.size * 2 * n
                 + n * rows * cout_pad * 2 + n * num_t * 2 * cout_pad * 4)

    # TODO(synk): single-buffer the grid-invariant x / weight blocks via
    # pl.BlockSpec(..., pipeline_mode=pl.Buffered(1)) once available on the target
    # runtime; Cout tiling + bf16 already keep the footprint within the scoped limit.
    y, stats = pl.pallas_call(
        kernel,
        out_shape=(jax.ShapeDtypeStruct((n, rows, cout_pad), jnp.bfloat16),
                   jax.ShapeDtypeStruct((n, num_t, 2, cout_pad), jnp.float32)),
        grid=(n, num_co, num_t),
        in_specs=[
            pl.BlockSpec((1, hp, wp, cin), lambda b, co, t: (b, 0, 0, 0)),
            pl.BlockSpec((kh, kw * cin, cout_tile), lambda b, co, t: (0, 0, co)),
        ],
        out_specs=(
            pl.BlockSpec((1, trows, cout_tile), lambda b, co, t: (b, t, co)),
            pl.BlockSpec((1, 1, 2, cout_tile), lambda b, co, t: (b, t, 0, co)),
        ),
        compiler_params=pltpu.CompilerParams(
            # No accumulator is carried across any grid axis (stats are per-tile partials),
            # so every axis is parallel -> both v7x TensorCores get work at batch=1.
            dimension_semantics=("parallel", "parallel", "parallel"),
            vmem_limit_bytes=vmem_limit),
        cost_estimate=pl.CostEstimate(flops=flops, transcendentals=0,
                                      bytes_accessed=bytes_acc),
    )(x_pad, w_mat)

    # ---- BatchNorm training-mode statistics (f32) from the per-tile partials ----
    m = n * oh * ow                                # padded rows were zeroed in-kernel
    mean = jnp.sum(stats[:, :, 0, :], axis=(0, 1)) / m
    var = jnp.maximum(jnp.sum(stats[:, :, 1, :], axis=(0, 1)) / m - mean * mean, 0.0)
    # TODO(synk): E[x^2]-E[x]^2 can cancel for large-mean activations; a shifted/Welford
    # accumulation would be more robust for very deep layers.
    gamma_p = jnp.pad(gamma.astype(jnp.float32), (0, cout_pad - cout), constant_values=1.0)
    beta_p = jnp.pad(beta.astype(jnp.float32), (0, cout_pad - cout))
    scale_v = gamma_p * jax.lax.rsqrt(var + eps)
    shift_v = beta_p - mean * scale_v
    scale = scale_v.reshape(1, cout_pad)
    shift = shift_v.reshape(1, cout_pad)

    # ---- Pass 2: fused BN affine + ReLU, bf16, in place on y ----
    # Tile cap keeps 2 arrays x 2 pipeline buffers comfortably inside the scoped limit.
    tile_cap = min(4 * 1024 * 1024, vmem_limit // 8)
    g = num_t
    while g > 1 and (num_t % g != 0 or g * trows * cout_pad * 2 > tile_cap):
        g -= 1
    rt = g * trows

    out = pl.pallas_call(
        _bn_relu_kernel,
        out_shape=jax.ShapeDtypeStruct((n, rows, cout_pad), jnp.bfloat16),
        grid=(n, rows // rt),
        in_specs=[pl.BlockSpec((1, rt, cout_pad), lambda b, t: (b, t, 0)),
                  pl.BlockSpec((1, cout_pad), lambda b, t: (0, 0)),
                  pl.BlockSpec((1, cout_pad), lambda b, t: (0, 0))],
        out_specs=pl.BlockSpec((1, rt, cout_pad), lambda b, t: (b, t, 0)),
        input_output_aliases={0: 0},               # reuse the conv-output HBM buffer
        compiler_params=pltpu.CompilerParams(
            dimension_semantics=("parallel", "parallel"),
            vmem_limit_bytes=vmem_limit),
    )(y, scale, shift)

    # (N, OH_pad*OW, Cout_pad) -> (N, OH, OW, Cout), bf16 NHWC.
    return out[:, :oh * ow, :cout].reshape(n, oh, ow, cout)


# ------------------- PyTorch-layout (NCHW / f32) convenience wrapper -------------------

@functools.partial(jax.jit, static_argnames=("stride", "padding", "eps"))
def basic_conv2d(x_nchw, weight_oihw, gamma, beta, *, stride=1, padding=0, eps=1e-3):
    x_nhwc = jnp.transpose(x_nchw, (0, 2, 3, 1))
    out = basic_conv2d_nhwc(x_nhwc, weight_oihw, gamma, beta,
                            stride=stride, padding=padding, eps=eps)
    return jnp.transpose(out, (0, 3, 1, 2)).astype(jnp.float32)


# ------------------------------- Pure-JAX reference -------------------------------

def _reference(x, weight, gamma, beta, *, stride, padding, eps):
    """Mirrors the kernel's precision pipeline: bf16 MXU operands, f32 accumulation and
    BN statistics, bf16 conv intermediate, f32 BN affine + ReLU, bf16 output."""
    sh, sw = _as_pair(stride)
    ph, pw = _as_pair(padding)
    y32 = jax.lax.conv_general_dilated(
        x.astype(jnp.bfloat16), weight.astype(jnp.bfloat16),
        window_strides=(sh, sw), padding=((ph, ph), (pw, pw)),
        dimension_numbers=("NCHW", "OIHW", "NCHW"),
        preferred_element_type=jnp.float32)
    mean = jnp.mean(y32, axis=(0, 2, 3), keepdims=True)
    var = jnp.mean(jnp.square(y32 - mean), axis=(0, 2, 3), keepdims=True)   # biased
    scale = gamma.reshape(1, -1, 1, 1) * jax.lax.rsqrt(var + eps)
    shift = beta.reshape(1, -1, 1, 1) - mean * scale
    y16 = y32.astype(jnp.bfloat16).astype(jnp.float32)
    out = jnp.maximum(y16 * scale + shift, 0.0)
    return out.astype(jnp.bfloat16).astype(jnp.float32)


if __name__ == "__main__":
    key = jax.random.PRNGKey(0)
    k_x, k_w, k_g, k_b = jax.random.split(key, 4)

    # BasicConv2d(in_channels=4, out_channels=8, kernel_size=3, padding=1)
    N, CIN, H, W = 2, 4, 16, 16
    COUT, KH, KW = 8, 3, 3
    STRIDE, PAD, EPS = 1, 1, 1e-3

    x = jax.random.normal(k_x, (N, CIN, H, W), dtype=jnp.float32)
    weight = jax.random.normal(k_w, (COUT, CIN, KH, KW), dtype=jnp.float32) * 0.1
    gamma = 1.0 + 0.1 * jax.random.normal(k_g, (COUT,), dtype=jnp.float32)
    beta = 0.1 * jax.random.normal(k_b, (COUT,), dtype=jnp.float32)

    out = basic_conv2d(x, weight, gamma, beta, stride=STRIDE, padding=PAD, eps=EPS)
    out = jax.block_until_ready(out)

    ref = _reference(x, weight, gamma, beta, stride=STRIDE, padding=PAD, eps=EPS)
    assert out.shape == (N, COUT, H, W), out.shape
    max_err = float(jnp.max(jnp.abs(out - ref)))
    assert jnp.allclose(out, ref, atol=1e-2, rtol=1e-2), max_err

    print("KERNEL_OK")
</pallas_src>

<mosaic_0001>
module attributes {stable_mosaic.version = 11 : i64} {
  func.func @_conv_stats_kernel(%arg0: i32, %arg1: i32, %arg2: i32, %arg3: memref<1x18x18x4xbf16, #tpu.memory_space<vmem>>, %arg4: memref<3x12x128xbf16, #tpu.memory_space<vmem>>, %arg5: memref<1x256x128xbf16, #tpu.memory_space<vmem>>, %arg6: memref<1x1x2x128xf32, #tpu.memory_space<vmem>>) attributes {dimension_semantics = [#tpu.dimension_semantics<parallel>, #tpu.dimension_semantics<parallel>, #tpu.dimension_semantics<parallel>], iteration_bounds = array<i64: 2, 1, 1>, scalar_prefetch = 0 : i64, scratch_operands = 0 : i64, tpu.core_type = #tpu.core_type<tc>, window_params = [{transform_indices = @transform_0, window_bounds = array<i64: 1, 18, 18, 4>}, {transform_indices = @transform_1, window_bounds = array<i64: 3, 12, 128>}, {transform_indices = @transform_2, window_bounds = array<i64: 1, 256, 128>}, {transform_indices = @transform_3, window_bounds = array<i64: 1, 1, 2, 128>}]} {
    %cst = arith.constant 0.000000e+00 : f32
    %0 = vector.broadcast %cst : f32 to vector<256x128xf32>
    %c16_i32 = arith.constant 16 : i32
    %1 = arith.muli %arg2, %c16_i32 : i32
    %c0_i32 = arith.constant 0 : i32
    %2 = arith.addi %1, %c0_i32 : i32
    %c0 = arith.constant 0 : index
    %3 = arith.index_cast %2 : i32 to index
    %c0_0 = arith.constant 0 : index
    %c0_1 = arith.constant 0 : index
    %4 = vector.load %arg3[%c0, %3, %c0_0, %c0_1] : memref<1x18x18x4xbf16, #tpu.memory_space<vmem>>, vector<1x16x18x4xbf16>
    %5 = vector.shape_cast %4 : vector<1x16x18x4xbf16> to vector<16x18x4xbf16>
    %6 = vector.extract_strided_slice %5 {offsets = [0, 0, 0], sizes = [16, 16, 4], strides = [1, 1, 1]} : vector<16x18x4xbf16> to vector<16x16x4xbf16>
    %7 = vector.extract_strided_slice %5 {offsets = [0, 1, 0], sizes = [16, 16, 4], strides = [1, 1, 1]} : vector<16x18x4xbf16> to vector<16x16x4xbf16>
    %8 = vector.extract_strided_slice %5 {offsets = [0, 2, 0], sizes = [16, 16, 4], strides = [1, 1, 1]} : vector<16x18x4xbf16> to vector<16x16x4xbf16>
    %9 = tpu.concatenate %6, %7, %8 in 2 : vector<16x16x4xbf16>, vector<16x16x4xbf16>, vector<16x16x4xbf16> -> vector<16x16x12xbf16>
    %10 = vector.shape_cast %9 : vector<16x16x12xbf16> to vector<256x12xbf16>
    %c0_2 = arith.constant 0 : index
    %c0_3 = arith.constant 0 : index
    %c0_4 = arith.constant 0 : index
    %11 = vector.load %arg4[%c0_2, %c0_3, %c0_4] : memref<3x12x128xbf16, #tpu.memory_space<vmem>>, vector<1x12x128xbf16>
    %12 = vector.shape_cast %11 : vector<1x12x128xbf16> to vector<12x128xbf16>
    %cst_5 = arith.constant dense<0.000000e+00> : vector<256x128xf32>
    %13 = tpu.matmul %10, %12, %cst_5 {dimension_numbers = #tpu.dot_dimension_numbers<[1], [0], [0], [1], [0, 0, 1, 1], [], []>} : vector<256x12xbf16>, vector<12x128xbf16>, vector<256x128xf32> -> vector<256x128xf32>
    %14 = arith.addf %0, %13 : vector<256x128xf32>
    %c16_i32_6 = arith.constant 16 : i32
    %15 = arith.muli %arg2, %c16_i32_6 : i32
    %c1_i32 = arith.constant 1 : i32
    %16 = arith.addi %15, %c1_i32 : i32
    %c0_7 = arith.constant 0 : index
    %17 = arith.index_cast %16 : i32 to index
    %c0_8 = arith.constant 0 : index
    %c0_9 = arith.constant 0 : index
    %18 = vector.load %arg3[%c0_7, %17, %c0_8, %c0_9] : memref<1x18x18x4xbf16, #tpu.memory_space<vmem>>, vector<1x16x18x4xbf16>
    %19 = vector.shape_cast %18 : vector<1x16x18x4xbf16> to vector<16x18x4xbf16>
    %20 = vector.extract_strided_slice %19 {offsets = [0, 0, 0], sizes = [16, 16, 4], strides = [1, 1, 1]} : vector<16x18x4xbf16> to vector<16x16x4xbf16>
    %21 = vector.extract_strided_slice %19 {offsets = [0, 1, 0], sizes = [16, 16, 4], strides = [1, 1, 1]} : vector<16x18x4xbf16> to vector<16x16x4xbf16>
    %22 = vector.extract_strided_slice %19 {offsets = [0, 2, 0], sizes = [16, 16, 4], strides = [1, 1, 1]} : vector<16x18x4xbf16> to vector<16x16x4xbf16>
    %23 = tpu.concatenate %20, %21, %22 in 2 : vector<16x16x4xbf16>, vector<16x16x4xbf16>, vector<16x16x4xbf16> -> vector<16x16x12xbf16>
    %24 = vector.shape_cast %23 : vector<16x16x12xbf16> to vector<256x12xbf16>
    %c1 = arith.constant 1 : index
    %c0_10 = arith.constant 0 : index
    %c0_11 = arith.constant 0 : index
    %25 = vector.load %arg4[%c1, %c0_10, %c0_11] : memref<3x12x128xbf16, #tpu.memory_space<vmem>>, vector<1x12x128xbf16>
    %26 = vector.shape_cast %25 : vector<1x12x128xbf16> to vector<12x128xbf16>
    %cst_12 = arith.constant dense<0.000000e+00> : vector<256x128xf32>
    %27 = tpu.matmul %24, %26, %cst_12 {dimension_numbers = #tpu.dot_dimension_numbers<[1], [0], [0], [1], [0, 0, 1, 1], [], []>} : vector<256x12xbf16>, vector<12x128xbf16>, vector<256x128xf32> -> vector<256x128xf32>
    %28 = arith.addf %14, %27 : vector<256x128xf32>
    %c16_i32_13 = arith.constant 16 : i32
    %29 = arith.muli %arg2, %c16_i32_13 : i32
    %c2_i32 = arith.constant 2 : i32
    %30 = arith.addi %29, %c2_i32 : i32
    %c0_14 = arith.constant 0 : index
    %31 = arith.index_cast %30 : i32 to index
    %c0_15 = arith.constant 0 : index
    %c0_16 = arith.constant 0 : index
    %32 = vector.load %arg3[%c0_14, %31, %c0_15, %c0_16] : memref<1x18x18x4xbf16, #tpu.memory_space<vmem>>, vector<1x16x18x4xbf16>
    %33 = vector.shape_cast %32 : vector<1x16x18x4xbf16> to vector<16x18x4xbf16>
    %34 = vector.extract_strided_slice %33 {offsets = [0, 0, 0], sizes = [16, 16, 4], strides = [1, 1, 1]} : vector<16x18x4xbf16> to vector<16x16x4xbf16>
    %35 = vector.extract_strided_slice %33 {offsets = [0, 1, 0], sizes = [16, 16, 4], strides = [1, 1, 1]} : vector<16x18x4xbf16> to vector<16x16x4xbf16>
    %36 = vector.extract_strided_slice %33 {offsets = [0, 2, 0], sizes = [16, 16, 4], strides = [1, 1, 1]} : vector<16x18x4xbf16> to vector<16x16x4xbf16>
    %37 = tpu.concatenate %34, %35, %36 in 2 : vector<16x16x4xbf16>, vector<16x16x4xbf16>, vector<16x16x4xbf16> -> vector<16x16x12xbf16>
    %38 = vector.shape_cast %37 : vector<16x16x12xbf16> to vector<256x12xbf16>
    %c2 = arith.constant 2 : index
    %c0_17 = arith.constant 0 : index
    %c0_18 = arith.constant 0 : index
    %39 = vector.load %arg4[%c2, %c0_17, %c0_18] : memref<3x12x128xbf16, #tpu.memory_space<vmem>>, vector<1x12x128xbf16>
    %40 = vector.shape_cast %39 : vector<1x12x128xbf16> to vector<12x128xbf16>
    %cst_19 = arith.constant dense<0.000000e+00> : vector<256x128xf32>
    %41 = tpu.matmul %38, %40, %cst_19 {dimension_numbers = #tpu.dot_dimension_numbers<[1], [0], [0], [1], [0, 0, 1, 1], [], []>} : vector<256x12xbf16>, vector<12x128xbf16>, vector<256x128xf32> -> vector<256x128xf32>
    %42 = arith.addf %28, %41 : vector<256x128xf32>
    %43 = arith.truncf %42 : vector<256x128xf32> to vector<256x128xbf16>
    %c0_20 = arith.constant 0 : index
    %c0_21 = arith.constant 0 : index
    %c0_22 = arith.constant 0 : index
    %44 = vector.load %arg5[%c0_20, %c0_21, %c0_22] : memref<1x256x128xbf16, #tpu.memory_space<vmem>>, vector<1x256x128xbf16>
    %45 = vector.shape_cast %44 : vector<1x256x128xbf16> to vector<256x128xbf16>
    %46 = vector.shape_cast %43 : vector<256x128xbf16> to vector<1x256x128xbf16>
    tpu.vector_store %arg5[%c0_20, %c0_21, %c0_22], %46 {strides = array<i32>} : memref<1x256x128xbf16, #tpu.memory_space<vmem>>, vector<1x256x128xbf16>,
    %cst_23 = arith.constant dense<0.000000e+00> : vector<128xf32>
    %47 = vector.multi_reduction <add>, %42, %cst_23 [0] : vector<256x128xf32> to vector<128xf32>
    %48 = vector.shape_cast %47 : vector<128xf32> to vector<1x128xf32>
    %49 = arith.mulf %42, %42 : vector<256x128xf32>
    %cst_24 = arith.constant dense<0.000000e+00> : vector<128xf32>
    %50 = vector.multi_reduction <add>, %49, %cst_24 [0] : vector<256x128xf32> to vector<128xf32>
    %51 = vector.shape_cast %50 : vector<128xf32> to vector<1x128xf32>
    %52 = tpu.concatenate %48, %51 in 0 : vector<1x128xf32>, vector<1x128xf32> -> vector<2x128xf32>
    %c0_25 = arith.constant 0 : index
    %c0_26 = arith.constant 0 : index
    %c0_27 = arith.constant 0 : index
    %c0_28 = arith.constant 0 : index
    %53 = vector.load %arg6[%c0_25, %c0_26, %c0_27, %c0_28] : memref<1x1x2x128xf32, #tpu.memory_space<vmem>>, vector<1x1x2x128xf32>
    %54 = vector.shape_cast %53 : vector<1x1x2x128xf32> to vector<2x128xf32>
    %55 = vector.shape_cast %52 : vector<2x128xf32> to vector<1x1x2x128xf32>
    tpu.vector_store %arg6[%c0_25, %c0_26, %c0_27, %c0_28], %55 {strides = array<i32>} : memref<1x1x2x128xf32, #tpu.memory_space<vmem>>, vector<1x1x2x128xf32>,
    return
  }
  func.func @transform_0(%arg0: i32, %arg1: i32, %arg2: i32) -> (i32, i32, i32, i32) {
    %c0_i32 = arith.constant 0 : i32
    %c0_i32_0 = arith.constant 0 : i32
    %c0_i32_1 = arith.constant 0 : i32
    %c0_i32_2 = arith.constant 0 : i32
    return %arg0, %c0_i32, %c0_i32_0, %c0_i32_1 : i32, i32, i32, i32
  }
  func.func @transform_1(%arg0: i32, %arg1: i32, %arg2: i32) -> (i32, i32, i32) {
    %c0_i32 = arith.constant 0 : i32
    %c0_i32_0 = arith.constant 0 : i32
    %c0_i32_1 = arith.constant 0 : i32
    return %c0_i32, %c0_i32_0, %arg1 : i32, i32, i32
  }
  func.func @transform_2(%arg0: i32, %arg1: i32, %arg2: i32) -> (i32, i32, i32) {
    %c0_i32 = arith.constant 0 : i32
    return %arg0, %arg2, %arg1 : i32, i32, i32
  }
  func.func @transform_3(%arg0: i32, %arg1: i32, %arg2: i32) -> (i32, i32, i32, i32) {
    %c0_i32 = arith.constant 0 : i32
    %c0_i32_0 = arith.constant 0 : i32
    return %arg0, %arg2, %c0_i32, %arg1 : i32, i32, i32, i32
  }
}

module attributes {stable_mosaic.version = 11 : i64} {
  func.func @_bn_relu_kernel(%arg0: i32, %arg1: i32, %arg2: memref<1x256x128xbf16, #tpu.memory_space<vmem>>, %arg3: memref<1x128xf32, #tpu.memory_space<vmem>>, %arg4: memref<1x128xf32, #tpu.memory_space<vmem>>, %arg5: memref<1x256x128xbf16, #tpu.memory_space<vmem>>) attributes {dimension_semantics = [#tpu.dimension_semantics<parallel>, #tpu.dimension_semantics<parallel>], iteration_bounds = array<i64: 2, 1>, scalar_prefetch = 0 : i64, scratch_operands = 0 : i64, tpu.core_type = #tpu.core_type<tc>, window_params = [{transform_indices = @transform_0, window_bounds = array<i64: 1, 256, 128>}, {pipeline_mode = #tpu.pipeline_mode<synchronous>, transform_indices = @transform_1, window_bounds = array<i64: 1, 128>}, {pipeline_mode = #tpu.pipeline_mode<synchronous>, transform_indices = @transform_2, window_bounds = array<i64: 1, 128>}, {transform_indices = @transform_3, window_bounds = array<i64: 1, 256, 128>}]} {
    %c0 = arith.constant 0 : index
    %c0_0 = arith.constant 0 : index
    %c0_1 = arith.constant 0 : index
    %0 = vector.load %arg2[%c0, %c0_0, %c0_1] : memref<1x256x128xbf16, #tpu.memory_space<vmem>>, vector<1x256x128xbf16>
    %1 = arith.extf %0 : vector<1x256x128xbf16> to vector<1x256x128xf32>
    %c0_2 = arith.constant 0 : index
    %c0_3 = arith.constant 0 : index
    %2 = vector.load %arg3[%c0_2, %c0_3] : memref<1x128xf32, #tpu.memory_space<vmem>>, vector<1x128xf32>
    %3 = vector.shape_cast %2 : vector<1x128xf32> to vector<1x1x128xf32>
    %4 = vector.broadcast %3 : vector<1x1x128xf32> to vector<1x256x128xf32>
    %5 = arith.mulf %1, %4 : vector<1x256x128xf32>
    %c0_4 = arith.constant 0 : index
    %c0_5 = arith.constant 0 : index
    %6 = vector.load %arg4[%c0_4, %c0_5] : memref<1x128xf32, #tpu.memory_space<vmem>>, vector<1x128xf32>
    %7 = vector.shape_cast %6 : vector<1x128xf32> to vector<1x1x128xf32>
    %8 = vector.broadcast %7 : vector<1x1x128xf32> to vector<1x256x128xf32>
    %9 = arith.addf %5, %8 : vector<1x256x128xf32>
    %cst = arith.constant 0.000000e+00 : f32
    %10 = vector.broadcast %cst : f32 to vector<1x256x128xf32>
    %11 = arith.maximumf %9, %10 : vector<1x256x128xf32>
    %12 = arith.truncf %11 : vector<1x256x128xf32> to vector<1x256x128xbf16>
    %c0_6 = arith.constant 0 : index
    %c0_7 = arith.constant 0 : index
    %c0_8 = arith.constant 0 : index
    %13 = vector.load %arg5[%c0_6, %c0_7, %c0_8] : memref<1x256x128xbf16, #tpu.memory_space<vmem>>, vector<1x256x128xbf16>
    tpu.vector_store %arg5[%c0_6, %c0_7, %c0_8], %12 {strides = array<i32>} : memref<1x256x128xbf16, #tpu.memory_space<vmem>>, vector<1x256x128xbf16>,
    return
  }
  func.func @transform_0(%arg0: i32, %arg1: i32) -> (i32, i32, i32) {
    %c0_i32 = arith.constant 0 : i32
    %c0_i32_0 = arith.constant 0 : i32
    return %arg0, %arg1, %c0_i32 : i32, i32, i32
  }
  func.func @transform_1(%arg0: i32, %arg1: i32) -> (i32, i32) {
    %c0_i32 = arith.constant 0 : i32
    %c0_i32_0 = arith.constant 0 : i32
    %c0_i32_1 = arith.constant 0 : i32
    return %c0_i32, %c0_i32_0 : i32, i32
  }
  func.func @transform_2(%arg0: i32, %arg1: i32) -> (i32, i32) {
    %c0_i32 = arith.constant 0 : i32
    %c0_i32_0 = arith.constant 0 : i32
    %c0_i32_1 = arith.constant 0 : i32
    return %c0_i32, %c0_i32_0 : i32, i32
  }
  func.func @transform_3(%arg0: i32, %arg1: i32) -> (i32, i32, i32) {
    %c0_i32 = arith.constant 0 : i32
    %c0_i32_0 = arith.constant 0 : i32
    return %arg0, %arg1, %c0_i32 : i32, i32, i32
  }
}

</mosaic_0001>

<llo_original>
// kernel: basic_conv2d_nhwc.3
$region0: #{basic_conv2d_nhwc.3}
  #allocation0 [shape = 'u32[]', space=smem, size = 0x4, offset = 0x4, fixed_abs, tag = 'smem constant byte address 0x4 - core index']
  #allocation1 [shape = 'u32[144,128]{1,0:T(1,128)}', space=vmem, size = 0x12000, scoped, tag = 'internal scratch']
  %s0 = inlined_call_operand.vmem [shape: bf16[2,256,128], index: 0, kind: input, shape index: {}, may-alias: {0,3}]
  %s1 = inlined_call_operand.vmem [shape: f32[1,128], index: 1, kind: input, shape index: {}]
  %s2 = inlined_call_operand.vmem [shape: f32[1,128], index: 2, kind: input, shape index: {}]
  %s3 = inlined_call_operand.vmem [shape: bf16[2,256,128], index: 3, kind: output, shape index: {}, may-alias: {0,3}]
  %s4 = sld [smem:[#allocation0]]
  $region45: #{basic_conv2d_nhwc.3} parent=0
    _
  %s6 = ssub.s32 1, %s4
  %s7 = scalar_select 0, %s6, %s4
  loop: start=0, step=1, limit=4
  $region2: #{basic_conv2d_nhwc.3} parent=0 // loop_pre_header
    _
  $region3: #{basic_conv2d_nhwc.3} parent=0 // loop_header
    %s9 = sphi 0, %s13
    %p10 = scmp.ge.s32.totalorder %s9, 4
    %s16 = sphi 0, %s28
    %s17 = sphi 0, %s24
    %s18 = sphi 0, %s16
    %s19 = sphi 0, %s17
    %s20 = sphi 0, %s18
    %s21 = sphi 0, %s19
    %s33 = sphi 0, %s35
    %s36 = sphi 0, %s33
    %s37 = sphi 0, %s36
    %s53 = sphi 0, %s37
    %s57 = sphi 0, %s57
    %s59 = sphi 0, %s57
    %s60 = sphi 0, %s59
    %s74 = sphi 0, %s60
    %s78 = sphi 0, %s78
    %s80 = sphi 0, %s78
    %s81 = sphi 0, %s80
    %s95 = sphi 0, %s81
    %s103 = sphi 0, %s105
    %s106 = sphi 0, %s103
    %s107 = sphi 0, %s106
    %s123 = sphi 0, %s107
  $region4: #{basic_conv2d_nhwc.3} parent=0 // loop_header_branch
    %12 = sbr.rel (%p10) target = $region8
  $region5: #{basic_conv2d_nhwc.3} parent=0 // loop_body
    %s14 = ssub.s32 %s9, 1
    %s15 = ssub.s32 %s9, 2
    %s22 = sadd.s32 1, %s17
    %p23 = scmp.ge.s32.totalorder %s22, 1
    %s24 = scalar_select %p23, 0, %s22
    %s25 = sadd.s32 1, %s16
    %s26 = scalar_select %p23, %s25, %s16
    %p27 = scmp.ge.s32.totalorder %s26, 2
    %s28 = scalar_select %p27, 0, %s26
    %s29 = ssub.s32 %s16, %s28
    %s30 = ssub.s32 %s17, %s24
    %s31 = sor.u32 %s29, %s30
    %p32 = scmp.eq.s32.totalorder %s31, 0
    %s34 = sadd.s32 %s33, 1
    %s35 = scalar_select %p32, %s33, %s34
    %p38 = pneg %p32
    %p39 = scmp.eq.s32.totalorder %s9, 1
    %p40 = por %p38, %p39
    %p41 = scmp.ne.s32.totalorder %s33, %s36
    %p42 = scmp.eq.s32.totalorder %s9, 0
    %p43 = por %p41, %p42
    %p44 = scmp.ne.s32.totalorder %s33, %s36
    %p45 = scmp.eq.s32.totalorder %s14, 1
    %p46 = por %p44, %p45
    %p47 = scmp.ne.s32.totalorder %s36, %s37
    %p48 = scmp.eq.s32.totalorder %s14, 0
    %p49 = por %p47, %p48
    %p50 = scmp.ne.s32.totalorder %s36, %s37
    %p51 = scmp.eq.s32.totalorder %s15, 1
    %p52 = por %p50, %p51
    %p54 = scmp.ne.s32.totalorder %s37, %s53
    %p55 = scmp.eq.s32.totalorder %s15, 0
    %p56 = por %p54, %p55
    %s58 = sadd.s32 %s57, 1
    %p61 = scmp.eq.s32.totalorder %s9, 1
    %p62 = scmp.ne.s32.totalorder %s57, %s59
    %p63 = scmp.eq.s32.totalorder %s9, 0
    %p64 = por %p62, %p63
    %p65 = scmp.ne.s32.totalorder %s57, %s59
    %p66 = scmp.eq.s32.totalorder %s14, 1
    %p67 = por %p65, %p66
    %p68 = scmp.ne.s32.totalorder %s59, %s60
    %p69 = scmp.eq.s32.totalorder %s14, 0
    %p70 = por %p68, %p69
    %p71 = scmp.ne.s32.totalorder %s59, %s60
    %p72 = scmp.eq.s32.totalorder %s15, 1
    %p73 = por %p71, %p72
    %p75 = scmp.ne.s32.totalorder %s60, %s74
    %p76 = scmp.eq.s32.totalorder %s15, 0
    %p77 = por %p75, %p76
    %s79 = sadd.s32 %s78, 1
    %p82 = scmp.eq.s32.totalorder %s9, 1
    %p83 = scmp.ne.s32.totalorder %s78, %s80
    %p84 = scmp.eq.s32.totalorder %s9, 0
    %p85 = por %p83, %p84
    %p86 = scmp.ne.s32.totalorder %s78, %s80
    %p87 = scmp.eq.s32.totalorder %s14, 1
    %p88 = por %p86, %p87
    %p89 = scmp.ne.s32.totalorder %s80, %s81
    %p90 = scmp.eq.s32.totalorder %s14, 0
    %p91 = por %p89, %p90
    %p92 = scmp.ne.s32.totalorder %s80, %s81
    %p93 = scmp.eq.s32.totalorder %s15, 1
    %p94 = por %p92, %p93
    %p96 = scmp.ne.s32.totalorder %s81, %s95
    %p97 = scmp.eq.s32.totalorder %s15, 0
    %p98 = por %p96, %p97
    %s99 = ssub.s32 %s16, %s28
    %s100 = ssub.s32 %s17, %s24
    %s101 = sor.u32 %s99, %s100
    %p102 = scmp.eq.s32.totalorder %s101, 0
    %s104 = sadd.s32 %s103, 1
    %s105 = scalar_select %p102, %s103, %s104
    %p108 = pneg %p102
    %p109 = scmp.eq.s32.totalorder %s9, 1
    %p110 = por %p108, %p109
    %p111 = scmp.ne.s32.totalorder %s103, %s106
    %p112 = scmp.eq.s32.totalorder %s9, 0
    %p113 = por %p111, %p112
    %p114 = scmp.ne.s32.totalorder %s103, %s106
    %p115 = scmp.eq.s32.totalorder %s14, 1
    %p116 = por %p114, %p115
    %p117 = scmp.ne.s32.totalorder %s106, %s107
    %p118 = scmp.eq.s32.totalorder %s14, 0
    %p119 = por %p117, %p118
    %p120 = scmp.ne.s32.totalorder %s106, %s107
    %p121 = scmp.eq.s32.totalorder %s15, 1
    %p122 = por %p120, %p121
    %p124 = scmp.ne.s32.totalorder %s107, %s123
    %p125 = scmp.eq.s32.totalorder %s15, 0
    %p126 = por %p124, %p125
    %p127 = scmp.le.s32.totalorder 1, %s9
    %p128 = scmp.lt.s32.totalorder %s9, 3
    %p129 = pnand %p127, %p128
    %p130 = pneg %p129
    // Predicated region
    $region9: #{basic_conv2d_nhwc.3} parent=5 // pred_check
      _
    $region10: #{basic_conv2d_nhwc.3} parent=5 // pred_check_branch
      %132 = sbr.rel (%p129) target = $region12
    $region11: #{basic_conv2d_nhwc.3} parent=5 // pred_region
      %s133 = ssub.s32 %s9, 1
      // Predicated region
      $region13: #{basic_conv2d_nhwc.3} parent=11 // pred_check
        %p134 = pneg %p70
      $region14: #{basic_conv2d_nhwc.3} parent=11 // pred_check_branch
        %136 = sbr.rel (%p134) target = $region16
      $region15: #{basic_conv2d_nhwc.3} parent=11 // pred_region
        _
      $region16: #{basic_conv2d_nhwc.3} parent=11 // pred_fallthru
        _
      // Predicated region
      $region17: #{basic_conv2d_nhwc.3} parent=11 // pred_check
        %p137 = pneg %p91
      $region18: #{basic_conv2d_nhwc.3} parent=11 // pred_check_branch
        %139 = sbr.rel (%p137) target = $region20
      $region19: #{basic_conv2d_nhwc.3} parent=11 // pred_region
        _
      $region20: #{basic_conv2d_nhwc.3} parent=11 // pred_fallthru
        _
    $region12: #{basic_conv2d_nhwc.3} parent=5 // pred_fallthru
      _
    %p140 = scmp.lt.s32.totalorder %s9, 2
    // Predicated region
    $region21: #{basic_conv2d_nhwc.3} parent=5 // pred_check
      %p141 = pneg %p140
    $region22: #{basic_conv2d_nhwc.3} parent=5 // pred_check_branch
      %143 = sbr.rel (%p141) target = $region24
    $region23: #{basic_conv2d_nhwc.3} parent=5 // pred_region
      // Predicated region
      $region25: #{basic_conv2d_nhwc.3} parent=23 // pred_check
        %p144 = pneg %p43
      $region26: #{basic_conv2d_nhwc.3} parent=23 // pred_check_branch
        %146 = sbr.rel (%p144) target = $region28
      $region27: #{basic_conv2d_nhwc.3} parent=23 // pred_region
        %s147 = smul.u32 32, %s17
        %p148 = scmp.lt.s32.totalorder %s16, 1
        %s149 = scalar_select %p148, %s16, 1
        %p150 = scmp.lt.s32.totalorder %s147, 31
        %s151 = scalar_select %p150, %s147, 31
        %s152 = smul.addr %s149, 32
        %s153 = sadd.s32 %s151, %s152
        %s154 = smul.addr %s153, 4
        %s155 = scalar_lea.vmem %s0, %s154
        %s156 = smul.u32 32, %s17
      $region28: #{basic_conv2d_nhwc.3} parent=23 // pred_fallthru
        _
    $region24: #{basic_conv2d_nhwc.3} parent=5 // pred_fallthru
      _
    %p157 = scmp.le.s32.totalorder 1, %s9
    %p158 = scmp.lt.s32.totalorder %s9, 3
    %p159 = pnand %p157, %p158
    %p160 = pneg %p159
    // Predicated region
    $region29: #{basic_conv2d_nhwc.3} parent=5 // pred_check
      _
    $region30: #{basic_conv2d_nhwc.3} parent=5 // pred_check_branch
      %162 = sbr.rel (%p159) target = $region32
    $region31: #{basic_conv2d_nhwc.3} parent=5 // pred_region
      %s163 = ssub.s32 %s9, 1
      %s164 = smul.u32 32, %s19
      %p165 = scmp.lt.s32.totalorder %s18, 1
      %s166 = scalar_select %p165, %s18, 1
      %p167 = scmp.lt.s32.totalorder %s164, 31
      %s168 = scalar_select %p167, %s164, 31
      %s169 = smul.addr %s166, 32
      %s170 = sadd.s32 %s168, %s169
      %s171 = smul.addr %s170, 4
      %s172 = scalar_lea.vmem %s0, %s171
      %p173 = pneg %p49
      %p174 = pneg %p46
      %p175 = pneg %p70
      %p176 = pneg %p67
      %p177 = pneg %p91
      %p178 = pneg %p88
      %p179 = pneg %p119
      %p180 = pneg %p116
      %s181 = smul.u32 32, %s19
      %p182 = scmp.lt.s32.totalorder %s18, 1
      %s183 = scalar_select %p182, %s18, 1
      %p184 = scmp.lt.s32.totalorder %s181, 31
      %s185 = scalar_select %p184, %s181, 31
      %s186 = smul.addr %s183, 32
      %s187 = sadd.s32 %s185, %s186
      %s188 = smul.addr %s187, 4
      %s189 = scalar_lea.vmem %s3, %s188
      %s190 = smul.u32 32, %s19
      %p191 = scmp.lt.s32.totalorder %s18, 1
      %s192 = scalar_select %p191, %s18, 1
      %p193 = scmp.lt.s32.totalorder %s190, 31
      %s194 = scalar_select %p193, %s190, 31
      %s195 = smul.addr %s192, 32
      %s196 = sadd.s32 %s194, %s195
      %s197 = smul.addr %s196, 4
      %s198 = scalar_lea.vmem %s0, %s197
      %s199 = smul.u32 32, %s19
      %s200 = smul.u32 32, %s19
      %p201 = scmp.lt.s32.totalorder %s18, 1
      %s202 = scalar_select %p201, %s18, 1
      %p203 = scmp.lt.s32.totalorder %s200, 31
      %s204 = scalar_select %p203, %s200, 31
      %s205 = smul.addr %s202, 32
      %s206 = sadd.s32 %s204, %s205
      %s207 = smul.addr %s206, 4
      %s208 = scalar_lea.vmem %s3, %s207
      %s209 = smul.u32 32, %s19
      %v210 = vld [vmem:[%s198] sm:$0xf]
      %v211 = vld [vmem:[%s198 + $0x4] sm:$0xf]
      %v212 = vld [vmem:[%s198 + $0x8] sm:$0xf]
      %v213 = vld [vmem:[%s198 + $0xc] sm:$0xf]
      %v214 = vld [vmem:[%s198 + $0x10] sm:$0xf]
      %v215 = vld [vmem:[%s198 + $0x14] sm:$0xf]
      %v216 = vld [vmem:[%s198 + $0x18] sm:$0xf]
      %v217 = vld [vmem:[%s198 + $0x1c] sm:$0xf]
      %v218 = vld [vmem:[%s198 + $0x20] sm:$0xf]
      %v219 = vld [vmem:[%s198 + $0x24] sm:$0xf]
      %v220 = vld [vmem:[%s198 + $0x28] sm:$0xf]
      %v221 = vld [vmem:[%s198 + $0x2c] sm:$0xf]
      %v222 = vld [vmem:[%s198 + $0x30] sm:$0xf]
      %v223 = vld [vmem:[%s198 + $0x34] sm:$0xf]
      %v224 = vld [vmem:[%s198 + $0x38] sm:$0xf]
      %v225 = vld [vmem:[%s198 + $0x3c] sm:$0xf]
      %v226 = vld [vmem:[%s198 + $0x40] sm:$0xf]
      %v227 = vld [vmem:[%s198 + $0x44] sm:$0xf]
      %v228 = vld [vmem:[%s198 + $0x48] sm:$0xf]
      %v229 = vld [vmem:[%s198 + $0x4c] sm:$0xf]
      %v230 = vld [vmem:[%s198 + $0x50] sm:$0xf]
      %v231 = vld [vmem:[%s198 + $0x54] sm:$0xf]
      %v232 = vld [vmem:[%s198 + $0x58] sm:$0xf]
      %v233 = vld [vmem:[%s198 + $0x5c] sm:$0xf]
      %v234 = vld [vmem:[%s198 + $0x60] sm:$0xf]
      %v235 = vld [vmem:[%s198 + $0x64] sm:$0xf]
      %v236 = vld [vmem:[%s198 + $0x68] sm:$0xf]
      %v237 = vld [vmem:[%s198 + $0x6c] sm:$0xf]
      %v238 = vld [vmem:[%s198 + $0x70] sm:$0xf]
      %v239 = vld [vmem:[%s198 + $0x74] sm:$0xf]
      %v240 = vld [vmem:[%s198 + $0x78] sm:$0xf]
      %v241 = vld [vmem:[%s198 + $0x7c] sm:$0xf]
      %v242 = vunpack.c.l.bf16 %v210
      %v243 = vunpack.c.l.bf16 %v211
      %v244 = vunpack.c.l.bf16 %v212
      %v245 = vunpack.c.l.bf16 %v213
      %v246 = vunpack.c.l.bf16 %v214
      %v247 = vunpack.c.l.bf16 %v215
      %v248 = vunpack.c.l.bf16 %v216
      %v249 = vunpack.c.l.bf16 %v217
      %v250 = vunpack.c.l.bf16 %v218
      %v251 = vunpack.c.l.bf16 %v219
      %v252 = vunpack.c.l.bf16 %v220
      %v253 = vunpack.c.l.bf16 %v221
      %v254 = vunpack.c.l.bf16 %v222
      %v255 = vunpack.c.l.bf16 %v223
      %v256 = vunpack.c.l.bf16 %v224
      %v257 = vunpack.c.l.bf16 %v225
      %v258 = vunpack.c.l.bf16 %v226
      %v259 = vunpack.c.l.bf16 %v227
      %v260 = vunpack.c.l.bf16 %v228
      %v261 = vunpack.c.l.bf16 %v229
      %v262 = vunpack.c.l.bf16 %v230
      %v263 = vunpack.c.l.bf16 %v231
      %v264 = vunpack.c.l.bf16 %v232
      %v265 = vunpack.c.l.bf16 %v233
      %v266 = vunpack.c.l.bf16 %v234
      %v267 = vunpack.c.l.bf16 %v235
      %v268 = vunpack.c.l.bf16 %v236
      %v269 = vunpack.c.l.bf16 %v237
      %v270 = vunpack.c.l.bf16 %v238
      %v271 = vunpack.c.l.bf16 %v239
      %v272 = vunpack.c.l.bf16 %v240
      %v273 = vunpack.c.l.bf16 %v241
      %v274 = vld [vmem:[%s1] sm:$0x1]
      %v276 = vlaneseq
      %v277 = vshrl.u32 %v276, 7
      %v278 = vsub.s32 0, %v277
      %v279 = vrot.slane %v274, %v278
      %v281 = vmul.f32 %v242, %v279
      %v282 = vmul.f32 %v243, %v279
      %v283 = vmul.f32 %v244, %v279
      %v284 = vmul.f32 %v245, %v279
      %v285 = vmul.f32 %v246, %v279
      %v286 = vmul.f32 %v247, %v279
      %v287 = vmul.f32 %v248, %v279
      %v288 = vmul.f32 %v249, %v279
      %v289 = vmul.f32 %v250, %v279
      %v290 = vmul.f32 %v251, %v279
      %v291 = vmul.f32 %v252, %v279
      %v292 = vmul.f32 %v253, %v279
      %v293 = vmul.f32 %v254, %v279
      %v294 = vmul.f32 %v255, %v279
      %v295 = vmul.f32 %v256, %v279
      %v296 = vmul.f32 %v257, %v279
      %v297 = vmul.f32 %v258, %v279
      %v298 = vmul.f32 %v259, %v279
      %v299 = vmul.f32 %v260, %v279
      %v300 = vmul.f32 %v261, %v279
      %v301 = vmul.f32 %v262, %v279
      %v302 = vmul.f32 %v263, %v279
      %v303 = vmul.f32 %v264, %v279
      %v304 = vmul.f32 %v265, %v279
      %v305 = vmul.f32 %v266, %v279
      %v306 = vmul.f32 %v267, %v279
      %v307 = vmul.f32 %v268, %v279
      %v308 = vmul.f32 %v269, %v279
      %v309 = vmul.f32 %v270, %v279
      %v310 = vmul.f32 %v271, %v279
      %v311 = vmul.f32 %v272, %v279
      %v312 = vmul.f32 %v273, %v279
      %v313 = vld [vmem:[%s2] sm:$0x1]
      %v315 = vlaneseq
      %v316 = vshrl.u32 %v315, 7
      %v317 = vsub.s32 0, %v316
      %v318 = vrot.slane %v313, %v317
      %v320 = vadd.f32 %v281, %v318
      %v321 = vadd.f32 %v282, %v318
      %v322 = vadd.f32 %v283, %v318
      %v323 = vadd.f32 %v284, %v318
      %v324 = vadd.f32 %v285, %v318
      %v325 = vadd.f32 %v286, %v318
      %v326 = vadd.f32 %v287, %v318
      %v327 = vadd.f32 %v288, %v318
      %v328 = vadd.f32 %v289, %v318
      %v329 = vadd.f32 %v290, %v318
      %v330 = vadd.f32 %v291, %v318
      %v331 = vadd.f32 %v292, %v318
      %v332 = vadd.f32 %v293, %v318
      %v333 = vadd.f32 %v294, %v318
      %v334 = vadd.f32 %v295, %v318
      %v335 = vadd.f32 %v296, %v318
      %v336 = vadd.f32 %v297, %v318
      %v337 = vadd.f32 %v298, %v318
      %v338 = vadd.f32 %v299, %v318
      %v339 = vadd.f32 %v300, %v318
      %v340 = vadd.f32 %v301, %v318
      %v341 = vadd.f32 %v302, %v318
      %v342 = vadd.f32 %v303, %v318
      %v343 = vadd.f32 %v304, %v318
      %v344 = vadd.f32 %v305, %v318
      %v345 = vadd.f32 %v306, %v318
      %v346 = vadd.f32 %v307, %v318
      %v347 = vadd.f32 %v308, %v318
      %v348 = vadd.f32 %v309, %v318
      %v349 = vadd.f32 %v310, %v318
      %v350 = vadd.f32 %v311, %v318
      %v351 = vadd.f32 %v312, %v318
      %v352 = vmax.f32 %v320, 0.0
      %v353 = vmax.f32 %v321, 0.0
      %v354 = vmax.f32 %v322, 0.0
      %v355 = vmax.f32 %v323, 0.0
      %v356 = vmax.f32 %v324, 0.0
      %v357 = vmax.f32 %v325, 0.0
      %v358 = vmax.f32 %v326, 0.0
      %v359 = vmax.f32 %v327, 0.0
      %v360 = vmax.f32 %v328, 0.0
      %v361 = vmax.f32 %v329, 0.0
      %v362 = vmax.f32 %v330, 0.0
      %v363 = vmax.f32 %v331, 0.0
      %v364 = vmax.f32 %v332, 0.0
      %v365 = vmax.f32 %v333, 0.0
      %v366 = vmax.f32 %v334, 0.0
      %v367 = vmax.f32 %v335, 0.0
      %v368 = vmax.f32 %v336, 0.0
      %v369 = vmax.f32 %v337, 0.0
      %v370 = vmax.f32 %v338, 0.0
      %v371 = vmax.f32 %v339, 0.0
      %v372 = vmax.f32 %v340, 0.0
      %v373 = vmax.f32 %v341, 0.0
      %v374 = vmax.f32 %v342, 0.0
      %v375 = vmax.f32 %v343, 0.0
      %v376 = vmax.f32 %v344, 0.0
      %v377 = vmax.f32 %v345, 0.0
      %v378 = vmax.f32 %v346, 0.0
      %v379 = vmax.f32 %v347, 0.0
      %v380 = vmax.f32 %v348, 0.0
      %v381 = vmax.f32 %v349, 0.0
      %v382 = vmax.f32 %v350, 0.0
      %v383 = vmax.f32 %v351, 0.0
      %v384 = vpack.c.bf16 %v353, %v352
      %v385 = vpack.c.bf16 %v355, %v354
      %v386 = vpack.c.bf16 %v357, %v356
      %v387 = vpack.c.bf16 %v359, %v358
      %v388 = vpack.c.bf16 %v361, %v360
      %v389 = vpack.c.bf16 %v363, %v362
      %v390 = vpack.c.bf16 %v365, %v364
      %v391 = vpack.c.bf16 %v367, %v366
      %v392 = vpack.c.bf16 %v369, %v368
      %v393 = vpack.c.bf16 %v371, %v370
      %v394 = vpack.c.bf16 %v373, %v372
      %v395 = vpack.c.bf16 %v375, %v374
      %v396 = vpack.c.bf16 %v377, %v376
      %v397 = vpack.c.bf16 %v379, %v378
      %v398 = vpack.c.bf16 %v381, %v380
      %v399 = vpack.c.bf16 %v383, %v382
      %v416 = vunpack.c.l.b16 %v384
      %v417 = vunpack.c.h.b16 %v384
      %v418 = vunpack.c.l.b16 %v385
      %v419 = vunpack.c.h.b16 %v385
      %v420 = vunpack.c.l.b16 %v386
      %v421 = vunpack.c.h.b16 %v386
      %v422 = vunpack.c.l.b16 %v387
      %v423 = vunpack.c.h.b16 %v387
      %v424 = vunpack.c.l.b16 %v388
      %v425 = vunpack.c.h.b16 %v388
      %v426 = vunpack.c.l.b16 %v389
      %v427 = vunpack.c.h.b16 %v389
      %v428 = vunpack.c.l.b16 %v390
      %v429 = vunpack.c.h.b16 %v390
      %v430 = vunpack.c.l.b16 %v391
      %v431 = vunpack.c.h.b16 %v391
      %v432 = vunpack.c.l.b16 %v392
      %v433 = vunpack.c.h.b16 %v392
      %v434 = vunpack.c.l.b16 %v393
      %v435 = vunpack.c.h.b16 %v393
      %v436 = vunpack.c.l.b16 %v394
      %v437 = vunpack.c.h.b16 %v394
      %v438 = vunpack.c.l.b16 %v395
      %v439 = vunpack.c.h.b16 %v395
      %v440 = vunpack.c.l.b16 %v396
      %v441 = vunpack.c.h.b16 %v396
      %v442 = vunpack.c.l.b16 %v397
      %v443 = vunpack.c.h.b16 %v397
      %v444 = vunpack.c.l.b16 %v398
      %v445 = vunpack.c.h.b16 %v398
      %v446 = vunpack.c.l.b16 %v399
      %v447 = vunpack.c.h.b16 %v399
      %v448 = vpack.c.b16 %v416, %v416
      %v449 = vpack.c.b16 %v417, %v417
      %v450 = vpack.c.b16 %v418, %v418
      %v451 = vpack.c.b16 %v419, %v419
      %v452 = vpack.c.b16 %v420, %v420
      %v453 = vpack.c.b16 %v421, %v421
      %v454 = vpack.c.b16 %v422, %v422
      %v455 = vpack.c.b16 %v423, %v423
      %v456 = vpack.c.b16 %v424, %v424
      %v457 = vpack.c.b16 %v425, %v425
      %v458 = vpack.c.b16 %v426, %v426
      %v459 = vpack.c.b16 %v427, %v427
      %v460 = vpack.c.b16 %v428, %v428
      %v461 = vpack.c.b16 %v429, %v429
      %v462 = vpack.c.b16 %v430, %v430
      %v463 = vpack.c.b16 %v431, %v431
      %v464 = vpack.c.b16 %v432, %v432
      %v465 = vpack.c.b16 %v433, %v433
      %v466 = vpack.c.b16 %v434, %v434
      %v467 = vpack.c.b16 %v435, %v435
      %v468 = vpack.c.b16 %v436, %v436
      %v469 = vpack.c.b16 %v437, %v437
      %v470 = vpack.c.b16 %v438, %v438
      %v471 = vpack.c.b16 %v439, %v439
      %v472 = vpack.c.b16 %v440, %v440
      %v473 = vpack.c.b16 %v441, %v441
      %v474 = vpack.c.b16 %v442, %v442
      %v475 = vpack.c.b16 %v443, %v443
      %v476 = vpack.c.b16 %v444, %v444
      %v477 = vpack.c.b16 %v445, %v445
      %v478 = vpack.c.b16 %v446, %v446
      %v479 = vpack.c.b16 %v447, %v447
      %512 = vst [vmem:[%s208] sm:$0xf] %v448
      %513 = vst [vmem:[%s208 + $0x4] sm:$0xf] %v449
      %514 = vst [vmem:[%s208 + $0x8] sm:$0xf] %v450
      %515 = vst [vmem:[%s208 + $0xc] sm:$0xf] %v451
      %516 = vst [vmem:[%s208 + $0x10] sm:$0xf] %v452
      %517 = vst [vmem:[%s208 + $0x14] sm:$0xf] %v453
      %518 = vst [vmem:[%s208 + $0x18] sm:$0xf] %v454
      %519 = vst [vmem:[%s208 + $0x1c] sm:$0xf] %v455
      %520 = vst [vmem:[%s208 + $0x20] sm:$0xf] %v456
      %521 = vst [vmem:[%s208 + $0x24] sm:$0xf] %v457
      %522 = vst [vmem:[%s208 + $0x28] sm:$0xf] %v458
      %523 = vst [vmem:[%s208 + $0x2c] sm:$0xf] %v459
      %524 = vst [vmem:[%s208 + $0x30] sm:$0xf] %v460
      %525 = vst [vmem:[%s208 + $0x34] sm:$0xf] %v461
      %526 = vst [vmem:[%s208 + $0x38] sm:$0xf] %v462
      %527 = vst [vmem:[%s208 + $0x3c] sm:$0xf] %v463
      %528 = vst [vmem:[%s208 + $0x40] sm:$0xf] %v464
      %529 = vst [vmem:[%s208 + $0x44] sm:$0xf] %v465
      %530 = vst [vmem:[%s208 + $0x48] sm:$0xf] %v466
      %531 = vst [vmem:[%s208 + $0x4c] sm:$0xf] %v467
      %532 = vst [vmem:[%s208 + $0x50] sm:$0xf] %v468
      %533 = vst [vmem:[%s208 + $0x54] sm:$0xf] %v469
      %534 = vst [vmem:[%s208 + $0x58] sm:$0xf] %v470
      %535 = vst [vmem:[%s208 + $0x5c] sm:$0xf] %v471
      %536 = vst [vmem:[%s208 + $0x60] sm:$0xf] %v472
      %537 = vst [vmem:[%s208 + $0x64] sm:$0xf] %v473
      %538 = vst [vmem:[%s208 + $0x68] sm:$0xf] %v474
      %539 = vst [vmem:[%s208 + $0x6c] sm:$0xf] %v475
      %540 = vst [vmem:[%s208 + $0x70] sm:$0xf] %v476
      %541 = vst [vmem:[%s208 + $0x74] sm:$0xf] %v477
      %542 = vst [vmem:[%s208 + $0x78] sm:$0xf] %v478
      %543 = vst [vmem:[%s208 + $0x7c] sm:$0xf] %v479
      %s544 = smul.u32 32, %s19
      %p545 = scmp.lt.s32.totalorder %s18, 1
      %s546 = scalar_select %p545, %s18, 1
      %p547 = scmp.lt.s32.totalorder %s544, 31
      %s548 = scalar_select %p547, %s544, 31
      %s549 = smul.addr %s546, 32
      %s550 = sadd.s32 %s548, %s549
      %s551 = smul.addr %s550, 4
      %s552 = scalar_lea.vmem %s3, %s551
      // Predicated region
      $region33: #{basic_conv2d_nhwc.3} parent=31 // pred_check
        %p553 = pneg %p116
      $region34: #{basic_conv2d_nhwc.3} parent=31 // pred_check_branch
        %555 = sbr.rel (%p553) target = $region36
      $region35: #{basic_conv2d_nhwc.3} parent=31 // pred_region
        %s556 = smul.u32 32, %s19
      $region36: #{basic_conv2d_nhwc.3} parent=31 // pred_fallthru
        _
    $region32: #{basic_conv2d_nhwc.3} parent=5 // pred_fallthru
      _
    %p557 = scmp.le.s32.totalorder 2, %s9
    // Predicated region
    $region37: #{basic_conv2d_nhwc.3} parent=5 // pred_check
      %p558 = pneg %p557
    $region38: #{basic_conv2d_nhwc.3} parent=5 // pred_check_branch
      %560 = sbr.rel (%p558) target = $region40
    $region39: #{basic_conv2d_nhwc.3} parent=5 // pred_region
      %s561 = ssub.s32 %s9, 2
      // Predicated region
      $region41: #{basic_conv2d_nhwc.3} parent=39 // pred_check
        %p562 = pneg %p122
      $region42: #{basic_conv2d_nhwc.3} parent=39 // pred_check_branch
        %564 = sbr.rel (%p562) target = $region44
      $region43: #{basic_conv2d_nhwc.3} parent=39 // pred_region
        %s565 = smul.u32 32, %s21
        %p566 = scmp.lt.s32.totalorder %s20, 1
        %s567 = scalar_select %p566, %s20, 1
        %p568 = scmp.lt.s32.totalorder %s565, 31
        %s569 = scalar_select %p568, %s565, 31
        %s570 = smul.addr %s567, 32
        %s571 = sadd.s32 %s569, %s570
        %s572 = smul.addr %s571, 4
        %s573 = scalar_lea.vmem %s3, %s572
      $region44: #{basic_conv2d_nhwc.3} parent=39 // pred_fallthru
        _
    $region40: #{basic_conv2d_nhwc.3} parent=5 // pred_fallthru
      _
  $region6: #{basic_conv2d_nhwc.3} parent=0 // loop_footer
    %s13 = sadd.s32 1, %s9
  $region7: #{basic_conv2d_nhwc.3} parent=0 // loop_footer_branch
    %8 = sbr.rel target = $region3
  $region8: #{basic_conv2d_nhwc.3} parent=0 // loop_exit
    _

// kernel: basic_conv2d_nhwc.2
$region0: #{basic_conv2d_nhwc.2}
  #allocation0 [shape = 'u32[]', space=smem, size = 0x4, offset = 0x4, fixed_abs, tag = 'smem constant byte address 0x4 - core index']
  #allocation1 [shape = 'u32[144,128]{1,0:T(1,128)}', space=vmem, size = 0x12000, scoped, tag = 'internal scratch']
  %s0 = inlined_call_operand.vmem [shape: bf16[2,18,18,4], index: 0, kind: input, shape index: {}]
  %s1 = inlined_call_operand.vmem [shape: bf16[3,12,128], index: 1, kind: input, shape index: {}]
  %s2 = inlined_call_operand.vmem [shape: bf16[2,256,128], index: 2, kind: output, shape index: {0}]
  %s3 = inlined_call_operand.vmem [shape: f32[2,1,2,128], index: 3, kind: output, shape index: {1}]
  %4 = xla_tuple %s2, %s3
  %s5 = sld [smem:[#allocation0]]
  $region49: #{basic_conv2d_nhwc.2} parent=0
    _
  %s7 = ssub.s32 1, %s5
  %s8 = scalar_select 0, %s7, %s5
  loop: start=0, step=1, limit=4
  $region2: #{basic_conv2d_nhwc.2} parent=0 // loop_pre_header
    _
  $region3: #{basic_conv2d_nhwc.2} parent=0 // loop_header
    %s10 = sphi 0, %s14
    %p11 = scmp.ge.s32.totalorder %s10, 4
    %s17 = sphi 0, %s36
    %s18 = sphi 0, %s32
    %s19 = sphi 0, %s28
    %s20 = sphi 0, %s17
    %s21 = sphi 0, %s18
    %s22 = sphi 0, %s19
    %s23 = sphi 0, %s20
    %s24 = sphi 0, %s21
    %s25 = sphi 0, %s22
    %s39 = sphi 0, %s41
    %s42 = sphi 0, %s39
    %s43 = sphi 0, %s42
    %s59 = sphi 0, %s43
    %s65 = sphi 0, %s67
    %s68 = sphi 0, %s65
    %s69 = sphi 0, %s68
    %s85 = sphi 0, %s69
    %s95 = sphi 0, %s97
    %s98 = sphi 0, %s95
    %s99 = sphi 0, %s98
    %s115 = sphi 0, %s99
    %s125 = sphi 0, %s127
    %s128 = sphi 0, %s125
    %s129 = sphi 0, %s128
    %s145 = sphi 0, %s129
  $region4: #{basic_conv2d_nhwc.2} parent=0 // loop_header_branch
    %13 = sbr.rel (%p11) target = $region8
  $region5: #{basic_conv2d_nhwc.2} parent=0 // loop_body
    %s15 = ssub.s32 %s10, 1
    %s16 = ssub.s32 %s10, 2
    %s26 = sadd.s32 1, %s19
    %p27 = scmp.ge.s32.totalorder %s26, 1
    %s28 = scalar_select %p27, 0, %s26
    %s29 = sadd.s32 1, %s18
    %s30 = scalar_select %p27, %s29, %s18
    %p31 = scmp.ge.s32.totalorder %s30, 1
    %s32 = scalar_select %p31, 0, %s30
    %s33 = sadd.s32 1, %s17
    %s34 = scalar_select %p31, %s33, %s17
    %p35 = scmp.ge.s32.totalorder %s34, 2
    %s36 = scalar_select %p35, 0, %s34
    %s37 = ssub.s32 %s17, %s36
    %p38 = scmp.eq.s32.totalorder %s37, 0
    %s40 = sadd.s32 %s39, 1
    %s41 = scalar_select %p38, %s39, %s40
    %p44 = pneg %p38
    %p45 = scmp.eq.s32.totalorder %s10, 1
    %p46 = por %p44, %p45
    %p47 = scmp.ne.s32.totalorder %s39, %s42
    %p48 = scmp.eq.s32.totalorder %s10, 0
    %p49 = por %p47, %p48
    %p50 = scmp.ne.s32.totalorder %s39, %s42
    %p51 = scmp.eq.s32.totalorder %s15, 1
    %p52 = por %p50, %p51
    %p53 = scmp.ne.s32.totalorder %s42, %s43
    %p54 = scmp.eq.s32.totalorder %s15, 0
    %p55 = por %p53, %p54
    %p56 = scmp.ne.s32.totalorder %s42, %s43
    %p57 = scmp.eq.s32.totalorder %s16, 1
    %p58 = por %p56, %p57
    %p60 = scmp.ne.s32.totalorder %s43, %s59
    %p61 = scmp.eq.s32.totalorder %s16, 0
    %p62 = por %p60, %p61
    %s63 = ssub.s32 %s18, %s32
    %p64 = scmp.eq.s32.totalorder %s63, 0
    %s66 = sadd.s32 %s65, 1
    %s67 = scalar_select %p64, %s65, %s66
    %p70 = pneg %p64
    %p71 = scmp.eq.s32.totalorder %s10, 1
    %p72 = por %p70, %p71
    %p73 = scmp.ne.s32.totalorder %s65, %s68
    %p74 = scmp.eq.s32.totalorder %s10, 0
    %p75 = por %p73, %p74
    %p76 = scmp.ne.s32.totalorder %s65, %s68
    %p77 = scmp.eq.s32.totalorder %s15, 1
    %p78 = por %p76, %p77
    %p79 = scmp.ne.s32.totalorder %s68, %s69
    %p80 = scmp.eq.s32.totalorder %s15, 0
    %p81 = por %p79, %p80
    %p82 = scmp.ne.s32.totalorder %s68, %s69
    %p83 = scmp.eq.s32.totalorder %s16, 1
    %p84 = por %p82, %p83
    %p86 = scmp.ne.s32.totalorder %s69, %s85
    %p87 = scmp.eq.s32.totalorder %s16, 0
    %p88 = por %p86, %p87
    %s89 = ssub.s32 %s17, %s36
    %s90 = ssub.s32 %s19, %s28
    %s91 = sor.u32 %s89, %s90
    %s92 = ssub.s32 %s18, %s32
    %s93 = sor.u32 %s91, %s92
    %p94 = scmp.eq.s32.totalorder %s93, 0
    %s96 = sadd.s32 %s95, 1
    %s97 = scalar_select %p94, %s95, %s96
    %p100 = pneg %p94
    %p101 = scmp.eq.s32.totalorder %s10, 1
    %p102 = por %p100, %p101
    %p103 = scmp.ne.s32.totalorder %s95, %s98
    %p104 = scmp.eq.s32.totalorder %s10, 0
    %p105 = por %p103, %p104
    %p106 = scmp.ne.s32.totalorder %s95, %s98
    %p107 = scmp.eq.s32.totalorder %s15, 1
    %p108 = por %p106, %p107
    %p109 = scmp.ne.s32.totalorder %s98, %s99
    %p110 = scmp.eq.s32.totalorder %s15, 0
    %p111 = por %p109, %p110
    %p112 = scmp.ne.s32.totalorder %s98, %s99
    %p113 = scmp.eq.s32.totalorder %s16, 1
    %p114 = por %p112, %p113
    %p116 = scmp.ne.s32.totalorder %s99, %s115
    %p117 = scmp.eq.s32.totalorder %s16, 0
    %p118 = por %p116, %p117
    %s119 = ssub.s32 %s17, %s36
    %s120 = ssub.s32 %s19, %s28
    %s121 = sor.u32 %s119, %s120
    %s122 = ssub.s32 %s18, %s32
    %s123 = sor.u32 %s121, %s122
    %p124 = scmp.eq.s32.totalorder %s123, 0
    %s126 = sadd.s32 %s125, 1
    %s127 = scalar_select %p124, %s125, %s126
    %p130 = pneg %p124
    %p131 = scmp.eq.s32.totalorder %s10, 1
    %p132 = por %p130, %p131
    %p133 = scmp.ne.s32.totalorder %s125, %s128
    %p134 = scmp.eq.s32.totalorder %s10, 0
    %p135 = por %p133, %p134
    %p136 = scmp.ne.s32.totalorder %s125, %s128
    %p137 = scmp.eq.s32.totalorder %s15, 1
    %p138 = por %p136, %p137
    %p139 = scmp.ne.s32.totalorder %s128, %s129
    %p140 = scmp.eq.s32.totalorder %s15, 0
    %p141 = por %p139, %p140
    %p142 = scmp.ne.s32.totalorder %s128, %s129
    %p143 = scmp.eq.s32.totalorder %s16, 1
    %p144 = por %p142, %p143
    %p146 = scmp.ne.s32.totalorder %s129, %s145
    %p147 = scmp.eq.s32.totalorder %s16, 0
    %p148 = por %p146, %p147
    %p149 = scmp.le.s32.totalorder 1, %s10
    %p150 = scmp.lt.s32.totalorder %s10, 3
    %p151 = pnand %p149, %p150
    %p152 = pneg %p151
    // Predicated region
    $region9: #{basic_conv2d_nhwc.2} parent=5 // pred_check
      _
    $region10: #{basic_conv2d_nhwc.2} parent=5 // pred_check_branch
      %154 = sbr.rel (%p151) target = $region12
    $region11: #{basic_conv2d_nhwc.2} parent=5 // pred_region
      %s155 = ssub.s32 %s10, 1
      // Predicated region
      $region13: #{basic_conv2d_nhwc.2} parent=11 // pred_check
        %p156 = pneg %p81
      $region14: #{basic_conv2d_nhwc.2} parent=11 // pred_check_branch
        %158 = sbr.rel (%p156) target = $region16
      $region15: #{basic_conv2d_nhwc.2} parent=11 // pred_region
        %p159 = scmp.lt.s32.totalorder %s21, 0
        %s160 = scalar_select %p159, %s21, 0
        %s161 = smul.addr %s160, 4
        %s162 = scalar_lea.vmem %s1, %s161
      $region16: #{basic_conv2d_nhwc.2} parent=11 // pred_fallthru
        _
    $region12: #{basic_conv2d_nhwc.2} parent=5 // pred_fallthru
      _
    %p163 = scmp.lt.s32.totalorder %s10, 2
    // Predicated region
    $region17: #{basic_conv2d_nhwc.2} parent=5 // pred_check
      %p164 = pneg %p163
    $region18: #{basic_conv2d_nhwc.2} parent=5 // pred_check_branch
      %166 = sbr.rel (%p164) target = $region20
    $region19: #{basic_conv2d_nhwc.2} parent=5 // pred_region
      // Predicated region
      $region21: #{basic_conv2d_nhwc.2} parent=19 // pred_check
        %p167 = pneg %p49
      $region22: #{basic_conv2d_nhwc.2} parent=19 // pred_check_branch
        %169 = sbr.rel (%p167) target = $region24
      $region23: #{basic_conv2d_nhwc.2} parent=19 // pred_region
        %p170 = scmp.lt.s32.totalorder %s17, 1
        %s171 = scalar_select %p170, %s17, 1
        %s172 = smul.addr %s171, 54
        %s173 = smul.addr %s172, 4
        %s174 = scalar_lea.vmem %s0, %s173
      $region24: #{basic_conv2d_nhwc.2} parent=19 // pred_fallthru
        _
    $region20: #{basic_conv2d_nhwc.2} parent=5 // pred_fallthru
      _
    %p175 = scmp.le.s32.totalorder 1, %s10
    %p176 = scmp.lt.s32.totalorder %s10, 3
    %p177 = pnand %p175, %p176
    %p178 = pneg %p177
    // Predicated region
    $region25: #{basic_conv2d_nhwc.2} parent=5 // pred_check
      _
    $region26: #{basic_conv2d_nhwc.2} parent=5 // pred_check_branch
      %180 = sbr.rel (%p177) target = $region28
    $region27: #{basic_conv2d_nhwc.2} parent=5 // pred_region
      %s181 = ssub.s32 %s10, 1
      %p182 = scmp.lt.s32.totalorder %s20, 1
      %s183 = scalar_select %p182, %s20, 1
      %s184 = smul.addr %s183, 54
      %s185 = smul.addr %s184, 4
      %s186 = scalar_lea.vmem %s0, %s185
      %p187 = pneg %p55
      %p188 = pneg %p52
      %p189 = scmp.lt.s32.totalorder %s21, 0
      %s190 = scalar_select %p189, %s21, 0
      %s191 = smul.addr %s190, 4
      %s192 = scalar_lea.vmem %s1, %s191
      %p193 = pneg %p81
      %p194 = pneg %p78
      %p195 = pneg %p111
      %p196 = pneg %p108
      %s197 = smul.u32 32, %s22
      %p198 = scmp.lt.s32.totalorder %s20, 1
      %s199 = scalar_select %p198, %s20, 1
      %p200 = scmp.lt.s32.totalorder %s197, 31
      %s201 = scalar_select %p200, %s197, 31
      %p202 = scmp.lt.s32.totalorder %s21, 0
      %s203 = scalar_select %p202, %s21, 0
      %s204 = sadd.s32 %s203, %s201
      %s205 = smul.addr %s199, 32
      %s206 = sadd.s32 %s204, %s205
      %s207 = smul.addr %s206, 4
      %s208 = scalar_lea.vmem %s2, %s207
      %p209 = pneg %p141
      %p210 = pneg %p138
      %p211 = scmp.lt.s32.totalorder %s20, 1
      %s212 = scalar_select %p211, %s20, 1
      %p213 = scmp.lt.s32.totalorder %s22, 0
      %s214 = scalar_select %p213, %s22, 0
      %p215 = scmp.lt.s32.totalorder %s21, 0
      %s216 = scalar_select %p215, %s21, 0
      %s217 = sadd.s32 %s216, %s214
      %s218 = sadd.s32 %s217, %s212
      %s219 = smul.addr %s218, 2
      %s220 = scalar_lea.vmem %s3, %s219
      %p221 = scmp.lt.s32.totalorder %s20, 1
      %s222 = scalar_select %p221, %s20, 1
      %s223 = smul.addr %s222, 54
      %s224 = smul.addr %s223, 4
      %s225 = scalar_lea.vmem %s0, %s224
      %p226 = scmp.lt.s32.totalorder %s21, 0
      %s227 = scalar_select %p226, %s21, 0
      %s228 = smul.addr %s227, 4
      %s229 = scalar_lea.vmem %s1, %s228
      %s230 = smul.u32 32, %s22
      %p231 = scmp.lt.s32.totalorder %s20, 1
      %s232 = scalar_select %p231, %s20, 1
      %p233 = scmp.lt.s32.totalorder %s230, 31
      %s234 = scalar_select %p233, %s230, 31
      %p235 = scmp.lt.s32.totalorder %s21, 0
      %s236 = scalar_select %p235, %s21, 0
      %s237 = sadd.s32 %s236, %s234
      %s238 = smul.addr %s232, 32
      %s239 = sadd.s32 %s237, %s238
      %s240 = smul.addr %s239, 4
      %s241 = scalar_lea.vmem %s2, %s240
      %s242 = smul.u32 32, %s22
      %p243 = scmp.lt.s32.totalorder %s20, 1
      %s244 = scalar_select %p243, %s20, 1
      %p245 = scmp.lt.s32.totalorder %s22, 0
      %s246 = scalar_select %p245, %s22, 0
      %p247 = scmp.lt.s32.totalorder %s21, 0
      %s248 = scalar_select %p247, %s21, 0
      %s249 = sadd.s32 %s248, %s246
      %s250 = sadd.s32 %s249, %s244
      %s251 = smul.addr %s250, 2
      %s252 = scalar_lea.vmem %s3, %s251
      %s254 = smul.u32 %s22, 16
      %s255 = smul.u32 %s254, 3
      %s256 = smul.addr %s255, 4
      %s257 = scalar_lea.vmem %s225, %s256
      %v258 = vld [vmem:[%s257] sm:$0xf]
      %v259 = vld [vmem:[%s257 + $0x4] sm:$0xf]
      %v260 = vld [vmem:[%s257 + $0x8] sm:$0x1]
      %v261 = vld [vmem:[%s257 + $0xc] sm:$0xf]
      %v262 = vld [vmem:[%s257 + $0x10] sm:$0xf]
      %v263 = vld [vmem:[%s257 + $0x14] sm:$0x1]
      %v264 = vld [vmem:[%s257 + $0x18] sm:$0xf]
      %v265 = vld [vmem:[%s257 + $0x1c] sm:$0xf]
      %v266 = vld [vmem:[%s257 + $0x20] sm:$0x1]
      %v267 = vld [vmem:[%s257 + $0x24] sm:$0xf]
      %v268 = vld [vmem:[%s257 + $0x28] sm:$0xf]
      %v269 = vld [vmem:[%s257 + $0x2c] sm:$0x1]
      %v270 = vld [vmem:[%s257 + $0x30] sm:$0xf]
      %v271 = vld [vmem:[%s257 + $0x34] sm:$0xf]
      %v272 = vld [vmem:[%s257 + $0x38] sm:$0x1]
      %v273 = vld [vmem:[%s257 + $0x3c] sm:$0xf]
      %v274 = vld [vmem:[%s257 + $0x40] sm:$0xf]
      %v275 = vld [vmem:[%s257 + $0x44] sm:$0x1]
      %v276 = vld [vmem:[%s257 + $0x48] sm:$0xf]
      %v277 = vld [vmem:[%s257 + $0x4c] sm:$0xf]
      %v278 = vld [vmem:[%s257 + $0x50] sm:$0x1]
      %v279 = vld [vmem:[%s257 + $0x54] sm:$0xf]
      %v280 = vld [vmem:[%s257 + $0x58] sm:$0xf]
      %v281 = vld [vmem:[%s257 + $0x5c] sm:$0x1]
      %v282 = vld [vmem:[%s257 + $0x60] sm:$0xf]
      %v283 = vld [vmem:[%s257 + $0x64] sm:$0xf]
      %v284 = vld [vmem:[%s257 + $0x68] sm:$0x1]
      %v285 = vld [vmem:[%s257 + $0x6c] sm:$0xf]
      %v286 = vld [vmem:[%s257 + $0x70] sm:$0xf]
      %v287 = vld [vmem:[%s257 + $0x74] sm:$0x1]
      %v288 = vld [vmem:[%s257 + $0x78] sm:$0xf]
      %v289 = vld [vmem:[%s257 + $0x7c] sm:$0xf]
      %v290 = vld [vmem:[%s257 + $0x80] sm:$0x1]
      %v291 = vld [vmem:[%s257 + $0x84] sm:$0xf]
      %v292 = vld [vmem:[%s257 + $0x88] sm:$0xf]
      %v293 = vld [vmem:[%s257 + $0x8c] sm:$0x1]
      %v294 = vld [vmem:[%s257 + $0x90] sm:$0xf]
      %v295 = vld [vmem:[%s257 + $0x94] sm:$0xf]
      %v296 = vld [vmem:[%s257 + $0x98] sm:$0x1]
      %v297 = vld [vmem:[%s257 + $0x9c] sm:$0xf]
      %v298 = vld [vmem:[%s257 + $0xa0] sm:$0xf]
      %v299 = vld [vmem:[%s257 + $0xa4] sm:$0x1]
      %v300 = vld [vmem:[%s257 + $0xa8] sm:$0xf]
      %v301 = vld [vmem:[%s257 + $0xac] sm:$0xf]
      %v302 = vld [vmem:[%s257 + $0xb0] sm:$0x1]
      %v303 = vld [vmem:[%s257 + $0xb4] sm:$0xf]
      %v304 = vld [vmem:[%s257 + $0xb8] sm:$0xf]
      %v305 = vld [vmem:[%s257 + $0xbc] sm:$0x1]
      %v338 = vunpack.c.l.b16 %v258
      %v339 = vunpack.c.l.b16 %v259
      %v340 = vunpack.c.l.b16 %v261
      %v341 = vunpack.c.l.b16 %v262
      %v342 = vunpack.c.l.b16 %v264
      %v343 = vunpack.c.l.b16 %v265
      %v344 = vunpack.c.l.b16 %v267
      %v345 = vunpack.c.l.b16 %v268
      %v346 = vunpack.c.l.b16 %v270
      %v347 = vunpack.c.l.b16 %v271
      %v348 = vunpack.c.l.b16 %v273
      %v349 = vunpack.c.l.b16 %v274
      %v350 = vunpack.c.l.b16 %v276
      %v351 = vunpack.c.l.b16 %v277
      %v352 = vunpack.c.l.b16 %v279
      %v353 = vunpack.c.l.b16 %v280
      %v354 = vunpack.c.l.b16 %v282
      %v355 = vunpack.c.l.b16 %v283
      %v356 = vunpack.c.l.b16 %v285
      %v357 = vunpack.c.l.b16 %v286
      %v358 = vunpack.c.l.b16 %v288
      %v359 = vunpack.c.l.b16 %v289
      %v360 = vunpack.c.l.b16 %v291
      %v361 = vunpack.c.l.b16 %v292
      %v362 = vunpack.c.l.b16 %v294
      %v363 = vunpack.c.l.b16 %v295
      %v364 = vunpack.c.l.b16 %v297
      %v365 = vunpack.c.l.b16 %v298
      %v366 = vunpack.c.l.b16 %v300
      %v367 = vunpack.c.l.b16 %v301
      %v368 = vunpack.c.l.b16 %v303
      %v369 = vunpack.c.l.b16 %v304
      %v370 = vpack.c.b16 %v339, %v338
      %v371 = vpack.c.b16 %v341, %v340
      %v372 = vpack.c.b16 %v343, %v342
      %v373 = vpack.c.b16 %v345, %v344
      %v374 = vpack.c.b16 %v347, %v346
      %v375 = vpack.c.b16 %v349, %v348
      %v376 = vpack.c.b16 %v351, %v350
      %v377 = vpack.c.b16 %v353, %v352
      %v378 = vpack.c.b16 %v355, %v354
      %v379 = vpack.c.b16 %v357, %v356
      %v380 = vpack.c.b16 %v359, %v358
      %v381 = vpack.c.b16 %v361, %v360
      %v382 = vpack.c.b16 %v363, %v362
      %v383 = vpack.c.b16 %v365, %v364
      %v384 = vpack.c.b16 %v367, %v366
      %v385 = vpack.c.b16 %v369, %v368
      %v402 = vunpack.c.l.b16 %v260
      %v403 = vunpack.c.l.b16 %v263
      %v404 = vunpack.c.l.b16 %v266
      %v405 = vunpack.c.l.b16 %v269
      %v406 = vunpack.c.l.b16 %v272
      %v407 = vunpack.c.l.b16 %v275
      %v408 = vunpack.c.l.b16 %v278
      %v409 = vunpack.c.l.b16 %v281
      %v410 = vunpack.c.l.b16 %v284
      %v411 = vunpack.c.l.b16 %v287
      %v412 = vunpack.c.l.b16 %v290
      %v413 = vunpack.c.l.b16 %v293
      %v414 = vunpack.c.l.b16 %v296
      %v415 = vunpack.c.l.b16 %v299
      %v416 = vunpack.c.l.b16 %v302
      %v417 = vunpack.c.l.b16 %v305
      %v418 = vpack.c.b16 %v402, %v402
      %v419 = vpack.c.b16 %v403, %v403
      %v420 = vpack.c.b16 %v404, %v404
      %v421 = vpack.c.b16 %v405, %v405
      %v422 = vpack.c.b16 %v406, %v406
      %v423 = vpack.c.b16 %v407, %v407
      %v424 = vpack.c.b16 %v408, %v408
      %v425 = vpack.c.b16 %v409, %v409
      %v426 = vpack.c.b16 %v410, %v410
      %v427 = vpack.c.b16 %v411, %v411
      %v428 = vpack.c.b16 %v412, %v412
      %v429 = vpack.c.b16 %v413, %v413
      %v430 = vpack.c.b16 %v414, %v414
      %v431 = vpack.c.b16 %v415, %v415
      %v432 = vpack.c.b16 %v416, %v416
      %v433 = vpack.c.b16 %v417, %v417
      %vm434 = vsmask.f32 7424
      %v436 = vshrl.u32 %v370, 16
      %v438 = vshll.u32 %v370, 16
      %v440 = vrot.slane %v438, 1
      %v441 = vor.u32 %v436, %v440
      %v443 = vshll.u32 %v418, 16
      %v445 = vrot.slane %v443, 1
      %v446 = vsel %vm434, %v441, %v445
      %v448 = vshrl.u32 %v371, 16
      %v450 = vshll.u32 %v371, 16
      %v452 = vrot.slane %v450, 1
      %v453 = vor.u32 %v448, %v452
      %v455 = vshll.u32 %v419, 16
      %v457 = vrot.slane %v455, 1
      %v458 = vsel %vm434, %v453, %v457
      %v460 = vshrl.u32 %v372, 16
      %v462 = vshll.u32 %v372, 16
      %v464 = vrot.slane %v462, 1
      %v465 = vor.u32 %v460, %v464
      %v467 = vshll.u32 %v420, 16
      %v469 = vrot.slane %v467, 1
      %v470 = vsel %vm434, %v465, %v469
      %v472 = vshrl.u32 %v373, 16
      %v474 = vshll.u32 %v373, 16
      %v476 = vrot.slane %v474, 1
      %v477 = vor.u32 %v472, %v476
      %v479 = vshll.u32 %v421, 16
      %v481 = vrot.slane %v479, 1
      %v482 = vsel %vm434, %v477, %v481
      %v484 = vshrl.u32 %v374, 16
      %v486 = vshll.u32 %v374, 16
      %v488 = vrot.slane %v486, 1
      %v489 = vor.u32 %v484, %v488
      %v491 = vshll.u32 %v422, 16
      %v493 = vrot.slane %v491, 1
      %v494 = vsel %vm434, %v489, %v493
      %v496 = vshrl.u32 %v375, 16
      %v498 = vshll.u32 %v375, 16
      %v500 = vrot.slane %v498, 1
      %v501 = vor.u32 %v496, %v500
      %v503 = vshll.u32 %v423, 16
      %v505 = vrot.slane %v503, 1
      %v506 = vsel %vm434, %v501, %v505
      %v508 = vshrl.u32 %v376, 16
      %v510 = vshll.u32 %v376, 16
      %v512 = vrot.slane %v510, 1
      %v513 = vor.u32 %v508, %v512
      %v515 = vshll.u32 %v424, 16
      %v517 = vrot.slane %v515, 1
      %v518 = vsel %vm434, %v513, %v517
      %v520 = vshrl.u32 %v377, 16
      %v522 = vshll.u32 %v377, 16
      %v524 = vrot.slane %v522, 1
      %v525 = vor.u32 %v520, %v524
      %v527 = vshll.u32 %v425, 16
      %v529 = vrot.slane %v527, 1
      %v530 = vsel %vm434, %v525, %v529
      %v532 = vshrl.u32 %v378, 16
      %v534 = vshll.u32 %v378, 16
      %v536 = vrot.slane %v534, 1
      %v537 = vor.u32 %v532, %v536
      %v539 = vshll.u32 %v426, 16
      %v541 = vrot.slane %v539, 1
      %v542 = vsel %vm434, %v537, %v541
      %v544 = vshrl.u32 %v379, 16
      %v546 = vshll.u32 %v379, 16
      %v548 = vrot.slane %v546, 1
      %v549 = vor.u32 %v544, %v548
      %v551 = vshll.u32 %v427, 16
      %v553 = vrot.slane %v551, 1
      %v554 = vsel %vm434, %v549, %v553
      %v556 = vshrl.u32 %v380, 16
      %v558 = vshll.u32 %v380, 16
      %v560 = vrot.slane %v558, 1
      %v561 = vor.u32 %v556, %v560
      %v563 = vshll.u32 %v428, 16
      %v565 = vrot.slane %v563, 1
      %v566 = vsel %vm434, %v561, %v565
      %v568 = vshrl.u32 %v381, 16
      %v570 = vshll.u32 %v381, 16
      %v572 = vrot.slane %v570, 1
      %v573 = vor.u32 %v568, %v572
      %v575 = vshll.u32 %v429, 16
      %v577 = vrot.slane %v575, 1
      %v578 = vsel %vm434, %v573, %v577
      %v580 = vshrl.u32 %v382, 16
      %v582 = vshll.u32 %v382, 16
      %v584 = vrot.slane %v582, 1
      %v585 = vor.u32 %v580, %v584
      %v587 = vshll.u32 %v430, 16
      %v589 = vrot.slane %v587, 1
      %v590 = vsel %vm434, %v585, %v589
      %v592 = vshrl.u32 %v383, 16
      %v594 = vshll.u32 %v383, 16
      %v596 = vrot.slane %v594, 1
      %v597 = vor.u32 %v592, %v596
      %v599 = vshll.u32 %v431, 16
      %v601 = vrot.slane %v599, 1
      %v602 = vsel %vm434, %v597, %v601
      %v604 = vshrl.u32 %v384, 16
      %v606 = vshll.u32 %v384, 16
      %v608 = vrot.slane %v606, 1
      %v609 = vor.u32 %v604, %v608
      %v611 = vshll.u32 %v432, 16
      %v613 = vrot.slane %v611, 1
      %v614 = vsel %vm434, %v609, %v613
      %v616 = vshrl.u32 %v385, 16
      %v618 = vshll.u32 %v385, 16
      %v620 = vrot.slane %v618, 1
      %v621 = vor.u32 %v616, %v620
      %v623 = vshll.u32 %v433, 16
      %v625 = vrot.slane %v623, 1
      %v626 = vsel %vm434, %v621, %v625
      %627 = vrot.lane.b32.xlu0 %v446, 4
      %v628 = vpop.permute.xlu0 %627
      %629 = vrot.lane.b32.xlu0 %v458, 4
      %v630 = vpop.permute.xlu0 %629
      %631 = vrot.lane.b32.xlu0 %v470, 4
      %v632 = vpop.permute.xlu0 %631
      %633 = vrot.lane.b32.xlu0 %v482, 4
      %v634 = vpop.permute.xlu0 %633
      %635 = vrot.lane.b32.xlu0 %v494, 4
      %v636 = vpop.permute.xlu0 %635
      %637 = vrot.lane.b32.xlu0 %v506, 4
      %v638 = vpop.permute.xlu0 %637
      %639 = vrot.lane.b32.xlu0 %v518, 4
      %v640 = vpop.permute.xlu0 %639
      %641 = vrot.lane.b32.xlu0 %v530, 4
      %v642 = vpop.permute.xlu0 %641
      %643 = vrot.lane.b32.xlu0 %v542, 4
      %v644 = vpop.permute.xlu0 %643
      %645 = vrot.lane.b32.xlu0 %v554, 4
      %v646 = vpop.permute.xlu0 %645
      %647 = vrot.lane.b32.xlu0 %v566, 4
      %v648 = vpop.permute.xlu0 %647
      %649 = vrot.lane.b32.xlu0 %v578, 4
      %v650 = vpop.permute.xlu0 %649
      %651 = vrot.lane.b32.xlu0 %v590, 4
      %v652 = vpop.permute.xlu0 %651
      %653 = vrot.lane.b32.xlu0 %v602, 4
      %v654 = vpop.permute.xlu0 %653
      %655 = vrot.lane.b32.xlu0 %v614, 4
      %v656 = vpop.permute.xlu0 %655
      %657 = vrot.lane.b32.xlu0 %v626, 4
      %v658 = vpop.permute.xlu0 %657
      %vm659 = vcmask 1046528
      %v660 = vrot.slane %v370, 1
      %v661 = vrot.slane %v418, 1
      %v662 = vsel %vm659, %v660, %v661
      %v663 = vrot.slane %v371, 1
      %v664 = vrot.slane %v419, 1
      %v665 = vsel %vm659, %v663, %v664
      %v666 = vrot.slane %v372, 1
      %v667 = vrot.slane %v420, 1
      %v668 = vsel %vm659, %v666, %v667
      %v669 = vrot.slane %v373, 1
      %v670 = vrot.slane %v421, 1
      %v671 = vsel %vm659, %v669, %v670
      %v672 = vrot.slane %v374, 1
      %v673 = vrot.slane %v422, 1
      %v674 = vsel %vm659, %v672, %v673
      %v675 = vrot.slane %v375, 1
      %v676 = vrot.slane %v423, 1
      %v677 = vsel %vm659, %v675, %v676
      %v678 = vrot.slane %v376, 1
      %v679 = vrot.slane %v424, 1
      %v680 = vsel %vm659, %v678, %v679
      %v681 = vrot.slane %v377, 1
      %v682 = vrot.slane %v425, 1
      %v683 = vsel %vm659, %v681, %v682
      %v684 = vrot.slane %v378, 1
      %v685 = vrot.slane %v426, 1
      %v686 = vsel %vm659, %v684, %v685
      %v687 = vrot.slane %v379, 1
      %v688 = vrot.slane %v427, 1
      %v689 = vsel %vm659, %v687, %v688
      %v690 = vrot.slane %v380, 1
      %v691 = vrot.slane %v428, 1
      %v692 = vsel %vm659, %v690, %v691
      %v693 = vrot.slane %v381, 1
      %v694 = vrot.slane %v429, 1
      %v695 = vsel %vm659, %v693, %v694
      %v696 = vrot.slane %v382, 1
      %v697 = vrot.slane %v430, 1
      %v698 = vsel %vm659, %v696, %v697
      %v699 = vrot.slane %v383, 1
      %v700 = vrot.slane %v431, 1
      %v701 = vsel %vm659, %v699, %v700
      %v702 = vrot.slane %v384, 1
      %v703 = vrot.slane %v432, 1
      %v704 = vsel %vm659, %v702, %v703
      %v705 = vrot.slane %v385, 1
      %v706 = vrot.slane %v433, 1
      %v707 = vsel %vm659, %v705, %v706
      %708 = vrot.lane.b32.xlu0 %v662, 8
      %v709 = vpop.permute.xlu0 %708
      %710 = vrot.lane.b32.xlu0 %v665, 8
      %v711 = vpop.permute.xlu0 %710
      %712 = vrot.lane.b32.xlu0 %v668, 8
      %v713 = vpop.permute.xlu0 %712
      %714 = vrot.lane.b32.xlu0 %v671, 8
      %v715 = vpop.permute.xlu0 %714
      %716 = vrot.lane.b32.xlu0 %v674, 8
      %v717 = vpop.permute.xlu0 %716
      %718 = vrot.lane.b32.xlu0 %v677, 8
      %v719 = vpop.permute.xlu0 %718
      %720 = vrot.lane.b32.xlu0 %v680, 8
      %v721 = vpop.permute.xlu0 %720
      %722 = vrot.lane.b32.xlu0 %v683, 8
      %v723 = vpop.permute.xlu0 %722
      %724 = vrot.lane.b32.xlu0 %v686, 8
      %v725 = vpop.permute.xlu0 %724
      %726 = vrot.lane.b32.xlu0 %v689, 8
      %v727 = vpop.permute.xlu0 %726
      %728 = vrot.lane.b32.xlu0 %v692, 8
      %v729 = vpop.permute.xlu0 %728
      %730 = vrot.lane.b32.xlu0 %v695, 8
      %v731 = vpop.permute.xlu0 %730
      %732 = vrot.lane.b32.xlu0 %v698, 8
      %v733 = vpop.permute.xlu0 %732
      %734 = vrot.lane.b32.xlu0 %v701, 8
      %v735 = vpop.permute.xlu0 %734
      %736 = vrot.lane.b32.xlu0 %v704, 8
      %v737 = vpop.permute.xlu0 %736
      %738 = vrot.lane.b32.xlu0 %v707, 8
      %v739 = vpop.permute.xlu0 %738
      %vm740 = vcmask 31744
      %v742 = vsel %vm740, %v370, %v628
      %v744 = vsel %vm740, %v371, %v630
      %v746 = vsel %vm740, %v372, %v632
      %v748 = vsel %vm740, %v373, %v634
      %v750 = vsel %vm740, %v374, %v636
      %v752 = vsel %vm740, %v375, %v638
      %v754 = vsel %vm740, %v376, %v640
      %v756 = vsel %vm740, %v377, %v642
      %v758 = vsel %vm740, %v378, %v644
      %v760 = vsel %vm740, %v379, %v646
      %v762 = vsel %vm740, %v380, %v648
      %v764 = vsel %vm740, %v381, %v650
      %v766 = vsel %vm740, %v382, %v652
      %v768 = vsel %vm740, %v383, %v654
      %v770 = vsel %vm740, %v384, %v656
      %v772 = vsel %vm740, %v385, %v658
      %vm773 = vcmask 64512
      %v775 = vsel %vm773, %v742, %v709
      %v777 = vsel %vm773, %v744, %v711
      %v779 = vsel %vm773, %v746, %v713
      %v781 = vsel %vm773, %v748, %v715
      %v783 = vsel %vm773, %v750, %v717
      %v785 = vsel %vm773, %v752, %v719
      %v787 = vsel %vm773, %v754, %v721
      %v789 = vsel %vm773, %v756, %v723
      %v791 = vsel %vm773, %v758, %v725
      %v793 = vsel %vm773, %v760, %v727
      %v795 = vsel %vm773, %v762, %v729
      %v797 = vsel %vm773, %v764, %v731
      %v799 = vsel %vm773, %v766, %v733
      %v801 = vsel %vm773, %v768, %v735
      %v803 = vsel %vm773, %v770, %v737
      %v805 = vsel %vm773, %v772, %v739
      %v806 = vld [vmem:[%s229] sm:$0xf]
      %v807 = vld [vmem:[%s229 + $0x4] sm:$0x3]
      %s808 = sadd.s32 %s254, 1
      %s809 = smul.u32 %s808, 3
      %s810 = smul.addr %s809, 4
      %s811 = scalar_lea.vmem %s225, %s810
      %v812 = vld [vmem:[%s811] sm:$0xf]
      %v813 = vld [vmem:[%s811 + $0x4] sm:$0xf]
      %v814 = vld [vmem:[%s811 + $0x8] sm:$0x1]
      %v815 = vld [vmem:[%s811 + $0xc] sm:$0xf]
      %v816 = vld [vmem:[%s811 + $0x10] sm:$0xf]
      %v817 = vld [vmem:[%s811 + $0x14] sm:$0x1]
      %v818 = vld [vmem:[%s811 + $0x18] sm:$0xf]
      %v819 = vld [vmem:[%s811 + $0x1c] sm:$0xf]
      %v820 = vld [vmem:[%s811 + $0x20] sm:$0x1]
      %v821 = vld [vmem:[%s811 + $0x24] sm:$0xf]
      %v822 = vld [vmem:[%s811 + $0x28] sm:$0xf]
      %v823 = vld [vmem:[%s811 + $0x2c] sm:$0x1]
      %v824 = vld [vmem:[%s811 + $0x30] sm:$0xf]
      %v825 = vld [vmem:[%s811 + $0x34] sm:$0xf]
      %v826 = vld [vmem:[%s811 + $0x38] sm:$0x1]
      %v827 = vld [vmem:[%s811 + $0x3c] sm:$0xf]
      %v828 = vld [vmem:[%s811 + $0x40] sm:$0xf]
      %v829 = vld [vmem:[%s811 + $0x44] sm:$0x1]
      %v830 = vld [vmem:[%s811 + $0x48] sm:$0xf]
      %v831 = vld [vmem:[%s811 + $0x4c] sm:$0xf]
      %v832 = vld [vmem:[%s811 + $0x50] sm:$0x1]
      %v833 = vld [vmem:[%s811 + $0x54] sm:$0xf]
      %v834 = vld [vmem:[%s811 + $0x58] sm:$0xf]
      %v835 = vld [vmem:[%s811 + $0x5c] sm:$0x1]
      %v836 = vld [vmem:[%s811 + $0x60] sm:$0xf]
      %v837 = vld [vmem:[%s811 + $0x64] sm:$0xf]
      %v838 = vld [vmem:[%s811 + $0x68] sm:$0x1]
      %v839 = vld [vmem:[%s811 + $0x6c] sm:$0xf]
      %v840 = vld [vmem:[%s811 + $0x70] sm:$0xf]
      %v841 = vld [vmem:[%s811 + $0x74] sm:$0x1]
      %v842 = vld [vmem:[%s811 + $0x78] sm:$0xf]
      %v843 = vld [vmem:[%s811 + $0x7c] sm:$0xf]
      %v844 = vld [vmem:[%s811 + $0x80] sm:$0x1]
      %v845 = vld [vmem:[%s811 + $0x84] sm:$0xf]
      %v846 = vld [vmem:[%s811 + $0x88] sm:$0xf]
      %v847 = vld [vmem:[%s811 + $0x8c] sm:$0x1]
      %v848 = vld [vmem:[%s811 + $0x90] sm:$0xf]
      %v849 = vld [vmem:[%s811 + $0x94] sm:$0xf]
      %v850 = vld [vmem:[%s811 + $0x98] sm:$0x1]
      %v851 = vld [vmem:[%s811 + $0x9c] sm:$0xf]
      %v852 = vld [vmem:[%s811 + $0xa0] sm:$0xf]
      %v853 = vld [vmem:[%s811 + $0xa4] sm:$0x1]
      %v854 = vld [vmem:[%s811 + $0xa8] sm:$0xf]
      %v855 = vld [vmem:[%s811 + $0xac] sm:$0xf]
      %v856 = vld [vmem:[%s811 + $0xb0] sm:$0x1]
      %v857 = vld [vmem:[%s811 + $0xb4] sm:$0xf]
      %v858 = vld [vmem:[%s811 + $0xb8] sm:$0xf]
      %v859 = vld [vmem:[%s811 + $0xbc] sm:$0x1]
      %v892 = vunpack.c.l.b16 %v812
      %v893 = vunpack.c.l.b16 %v813
      %v894 = vunpack.c.l.b16 %v815
      %v895 = vunpack.c.l.b16 %v816
      %v896 = vunpack.c.l.b16 %v818
      %v897 = vunpack.c.l.b16 %v819
      %v898 = vunpack.c.l.b16 %v821
      %v899 = vunpack.c.l.b16 %v822
      %v900 = vunpack.c.l.b16 %v824
      %v901 = vunpack.c.l.b16 %v825
      %v902 = vunpack.c.l.b16 %v827
      %v903 = vunpack.c.l.b16 %v828
      %v904 = vunpack.c.l.b16 %v830
      %v905 = vunpack.c.l.b16 %v831
      %v906 = vunpack.c.l.b16 %v833
      %v907 = vunpack.c.l.b16 %v834
      %v908 = vunpack.c.l.b16 %v836
      %v909 = vunpack.c.l.b16 %v837
      %v910 = vunpack.c.l.b16 %v839
      %v911 = vunpack.c.l.b16 %v840
      %v912 = vunpack.c.l.b16 %v842
      %v913 = vunpack.c.l.b16 %v843
      %v914 = vunpack.c.l.b16 %v845
      %v915 = vunpack.c.l.b16 %v846
      %v916 = vunpack.c.l.b16 %v848
      %v917 = vunpack.c.l.b16 %v849
      %v918 = vunpack.c.l.b16 %v851
      %v919 = vunpack.c.l.b16 %v852
      %v920 = vunpack.c.l.b16 %v854
      %v921 = vunpack.c.l.b16 %v855
      %v922 = vunpack.c.l.b16 %v857
      %v923 = vunpack.c.l.b16 %v858
      %v924 = vpack.c.b16 %v893, %v892
      %v925 = vpack.c.b16 %v895, %v894
      %v926 = vpack.c.b16 %v897, %v896
      %v927 = vpack.c.b16 %v899, %v898
      %v928 = vpack.c.b16 %v901, %v900
      %v929 = vpack.c.b16 %v903, %v902
      %v930 = vpack.c.b16 %v905, %v904
      %v931 = vpack.c.b16 %v907, %v906
      %v932 = vpack.c.b16 %v909, %v908
      %v933 = vpack.c.b16 %v911, %v910
      %v934 = vpack.c.b16 %v913, %v912
      %v935 = vpack.c.b16 %v915, %v914
      %v936 = vpack.c.b16 %v917, %v916
      %v937 = vpack.c.b16 %v919, %v918
      %v938 = vpack.c.b16 %v921, %v920
      %v939 = vpack.c.b16 %v923, %v922
      %v956 = vunpack.c.l.b16 %v814
      %v957 = vunpack.c.l.b16 %v817
      %v958 = vunpack.c.l.b16 %v820
      %v959 = vunpack.c.l.b16 %v823
      %v960 = vunpack.c.l.b16 %v826
      %v961 = vunpack.c.l.b16 %v829
      %v962 = vunpack.c.l.b16 %v832
      %v963 = vunpack.c.l.b16 %v835
      %v964 = vunpack.c.l.b16 %v838
      %v965 = vunpack.c.l.b16 %v841
      %v966 = vunpack.c.l.b16 %v844
      %v967 = vunpack.c.l.b16 %v847
      %v968 = vunpack.c.l.b16 %v850
      %v969 = vunpack.c.l.b16 %v853
      %v970 = vunpack.c.l.b16 %v856
      %v971 = vunpack.c.l.b16 %v859
      %v972 = vpack.c.b16 %v956, %v956
      %v973 = vpack.c.b16 %v957, %v957
      %v974 = vpack.c.b16 %v958, %v958
      %v975 = vpack.c.b16 %v959, %v959
      %v976 = vpack.c.b16 %v960, %v960
      %v977 = vpack.c.b16 %v961, %v961
      %v978 = vpack.c.b16 %v962, %v962
      %v979 = vpack.c.b16 %v963, %v963
      %v980 = vpack.c.b16 %v964, %v964
      %v981 = vpack.c.b16 %v965, %v965
      %v982 = vpack.c.b16 %v966, %v966
      %v983 = vpack.c.b16 %v967, %v967
      %v984 = vpack.c.b16 %v968, %v968
      %v985 = vpack.c.b16 %v969, %v969
      %v986 = vpack.c.b16 %v970, %v970
      %v987 = vpack.c.b16 %v971, %v971
      %v989 = vshrl.u32 %v924, 16
      %v991 = vshll.u32 %v924, 16
      %v993 = vrot.slane %v991, 1
      %v994 = vor.u32 %v989, %v993
      %v996 = vshll.u32 %v972, 16
      %v998 = vrot.slane %v996, 1
      %v999 = vsel %vm434, %v994, %v998
      %v1001 = vshrl.u32 %v925, 16
      %v1003 = vshll.u32 %v925, 16
      %v1005 = vrot.slane %v1003, 1
      %v1006 = vor.u32 %v1001, %v1005
      %v1008 = vshll.u32 %v973, 16
      %v1010 = vrot.slane %v1008, 1
      %v1011 = vsel %vm434, %v1006, %v1010
      %v1013 = vshrl.u32 %v926, 16
      %v1015 = vshll.u32 %v926, 16
      %v1017 = vrot.slane %v1015, 1
      %v1018 = vor.u32 %v1013, %v1017
      %v1020 = vshll.u32 %v974, 16
      %v1022 = vrot.slane %v1020, 1
      %v1023 = vsel %vm434, %v1018, %v1022
      %v1025 = vshrl.u32 %v927, 16
      %v1027 = vshll.u32 %v927, 16
      %v1029 = vrot.slane %v1027, 1
      %v1030 = vor.u32 %v1025, %v1029
      %v1032 = vshll.u32 %v975, 16
      %v1034 = vrot.slane %v1032, 1
      %v1035 = vsel %vm434, %v1030, %v1034
      %v1037 = vshrl.u32 %v928, 16
      %v1039 = vshll.u32 %v928, 16
      %v1041 = vrot.slane %v1039, 1
      %v1042 = vor.u32 %v1037, %v1041
      %v1044 = vshll.u32 %v976, 16
      %v1046 = vrot.slane %v1044, 1
      %v1047 = vsel %vm434, %v1042, %v1046
      %v1049 = vshrl.u32 %v929, 16
      %v1051 = vshll.u32 %v929, 16
      %v1053 = vrot.slane %v1051, 1
      %v1054 = vor.u32 %v1049, %v1053
      %v1056 = vshll.u32 %v977, 16
      %v1058 = vrot.slane %v1056, 1
      %v1059 = vsel %vm434, %v1054, %v1058
      %v1061 = vshrl.u32 %v930, 16
      %v1063 = vshll.u32 %v930, 16
      %v1065 = vrot.slane %v1063, 1
      %v1066 = vor.u32 %v1061, %v1065
      %v1068 = vshll.u32 %v978, 16
      %v1070 = vrot.slane %v1068, 1
      %v1071 = vsel %vm434, %v1066, %v1070
      %v1073 = vshrl.u32 %v931, 16
      %v1075 = vshll.u32 %v931, 16
      %v1077 = vrot.slane %v1075, 1
      %v1078 = vor.u32 %v1073, %v1077
      %v1080 = vshll.u32 %v979, 16
      %v1082 = vrot.slane %v1080, 1
      %v1083 = vsel %vm434, %v1078, %v1082
      %v1085 = vshrl.u32 %v932, 16
      %v1087 = vshll.u32 %v932, 16
      %v1089 = vrot.slane %v1087, 1
      %v1090 = vor.u32 %v1085, %v1089
      %v1092 = vshll.u32 %v980, 16
      %v1094 = vrot.slane %v1092, 1
      %v1095 = vsel %vm434, %v1090, %v1094
      %v1097 = vshrl.u32 %v933, 16
      %v1099 = vshll.u32 %v933, 16
      %v1101 = vrot.slane %v1099, 1
      %v1102 = vor.u32 %v1097, %v1101
      %v1104 = vshll.u32 %v981, 16
      %v1106 = vrot.slane %v1104, 1
      %v1107 = vsel %vm434, %v1102, %v1106
      %v1109 = vshrl.u32 %v934, 16
      %v1111 = vshll.u32 %v934, 16
      %v1113 = vrot.slane %v1111, 1
      %v1114 = vor.u32 %v1109, %v1113
      %v1116 = vshll.u32 %v982, 16
      %v1118 = vrot.slane %v1116, 1
      %v1119 = vsel %vm434, %v1114, %v1118
      %v1121 = vshrl.u32 %v935, 16
      %v1123 = vshll.u32 %v935, 16
      %v1125 = vrot.slane %v1123, 1
      %v1126 = vor.u32 %v1121, %v1125
      %v1128 = vshll.u32 %v983, 16
      %v1130 = vrot.slane %v1128, 1
      %v1131 = vsel %vm434, %v1126, %v1130
      %v1133 = vshrl.u32 %v936, 16
      %v1135 = vshll.u32 %v936, 16
      %v1137 = vrot.slane %v1135, 1
      %v1138 = vor.u32 %v1133, %v1137
      %v1140 = vshll.u32 %v984, 16
      %v1142 = vrot.slane %v1140, 1
      %v1143 = vsel %vm434, %v1138, %v1142
      %v1145 = vshrl.u32 %v937, 16
      %v1147 = vshll.u32 %v937, 16
      %v1149 = vrot.slane %v1147, 1
      %v1150 = vor.u32 %v1145, %v1149
      %v1152 = vshll.u32 %v985, 16
      %v1154 = vrot.slane %v1152, 1
      %v1155 = vsel %vm434, %v1150, %v1154
      %v1157 = vshrl.u32 %v938, 16
      %v1159 = vshll.u32 %v938, 16
      %v1161 = vrot.slane %v1159, 1
      %v1162 = vor.u32 %v1157, %v1161
      %v1164 = vshll.u32 %v986, 16
      %v1166 = vrot.slane %v1164, 1
      %v1167 = vsel %vm434, %v1162, %v1166
      %v1169 = vshrl.u32 %v939, 16
      %v1171 = vshll.u32 %v939, 16
      %v1173 = vrot.slane %v1171, 1
      %v1174 = vor.u32 %v1169, %v1173
      %v1176 = vshll.u32 %v987, 16
      %v1178 = vrot.slane %v1176, 1
      %v1179 = vsel %vm434, %v1174, %v1178
      %1180 = vrot.lane.b32.xlu0 %v999, 4
      %v1181 = vpop.permute.xlu0 %1180
      %1182 = vrot.lane.b32.xlu0 %v1011, 4
      %v1183 = vpop.permute.xlu0 %1182
      %1184 = vrot.lane.b32.xlu0 %v1023, 4
      %v1185 = vpop.permute.xlu0 %1184
      %1186 = vrot.lane.b32.xlu0 %v1035, 4
      %v1187 = vpop.permute.xlu0 %1186
      %1188 = vrot.lane.b32.xlu0 %v1047, 4
      %v1189 = vpop.permute.xlu0 %1188
      %1190 = vrot.lane.b32.xlu0 %v1059, 4
      %v1191 = vpop.permute.xlu0 %1190
      %1192 = vrot.lane.b32.xlu0 %v1071, 4
      %v1193 = vpop.permute.xlu0 %1192
      %1194 = vrot.lane.b32.xlu0 %v1083, 4
      %v1195 = vpop.permute.xlu0 %1194
      %1196 = vrot.lane.b32.xlu0 %v1095, 4
      %v1197 = vpop.permute.xlu0 %1196
      %1198 = vrot.lane.b32.xlu0 %v1107, 4
      %v1199 = vpop.permute.xlu0 %1198
      %1200 = vrot.lane.b32.xlu0 %v1119, 4
      %v1201 = vpop.permute.xlu0 %1200
      %1202 = vrot.lane.b32.xlu0 %v1131, 4
      %v1203 = vpop.permute.xlu0 %1202
      %1204 = vrot.lane.b32.xlu0 %v1143, 4
      %v1205 = vpop.permute.xlu0 %1204
      %1206 = vrot.lane.b32.xlu0 %v1155, 4
      %v1207 = vpop.permute.xlu0 %1206
      %1208 = vrot.lane.b32.xlu0 %v1167, 4
      %v1209 = vpop.permute.xlu0 %1208
      %1210 = vrot.lane.b32.xlu0 %v1179, 4
      %v1211 = vpop.permute.xlu0 %1210
      %v1212 = vrot.slane %v924, 1
      %v1213 = vrot.slane %v972, 1
      %v1214 = vsel %vm659, %v1212, %v1213
      %v1215 = vrot.slane %v925, 1
      %v1216 = vrot.slane %v973, 1
      %v1217 = vsel %vm659, %v1215, %v1216
      %v1218 = vrot.slane %v926, 1
      %v1219 = vrot.slane %v974, 1
      %v1220 = vsel %vm659, %v1218, %v1219
      %v1221 = vrot.slane %v927, 1
      %v1222 = vrot.slane %v975, 1
      %v1223 = vsel %vm659, %v1221, %v1222
      %v1224 = vrot.slane %v928, 1
      %v1225 = vrot.slane %v976, 1
      %v1226 = vsel %vm659, %v1224, %v1225
      %v1227 = vrot.slane %v929, 1
      %v1228 = vrot.slane %v977, 1
      %v1229 = vsel %vm659, %v1227, %v1228
      %v1230 = vrot.slane %v930, 1
      %v1231 = vrot.slane %v978, 1
      %v1232 = vsel %vm659, %v1230, %v1231
      %v1233 = vrot.slane %v931, 1
      %v1234 = vrot.slane %v979, 1
      %v1235 = vsel %vm659, %v1233, %v1234
      %v1236 = vrot.slane %v932, 1
      %v1237 = vrot.slane %v980, 1
      %v1238 = vsel %vm659, %v1236, %v1237
      %v1239 = vrot.slane %v933, 1
      %v1240 = vrot.slane %v981, 1
      %v1241 = vsel %vm659, %v1239, %v1240
      %v1242 = vrot.slane %v934, 1
      %v1243 = vrot.slane %v982, 1
      %v1244 = vsel %vm659, %v1242, %v1243
      %v1245 = vrot.slane %v935, 1
      %v1246 = vrot.slane %v983, 1
      %v1247 = vsel %vm659, %v1245, %v1246
      %v1248 = vrot.slane %v936, 1
      %v1249 = vrot.slane %v984, 1
      %v1250 = vsel %vm659, %v1248, %v1249
      %v1251 = vrot.slane %v937, 1
      %v1252 = vrot.slane %v985, 1
      %v1253 = vsel %vm659, %v1251, %v1252
      %v1254 = vrot.slane %v938, 1
      %v1255 = vrot.slane %v986, 1
      %v1256 = vsel %vm659, %v1254, %v1255
      %v1257 = vrot.slane %v939, 1
      %v1258 = vrot.slane %v987, 1
      %v1259 = vsel %vm659, %v1257, %v1258
      %1260 = vrot.lane.b32.xlu0 %v1214, 8
      %v1261 = vpop.permute.xlu0 %1260
      %1262 = vrot.lane.b32.xlu0 %v1217, 8
      %v1263 = vpop.permute.xlu0 %1262
      %1264 = vrot.lane.b32.xlu0 %v1220, 8
      %v1265 = vpop.permute.xlu0 %1264
      %1266 = vrot.lane.b32.xlu0 %v1223, 8
      %v1267 = vpop.permute.xlu0 %1266
      %1268 = vrot.lane.b32.xlu0 %v1226, 8
      %v1269 = vpop.permute.xlu0 %1268
      %1270 = vrot.lane.b32.xlu0 %v1229, 8
      %v1271 = vpop.permute.xlu0 %1270
      %1272 = vrot.lane.b32.xlu0 %v1232, 8
      %v1273 = vpop.permute.xlu0 %1272
      %1274 = vrot.lane.b32.xlu0 %v1235, 8
      %v1275 = vpop.permute.xlu0 %1274
      %1276 = vrot.lane.b32.xlu0 %v1238, 8
      %v1277 = vpop.permute.xlu0 %1276
      %1278 = vrot.lane.b32.xlu0 %v1241, 8
      %v1279 = vpop.permute.xlu0 %1278
      %1280 = vrot.lane.b32.xlu0 %v1244, 8
      %v1281 = vpop.permute.xlu0 %1280
      %1282 = vrot.lane.b32.xlu0 %v1247, 8
      %v1283 = vpop.permute.xlu0 %1282
      %1284 = vrot.lane.b32.xlu0 %v1250, 8
      %v1285 = vpop.permute.xlu0 %1284
      %1286 = vrot.lane.b32.xlu0 %v1253, 8
      %v1287 = vpop.permute.xlu0 %1286
      %1288 = vrot.lane.b32.xlu0 %v1256, 8
      %v1289 = vpop.permute.xlu0 %1288
      %1290 = vrot.lane.b32.xlu0 %v1259, 8
      %v1291 = vpop.permute.xlu0 %1290
      %v1293 = vsel %vm740, %v924, %v1181
      %v1295 = vsel %vm740, %v925, %v1183
      %v1297 = vsel %vm740, %v926, %v1185
      %v1299 = vsel %vm740, %v927, %v1187
      %v1301 = vsel %vm740, %v928, %v1189
      %v1303 = vsel %vm740, %v929, %v1191
      %v1305 = vsel %vm740, %v930, %v1193
      %v1307 = vsel %vm740, %v931, %v1195
      %v1309 = vsel %vm740, %v932, %v1197
      %v1311 = vsel %vm740, %v933, %v1199
      %v1313 = vsel %vm740, %v934, %v1201
      %v1315 = vsel %vm740, %v935, %v1203
      %v1317 = vsel %vm740, %v936, %v1205
      %v1319 = vsel %vm740, %v937, %v1207
      %v1321 = vsel %vm740, %v938, %v1209
      %v1323 = vsel %vm740, %v939, %v1211
      %v1325 = vsel %vm773, %v1293, %v1261
      %v1327 = vsel %vm773, %v1295, %v1263
      %v1329 = vsel %vm773, %v1297, %v1265
      %v1331 = vsel %vm773, %v1299, %v1267
      %v1333 = vsel %vm773, %v1301, %v1269
      %v1335 = vsel %vm773, %v1303, %v1271
      %v1337 = vsel %vm773, %v1305, %v1273
      %v1339 = vsel %vm773, %v1307, %v1275
      %v1341 = vsel %vm773, %v1309, %v1277
      %v1343 = vsel %vm773, %v1311, %v1279
      %v1345 = vsel %vm773, %v1313, %v1281
      %v1347 = vsel %vm773, %v1315, %v1283
      %v1349 = vsel %vm773, %v1317, %v1285
      %v1351 = vsel %vm773, %v1319, %v1287
      %v1353 = vsel %vm773, %v1321, %v1289
      %v1355 = vsel %vm773, %v1323, %v1291
      %s1356 = scalar_lea.vmem %s229, 8
      %v1357 = vld [vmem:[%s1356] sm:$0xf]
      %v1358 = vld [vmem:[%s1356 + $0x4] sm:$0x3]
      %v1361 = vunpack.c.l.b16 %v1357
      %v1362 = vunpack.c.l.b16 %v1358
      %v1363 = vpack.c.b16 %v1362, %v1361
      %vm1364 = vcmask 97280
      %v1365 = vsel %vm1364, %v1325, 0
      %v1367 = vsel %vm1364, %v1327, 0
      %v1369 = vsel %vm1364, %v1329, 0
      %v1371 = vsel %vm1364, %v1331, 0
      %v1373 = vsel %vm1364, %v1333, 0
      %v1375 = vsel %vm1364, %v1335, 0
      %v1377 = vsel %vm1364, %v1337, 0
      %v1379 = vsel %vm1364, %v1339, 0
      %v1381 = vsel %vm1364, %v1341, 0
      %v1383 = vsel %vm1364, %v1343, 0
      %v1385 = vsel %vm1364, %v1345, 0
      %v1387 = vsel %vm1364, %v1347, 0
      %v1389 = vsel %vm1364, %v1349, 0
      %v1391 = vsel %vm1364, %v1351, 0
      %v1393 = vsel %vm1364, %v1353, 0
      %v1395 = vsel %vm1364, %v1355, 0
      %vm1397 = vcmask 1045504
      %v1399 = vsel %vm1397, %v1363, 0
      %1401 = vmatprep.subr.bf16.mxu0 0
      %1402 = vmatpush1.bf16.msra.mxu0 %v1399
      %1403 = vmatprep.subr.bf16.mxu0 0
      %1404 = vmatpush1.bf16.msra.mxu0 0
      %1405 = vmatprep.subr.bf16.mxu0 0
      %1406 = vmatpush1.bf16.msra.mxu0 0
      %1407 = vmatprep.subr.bf16.mxu0 0
      %1408 = vmatpush1.bf16.msra.mxu0 0
      %1409 = vmatprep.subr.bf16.mxu0 0
      %1410 = vmatpush1.bf16.msra.mxu0 0
      %1411 = vmatprep.subr.bf16.mxu0 0
      %1412 = vmatpush1.bf16.msra.mxu0 0
      %1413 = vmatprep.subr.bf16.mxu0 0
      %1414 = vmatpush1.bf16.msra.mxu0 0
      %1415 = vmatprep.subr.bf16.mxu0 0
      %1416 = vmatpush1.bf16.msra.mxu0 0
      %1417 = vmatprep.subr.bf16.mxu0 0
      %1418 = vmatpush1.bf16.msra.mxu0 0
      %1419 = vmatprep.subr.bf16.mxu0 0
      %1420 = vmatpush1.bf16.msra.mxu0 0
      %1421 = vmatprep.subr.bf16.mxu0 0
      %1422 = vmatpush1.bf16.msra.mxu0 0
      %1423 = vmatprep.subr.bf16.mxu0 0
      %1424 = vmatpush1.bf16.msra.mxu0 0
      %1425 = vmatprep.subr.bf16.mxu0 0
      %1426 = vmatpush1.bf16.msra.mxu0 0
      %1427 = vmatprep.subr.bf16.mxu0 0
      %1428 = vmatpush1.bf16.msra.mxu0 0
      %1429 = vmatprep.subr.bf16.mxu0 0
      %1430 = vmatpush1.bf16.msra.mxu0 0
      %1431 = vmatprep.subr.bf16.mxu0 0
      %1432 = vmatpush1.bf16.msra.mxu0 0
      %1433 = vmatprep.mubr.bf16.mxu0 0
      %1434 = vmatmul.mubr.bf16.gmra.mrb[0].mxu0 %v1365
      %v1435 = vpop.f32.mrb[0].mxu0
      %v1436 = vadd.f32 0.0, %v1435
      %v1437 = vpop.f32.mrb[0].mxu0
      %v1438 = vpop.f32.mrb[0].mxu0
      %v1439 = vadd.f32 0.0, %v1438
      %v1440 = vpop.f32.mrb[0].mxu0
      %1441 = vmatprep.mubr.bf16.mxu0 0
      %1442 = vmatmul.mubr.bf16.gmra.mrb[0].mxu0 %v1367
      %v1443 = vpop.f32.mrb[0].mxu0
      %v1444 = vadd.f32 0.0, %v1443
      %v1445 = vpop.f32.mrb[0].mxu0
      %v1446 = vpop.f32.mrb[0].mxu0
      %v1447 = vadd.f32 0.0, %v1446
      %v1448 = vpop.f32.mrb[0].mxu0
      %1449 = vmatprep.mubr.bf16.mxu0 0
      %1450 = vmatmul.mubr.bf16.gmra.mrb[0].mxu0 %v1369
      %v1451 = vpop.f32.mrb[0].mxu0
      %v1452 = vadd.f32 0.0, %v1451
      %v1453 = vpop.f32.mrb[0].mxu0
      %v1454 = vpop.f32.mrb[0].mxu0
      %v1455 = vadd.f32 0.0, %v1454
      %v1456 = vpop.f32.mrb[0].mxu0
      %1457 = vmatprep.mubr.bf16.mxu0 0
      %1458 = vmatmul.mubr.bf16.gmra.mrb[0].mxu0 %v1371
      %v1459 = vpop.f32.mrb[0].mxu0
      %v1460 = vadd.f32 0.0, %v1459
      %v1461 = vpop.f32.mrb[0].mxu0
      %v1462 = vpop.f32.mrb[0].mxu0
      %v1463 = vadd.f32 0.0, %v1462
      %v1464 = vpop.f32.mrb[0].mxu0
      %1465 = vmatprep.mubr.bf16.mxu0 0
      %1466 = vmatmul.mubr.bf16.gmra.mrb[0].mxu0 %v1373
      %v1467 = vpop.f32.mrb[0].mxu0
      %v1468 = vadd.f32 0.0, %v1467
      %v1469 = vpop.f32.mrb[0].mxu0
      %v1470 = vpop.f32.mrb[0].mxu0
      %v1471 = vadd.f32 0.0, %v1470
      %v1472 = vpop.f32.mrb[0].mxu0
      %1473 = vmatprep.mubr.bf16.mxu0 0
      %1474 = vmatmul.mubr.bf16.gmra.mrb[0].mxu0 %v1375
      %v1475 = vpop.f32.mrb[0].mxu0
      %v1476 = vadd.f32 0.0, %v1475
      %v1477 = vpop.f32.mrb[0].mxu0
      %v1478 = vpop.f32.mrb[0].mxu0
      %v1479 = vadd.f32 0.0, %v1478
      %v1480 = vpop.f32.mrb[0].mxu0
      %1481 = vmatprep.mubr.bf16.mxu0 0
      %1482 = vmatmul.mubr.bf16.gmra.mrb[0].mxu0 %v1377
      %v1483 = vpop.f32.mrb[0].mxu0
      %v1484 = vadd.f32 0.0, %v1483
      %v1485 = vpop.f32.mrb[0].mxu0
      %v1486 = vpop.f32.mrb[0].mxu0
      %v1487 = vadd.f32 0.0, %v1486
      %v1488 = vpop.f32.mrb[0].mxu0
      %1489 = vmatprep.mubr.bf16.mxu0 0
      %1490 = vmatmul.mubr.bf16.gmra.mrb[0].mxu0 %v1379
      %v1491 = vpop.f32.mrb[0].mxu0
      %v1492 = vadd.f32 0.0, %v1491
      %v1493 = vpop.f32.mrb[0].mxu0
      %v1494 = vpop.f32.mrb[0].mxu0
      %v1495 = vadd.f32 0.0, %v1494
      %v1496 = vpop.f32.mrb[0].mxu0
      %1497 = vmatprep.mubr.bf16.mxu0 0
      %1498 = vmatmul.mubr.bf16.gmra.mrb[0].mxu0 %v1381
      %v1499 = vpop.f32.mrb[0].mxu0
      %v1500 = vadd.f32 0.0, %v1499
      %v1501 = vpop.f32.mrb[0].mxu0
      %v1502 = vpop.f32.mrb[0].mxu0
      %v1503 = vadd.f32 0.0, %v1502
      %v1504 = vpop.f32.mrb[0].mxu0
      %1505 = vmatprep.mubr.bf16.mxu0 0
      %1506 = vmatmul.mubr.bf16.gmra.mrb[0].mxu0 %v1383
      %v1507 = vpop.f32.mrb[0].mxu0
      %v1508 = vadd.f32 0.0, %v1507
      %v1509 = vpop.f32.mrb[0].mxu0
      %v1510 = vpop.f32.mrb[0].mxu0
      %v1511 = vadd.f32 0.0, %v1510
      %v1512 = vpop.f32.mrb[0].mxu0
      %1513 = vmatprep.mubr.bf16.mxu0 0
      %1514 = vmatmul.mubr.bf16.gmra.mrb[0].mxu0 %v1385
      %v1515 = vpop.f32.mrb[0].mxu0
      %v1516 = vadd.f32 0.0, %v1515
      %v1517 = vpop.f32.mrb[0].mxu0
      %v1518 = vpop.f32.mrb[0].mxu0
      %v1519 = vadd.f32 0.0, %v1518
      %v1520 = vpop.f32.mrb[0].mxu0
      %1521 = vmatprep.mubr.bf16.mxu0 0
      %1522 = vmatmul.mubr.bf16.gmra.mrb[0].mxu0 %v1387
      %v1523 = vpop.f32.mrb[0].mxu0
      %v1524 = vadd.f32 0.0, %v1523
      %v1525 = vpop.f32.mrb[0].mxu0
      %v1526 = vpop.f32.mrb[0].mxu0
      %v1527 = vadd.f32 0.0, %v1526
      %v1528 = vpop.f32.mrb[0].mxu0
      %1529 = vmatprep.mubr.bf16.mxu0 0
      %1530 = vmatmul.mubr.bf16.gmra.mrb[0].mxu0 %v1389
      %v1531 = vpop.f32.mrb[0].mxu0
      %v1532 = vadd.f32 0.0, %v1531
      %v1533 = vpop.f32.mrb[0].mxu0
      %v1534 = vpop.f32.mrb[0].mxu0
      %v1535 = vadd.f32 0.0, %v1534
      %v1536 = vpop.f32.mrb[0].mxu0
      %1537 = vmatprep.mubr.bf16.mxu0 0
      %1538 = vmatmul.mubr.bf16.gmra.mrb[0].mxu0 %v1391
      %v1539 = vpop.f32.mrb[0].mxu0
      %v1540 = vadd.f32 0.0, %v1539
      %v1541 = vpop.f32.mrb[0].mxu0
      %v1542 = vpop.f32.mrb[0].mxu0
      %v1543 = vadd.f32 0.0, %v1542
      %v1544 = vpop.f32.mrb[0].mxu0
      %1545 = vmatprep.mubr.bf16.mxu0 0
      %1546 = vmatmul.mubr.bf16.gmra.mrb[0].mxu0 %v1393
      %v1547 = vpop.f32.mrb[0].mxu0
      %v1548 = vadd.f32 0.0, %v1547
      %v1549 = vpop.f32.mrb[0].mxu0
      %v1550 = vpop.f32.mrb[0].mxu0
      %v1551 = vadd.f32 0.0, %v1550
      %v1552 = vpop.f32.mrb[0].mxu0
      %1553 = vmatprep.mubr.bf16.mxu0 0
      %1554 = vmatmul.mubr.bf16.gmra.mrb[0].mxu0 %v1395
      %v1555 = vpop.f32.mrb[0].mxu0
      %v1556 = vadd.f32 0.0, %v1555
      %v1557 = vpop.f32.mrb[0].mxu0
      %v1558 = vpop.f32.mrb[0].mxu0
      %v1559 = vadd.f32 0.0, %v1558
      %v1560 = vpop.f32.mrb[0].mxu0
      %1561 = vdwg.mxu0
      %v1564 = vunpack.c.l.b16 %v806
      %v1565 = vunpack.c.l.b16 %v807
      %v1566 = vpack.c.b16 %v1565, %v1564
      %v1567 = vsel %vm1364, %v775, 0
      %v1569 = vsel %vm1364, %v777, 0
      %v1571 = vsel %vm1364, %v779, 0
      %v1573 = vsel %vm1364, %v781, 0
      %v1575 = vsel %vm1364, %v783, 0
      %v1577 = vsel %vm1364, %v785, 0
      %v1579 = vsel %vm1364, %v787, 0
      %v1581 = vsel %vm1364, %v789, 0
      %v1583 = vsel %vm1364, %v791, 0
      %v1585 = vsel %vm1364, %v793, 0
      %v1587 = vsel %vm1364, %v795, 0
      %v1589 = vsel %vm1364, %v797, 0
      %v1591 = vsel %vm1364, %v799, 0
      %v1593 = vsel %vm1364, %v801, 0
      %v1595 = vsel %vm1364, %v803, 0
      %v1597 = vsel %vm1364, %v805, 0
      %v1600 = vsel %vm1397, %v1566, 0
      %1602 = vmatprep.subr.bf16.mxu0 0
      %1603 = vmatpush1.bf16.msra.mxu0 %v1600
      %1604 = vmatprep.subr.bf16.mxu0 0
      %1605 = vmatpush1.bf16.msra.mxu0 0
      %1606 = vmatprep.subr.bf16.mxu0 0
      %1607 = vmatpush1.bf16.msra.mxu0 0
      %1608 = vmatprep.subr.bf16.mxu0 0
      %1609 = vmatpush1.bf16.msra.mxu0 0
      %1610 = vmatprep.subr.bf16.mxu0 0
      %1611 = vmatpush1.bf16.msra.mxu0 0
      %1612 = vmatprep.subr.bf16.mxu0 0
      %1613 = vmatpush1.bf16.msra.mxu0 0
      %1614 = vmatprep.subr.bf16.mxu0 0
      %1615 = vmatpush1.bf16.msra.mxu0 0
      %1616 = vmatprep.subr.bf16.mxu0 0
      %1617 = vmatpush1.bf16.msra.mxu0 0
      %1618 = vmatprep.subr.bf16.mxu0 0
      %1619 = vmatpush1.bf16.msra.mxu0 0
      %1620 = vmatprep.subr.bf16.mxu0 0
      %1621 = vmatpush1.bf16.msra.mxu0 0
      %1622 = vmatprep.subr.bf16.mxu0 0
      %1623 = vmatpush1.bf16.msra.mxu0 0
      %1624 = vmatprep.subr.bf16.mxu0 0
      %1625 = vmatpush1.bf16.msra.mxu0 0
      %1626 = vmatprep.subr.bf16.mxu0 0
      %1627 = vmatpush1.bf16.msra.mxu0 0
      %1628 = vmatprep.subr.bf16.mxu0 0
      %1629 = vmatpush1.bf16.msra.mxu0 0
      %1630 = vmatprep.subr.bf16.mxu0 0
      %1631 = vmatpush1.bf16.msra.mxu0 0
      %1632 = vmatprep.subr.bf16.mxu0 0
      %1633 = vmatpush1.bf16.msra.mxu0 0
      %1634 = vmatprep.mubr.bf16.mxu0 0
      %1635 = vmatmul.mubr.bf16.gmra.mrb[0].mxu0 %v1567
      %v1636 = vpop.f32.mrb[0].mxu0
      %v1637 = vadd.f32 %v1436, %v1636
      %v1638 = vpop.f32.mrb[0].mxu0
      %v1639 = vpop.f32.mrb[0].mxu0
      %v1640 = vadd.f32 %v1439, %v1639
      %v1641 = vpop.f32.mrb[0].mxu0
      %1642 = vmatprep.mubr.bf16.mxu0 0
      %1643 = vmatmul.mubr.bf16.gmra.mrb[0].mxu0 %v1569
      %v1644 = vpop.f32.mrb[0].mxu0
      %v1645 = vadd.f32 %v1444, %v1644
      %v1646 = vpop.f32.mrb[0].mxu0
      %v1647 = vpop.f32.mrb[0].mxu0
      %v1648 = vadd.f32 %v1447, %v1647
      %v1649 = vpop.f32.mrb[0].mxu0
      %1650 = vmatprep.mubr.bf16.mxu0 0
      %1651 = vmatmul.mubr.bf16.gmra.mrb[0].mxu0 %v1571
      %v1652 = vpop.f32.mrb[0].mxu0
      %v1653 = vadd.f32 %v1452, %v1652
      %v1654 = vpop.f32.mrb[0].mxu0
      %v1655 = vpop.f32.mrb[0].mxu0
      %v1656 = vadd.f32 %v1455, %v1655
      %v1657 = vpop.f32.mrb[0].mxu0
      %1658 = vmatprep.mubr.bf16.mxu0 0
      %1659 = vmatmul.mubr.bf16.gmra.mrb[0].mxu0 %v1573
      %v1660 = vpop.f32.mrb[0].mxu0
      %v1661 = vadd.f32 %v1460, %v1660
      %v1662 = vpop.f32.mrb[0].mxu0
      %v1663 = vpop.f32.mrb[0].mxu0
      %v1664 = vadd.f32 %v1463, %v1663
      %v1665 = vpop.f32.mrb[0].mxu0
      %1666 = vmatprep.mubr.bf16.mxu0 0
      %1667 = vmatmul.mubr.bf16.gmra.mrb[0].mxu0 %v1575
      %v1668 = vpop.f32.mrb[0].mxu0
      %v1669 = vadd.f32 %v1468, %v1668
      %v1670 = vpop.f32.mrb[0].mxu0
      %v1671 = vpop.f32.mrb[0].mxu0
      %v1672 = vadd.f32 %v1471, %v1671
      %v1673 = vpop.f32.mrb[0].mxu0
      %1674 = vmatprep.mubr.bf16.mxu0 0
      %1675 = vmatmul.mubr.bf16.gmra.mrb[0].mxu0 %v1577
      %v1676 = vpop.f32.mrb[0].mxu0
      %v1677 = vadd.f32 %v1476, %v1676
      %v1678 = vpop.f32.mrb[0].mxu0
      %v1679 = vpop.f32.mrb[0].mxu0
      %v1680 = vadd.f32 %v1479, %v1679
      %v1681 = vpop.f32.mrb[0].mxu0
      %1682 = vmatprep.mubr.bf16.mxu0 0
      %1683 = vmatmul.mubr.bf16.gmra.mrb[0].mxu0 %v1579
      %v1684 = vpop.f32.mrb[0].mxu0
      %v1685 = vadd.f32 %v1484, %v1684
      %v1686 = vpop.f32.mrb[0].mxu0
      %v1687 = vpop.f32.mrb[0].mxu0
      %v1688 = vadd.f32 %v1487, %v1687
      %v1689 = vpop.f32.mrb[0].mxu0
      %1690 = vmatprep.mubr.bf16.mxu0 0
      %1691 = vmatmul.mubr.bf16.gmra.mrb[0].mxu0 %v1581
      %v1692 = vpop.f32.mrb[0].mxu0
      %v1693 = vadd.f32 %v1492, %v1692
      %v1694 = vpop.f32.mrb[0].mxu0
      %v1695 = vpop.f32.mrb[0].mxu0
      %v1696 = vadd.f32 %v1495, %v1695
      %v1697 = vpop.f32.mrb[0].mxu0
      %1698 = vmatprep.mubr.bf16.mxu0 0
      %1699 = vmatmul.mubr.bf16.gmra.mrb[0].mxu0 %v1583
      %v1700 = vpop.f32.mrb[0].mxu0
      %v1701 = vadd.f32 %v1500, %v1700
      %v1702 = vpop.f32.mrb[0].mxu0
      %v1703 = vpop.f32.mrb[0].mxu0
      %v1704 = vadd.f32 %v1503, %v1703
      %v1705 = vpop.f32.mrb[0].mxu0
      %1706 = vmatprep.mubr.bf16.mxu0 0
      %1707 = vmatmul.mubr.bf16.gmra.mrb[0].mxu0 %v1585
      %v1708 = vpop.f32.mrb[0].mxu0
      %v1709 = vadd.f32 %v1508, %v1708
      %v1710 = vpop.f32.mrb[0].mxu0
      %v1711 = vpop.f32.mrb[0].mxu0
      %v1712 = vadd.f32 %v1511, %v1711
      %v1713 = vpop.f32.mrb[0].mxu0
      %1714 = vmatprep.mubr.bf16.mxu0 0
      %1715 = vmatmul.mubr.bf16.gmra.mrb[0].mxu0 %v1587
      %v1716 = vpop.f32.mrb[0].mxu0
      %v1717 = vadd.f32 %v1516, %v1716
      %v1718 = vpop.f32.mrb[0].mxu0
      %v1719 = vpop.f32.mrb[0].mxu0
      %v1720 = vadd.f32 %v1519, %v1719
      %v1721 = vpop.f32.mrb[0].mxu0
      %1722 = vmatprep.mubr.bf16.mxu0 0
      %1723 = vmatmul.mubr.bf16.gmra.mrb[0].mxu0 %v1589
      %v1724 = vpop.f32.mrb[0].mxu0
      %v1725 = vadd.f32 %v1524, %v1724
      %v1726 = vpop.f32.mrb[0].mxu0
      %v1727 = vpop.f32.mrb[0].mxu0
      %v1728 = vadd.f32 %v1527, %v1727
      %v1729 = vpop.f32.mrb[0].mxu0
      %1730 = vmatprep.mubr.bf16.mxu0 0
      %1731 = vmatmul.mubr.bf16.gmra.mrb[0].mxu0 %v1591
      %v1732 = vpop.f32.mrb[0].mxu0
      %v1733 = vadd.f32 %v1532, %v1732
      %v1734 = vpop.f32.mrb[0].mxu0
      %v1735 = vpop.f32.mrb[0].mxu0
      %v1736 = vadd.f32 %v1535, %v1735
      %v1737 = vpop.f32.mrb[0].mxu0
      %1738 = vmatprep.mubr.bf16.mxu0 0
      %1739 = vmatmul.mubr.bf16.gmra.mrb[0].mxu0 %v1593
      %v1740 = vpop.f32.mrb[0].mxu0
      %v1741 = vadd.f32 %v1540, %v1740
      %v1742 = vpop.f32.mrb[0].mxu0
      %v1743 = vpop.f32.mrb[0].mxu0
      %v1744 = vadd.f32 %v1543, %v1743
      %v1745 = vpop.f32.mrb[0].mxu0
      %1746 = vmatprep.mubr.bf16.mxu0 0
      %1747 = vmatmul.mubr.bf16.gmra.mrb[0].mxu0 %v1595
      %v1748 = vpop.f32.mrb[0].mxu0
      %v1749 = vadd.f32 %v1548, %v1748
      %v1750 = vpop.f32.mrb[0].mxu0
      %v1751 = vpop.f32.mrb[0].mxu0
      %v1752 = vadd.f32 %v1551, %v1751
      %v1753 = vpop.f32.mrb[0].mxu0
      %1754 = vmatprep.mubr.bf16.mxu0 0
      %1755 = vmatmul.mubr.bf16.gmra.mrb[0].mxu0 %v1597
      %v1756 = vpop.f32.mrb[0].mxu0
      %v1757 = vadd.f32 %v1556, %v1756
      %v1758 = vpop.f32.mrb[0].mxu0
      %v1759 = vpop.f32.mrb[0].mxu0
      %v1760 = vadd.f32 %v1559, %v1759
      %v1761 = vpop.f32.mrb[0].mxu0
      %1762 = vdwg.mxu0
      %s1763 = sadd.s32 %s254, 2
      %s1764 = smul.u32 %s1763, 3
      %s1765 = smul.addr %s1764, 4
      %s1766 = scalar_lea.vmem %s225, %s1765
      %v1767 = vld [vmem:[%s1766] sm:$0xf]
      %v1768 = vld [vmem:[%s1766 + $0x4] sm:$0xf]
      %v1769 = vld [vmem:[%s1766 + $0x8] sm:$0x1]
      %v1770 = vld [vmem:[%s1766 + $0xc] sm:$0xf]
      %v1771 = vld [vmem:[%s1766 + $0x10] sm:$0xf]
      %v1772 = vld [vmem:[%s1766 + $0x14] sm:$0x1]
      %v1773 = vld [vmem:[%s1766 + $0x18] sm:$0xf]
      %v1774 = vld [vmem:[%s1766 + $0x1c] sm:$0xf]
      %v1775 = vld [vmem:[%s1766 + $0x20] sm:$0x1]
      %v1776 = vld [vmem:[%s1766 + $0x24] sm:$0xf]
      %v1777 = vld [vmem:[%s1766 + $0x28] sm:$0xf]
      %v1778 = vld [vmem:[%s1766 + $0x2c] sm:$0x1]
      %v1779 = vld [vmem:[%s1766 + $0x30] sm:$0xf]
      %v1780 = vld [vmem:[%s1766 + $0x34] sm:$0xf]
      %v1781 = vld [vmem:[%s1766 + $0x38] sm:$0x1]
      %v1782 = vld [vmem:[%s1766 + $0x3c] sm:$0xf]
      %v1783 = vld [vmem:[%s1766 + $0x40] sm:$0xf]
      %v1784 = vld [vmem:[%s1766 + $0x44] sm:$0x1]
      %v1785 = vld [vmem:[%s1766 + $0x48] sm:$0xf]
      %v1786 = vld [vmem:[%s1766 + $0x4c] sm:$0xf]
      %v1787 = vld [vmem:[%s1766 + $0x50] sm:$0x1]
      %v1788 = vld [vmem:[%s1766 + $0x54] sm:$0xf]
      %v1789 = vld [vmem:[%s1766 + $0x58] sm:$0xf]
      %v1790 = vld [vmem:[%s1766 + $0x5c] sm:$0x1]
      %v1791 = vld [vmem:[%s1766 + $0x60] sm:$0xf]
      %v1792 = vld [vmem:[%s1766 + $0x64] sm:$0xf]
      %v1793 = vld [vmem:[%s1766 + $0x68] sm:$0x1]
      %v1794 = vld [vmem:[%s1766 + $0x6c] sm:$0xf]
      %v1795 = vld [vmem:[%s1766 + $0x70] sm:$0xf]
      %v1796 = vld [vmem:[%s1766 + $0x74] sm:$0x1]
      %v1797 = vld [vmem:[%s1766 + $0x78] sm:$0xf]
      %v1798 = vld [vmem:[%s1766 + $0x7c] sm:$0xf]
      %v1799 = vld [vmem:[%s1766 + $0x80] sm:$0x1]
      %v1800 = vld [vmem:[%s1766 + $0x84] sm:$0xf]
      %v1801 = vld [vmem:[%s1766 + $0x88] sm:$0xf]
      %v1802 = vld [vmem:[%s1766 + $0x8c] sm:$0x1]
      %v1803 = vld [vmem:[%s1766 + $0x90] sm:$0xf]
      %v1804 = vld [vmem:[%s1766 + $0x94] sm:$0xf]
      %v1805 = vld [vmem:[%s1766 + $0x98] sm:$0x1]
      %v1806 = vld [vmem:[%s1766 + $0x9c] sm:$0xf]
      %v1807 = vld [vmem:[%s1766 + $0xa0] sm:$0xf]
      %v1808 = vld [vmem:[%s1766 + $0xa4] sm:$0x1]
      %v1809 = vld [vmem:[%s1766 + $0xa8] sm:$0xf]
      %v1810 = vld [vmem:[%s1766 + $0xac] sm:$0xf]
      %v1811 = vld [vmem:[%s1766 + $0xb0] sm:$0x1]
      %v1812 = vld [vmem:[%s1766 + $0xb4] sm:$0xf]
      %v1813 = vld [vmem:[%s1766 + $0xb8] sm:$0xf]
      %v1814 = vld [vmem:[%s1766 + $0xbc] sm:$0x1]
      %v1847 = vunpack.c.l.b16 %v1767
      %v1848 = vunpack.c.l.b16 %v1768
      %v1849 = vunpack.c.l.b16 %v1770
      %v1850 = vunpack.c.l.b16 %v1771
      %v1851 = vunpack.c.l.b16 %v1773
      %v1852 = vunpack.c.l.b16 %v1774
      %v1853 = vunpack.c.l.b16 %v1776
      %v1854 = vunpack.c.l.b16 %v1777
      %v1855 = vunpack.c.l.b16 %v1779
      %v1856 = vunpack.c.l.b16 %v1780
      %v1857 = vunpack.c.l.b16 %v1782
      %v1858 = vunpack.c.l.b16 %v1783
      %v1859 = vunpack.c.l.b16 %v1785
      %v1860 = vunpack.c.l.b16 %v1786
      %v1861 = vunpack.c.l.b16 %v1788
      %v1862 = vunpack.c.l.b16 %v1789
      %v1863 = vunpack.c.l.b16 %v1791
      %v1864 = vunpack.c.l.b16 %v1792
      %v1865 = vunpack.c.l.b16 %v1794
      %v1866 = vunpack.c.l.b16 %v1795
      %v1867 = vunpack.c.l.b16 %v1797
      %v1868 = vunpack.c.l.b16 %v1798
      %v1869 = vunpack.c.l.b16 %v1800
      %v1870 = vunpack.c.l.b16 %v1801
      %v1871 = vunpack.c.l.b16 %v1803
      %v1872 = vunpack.c.l.b16 %v1804
      %v1873 = vunpack.c.l.b16 %v1806
      %v1874 = vunpack.c.l.b16 %v1807
      %v1875 = vunpack.c.l.b16 %v1809
      %v1876 = vunpack.c.l.b16 %v1810
      %v1877 = vunpack.c.l.b16 %v1812
      %v1878 = vunpack.c.l.b16 %v1813
      %v1879 = vpack.c.b16 %v1848, %v1847
      %v1880 = vpack.c.b16 %v1850, %v1849
      %v1881 = vpack.c.b16 %v1852, %v1851
      %v1882 = vpack.c.b16 %v1854, %v1853
      %v1883 = vpack.c.b16 %v1856, %v1855
      %v1884 = vpack.c.b16 %v1858, %v1857
      %v1885 = vpack.c.b16 %v1860, %v1859
      %v1886 = vpack.c.b16 %v1862, %v1861
      %v1887 = vpack.c.b16 %v1864, %v1863
      %v1888 = vpack.c.b16 %v1866, %v1865
      %v1889 = vpack.c.b16 %v1868, %v1867
      %v1890 = vpack.c.b16 %v1870, %v1869
      %v1891 = vpack.c.b16 %v1872, %v1871
      %v1892 = vpack.c.b16 %v1874, %v1873
      %v1893 = vpack.c.b16 %v1876, %v1875
      %v1894 = vpack.c.b16 %v1878, %v1877
      %v1911 = vunpack.c.l.b16 %v1769
      %v1912 = vunpack.c.l.b16 %v1772
      %v1913 = vunpack.c.l.b16 %v1775
      %v1914 = vunpack.c.l.b16 %v1778
      %v1915 = vunpack.c.l.b16 %v1781
      %v1916 = vunpack.c.l.b16 %v1784
      %v1917 = vunpack.c.l.b16 %v1787
      %v1918 = vunpack.c.l.b16 %v1790
      %v1919 = vunpack.c.l.b16 %v1793
      %v1920 = vunpack.c.l.b16 %v1796
      %v1921 = vunpack.c.l.b16 %v1799
      %v1922 = vunpack.c.l.b16 %v1802
      %v1923 = vunpack.c.l.b16 %v1805
      %v1924 = vunpack.c.l.b16 %v1808
      %v1925 = vunpack.c.l.b16 %v1811
      %v1926 = vunpack.c.l.b16 %v1814
      %v1927 = vpack.c.b16 %v1911, %v1911
      %v1928 = vpack.c.b16 %v1912, %v1912
      %v1929 = vpack.c.b16 %v1913, %v1913
      %v1930 = vpack.c.b16 %v1914, %v1914
      %v1931 = vpack.c.b16 %v1915, %v1915
      %v1932 = vpack.c.b16 %v1916, %v1916
      %v1933 = vpack.c.b16 %v1917, %v1917
      %v1934 = vpack.c.b16 %v1918, %v1918
      %v1935 = vpack.c.b16 %v1919, %v1919
      %v1936 = vpack.c.b16 %v1920, %v1920
      %v1937 = vpack.c.b16 %v1921, %v1921
      %v1938 = vpack.c.b16 %v1922, %v1922
      %v1939 = vpack.c.b16 %v1923, %v1923
      %v1940 = vpack.c.b16 %v1924, %v1924
      %v1941 = vpack.c.b16 %v1925, %v1925
      %v1942 = vpack.c.b16 %v1926, %v1926
      %v1944 = vshrl.u32 %v1879, 16
      %v1946 = vshll.u32 %v1879, 16
      %v1948 = vrot.slane %v1946, 1
      %v1949 = vor.u32 %v1944, %v1948
      %v1951 = vshll.u32 %v1927, 16
      %v1953 = vrot.slane %v1951, 1
      %v1954 = vsel %vm434, %v1949, %v1953
      %v1956 = vshrl.u32 %v1880, 16
      %v1958 = vshll.u32 %v1880, 16
      %v1960 = vrot.slane %v1958, 1
      %v1961 = vor.u32 %v1956, %v1960
      %v1963 = vshll.u32 %v1928, 16
      %v1965 = vrot.slane %v1963, 1
      %v1966 = vsel %vm434, %v1961, %v1965
      %v1968 = vshrl.u32 %v1881, 16
      %v1970 = vshll.u32 %v1881, 16
      %v1972 = vrot.slane %v1970, 1
      %v1973 = vor.u32 %v1968, %v1972
      %v1975 = vshll.u32 %v1929, 16
      %v1977 = vrot.slane %v1975, 1
      %v1978 = vsel %vm434, %v1973, %v1977
      %v1980 = vshrl.u32 %v1882, 16
      %v1982 = vshll.u32 %v1882, 16
      %v1984 = vrot.slane %v1982, 1
      %v1985 = vor.u32 %v1980, %v1984
      %v1987 = vshll.u32 %v1930, 16
      %v1989 = vrot.slane %v1987, 1
      %v1990 = vsel %vm434, %v1985, %v1989
      %v1992 = vshrl.u32 %v1883, 16
      %v1994 = vshll.u32 %v1883, 16
      %v1996 = vrot.slane %v1994, 1
      %v1997 = vor.u32 %v1992, %v1996
      %v1999 = vshll.u32 %v1931, 16
      %v2001 = vrot.slane %v1999, 1
      %v2002 = vsel %vm434, %v1997, %v2001
      %v2004 = vshrl.u32 %v1884, 16
      %v2006 = vshll.u32 %v1884, 16
      %v2008 = vrot.slane %v2006, 1
      %v2009 = vor.u32 %v2004, %v2008
      %v2011 = vshll.u32 %v1932, 16
      %v2013 = vrot.slane %v2011, 1
      %v2014 = vsel %vm434, %v2009, %v2013
      %v2016 = vshrl.u32 %v1885, 16
      %v2018 = vshll.u32 %v1885, 16
      %v2020 = vrot.slane %v2018, 1
      %v2021 = vor.u32 %v2016, %v2020
      %v2023 = vshll.u32 %v1933, 16
      %v2025 = vrot.slane %v2023, 1
      %v2026 = vsel %vm434, %v2021, %v2025
      %v2028 = vshrl.u32 %v1886, 16
      %v2030 = vshll.u32 %v1886, 16
      %v2032 = vrot.slane %v2030, 1
      %v2033 = vor.u32 %v2028, %v2032
      %v2035 = vshll.u32 %v1934, 16
      %v2037 = vrot.slane %v2035, 1
      %v2038 = vsel %vm434, %v2033, %v2037
      %v2040 = vshrl.u32 %v1887, 16
      %v2042 = vshll.u32 %v1887, 16
      %v2044 = vrot.slane %v2042, 1
      %v2045 = vor.u32 %v2040, %v2044
      %v2047 = vshll.u32 %v1935, 16
      %v2049 = vrot.slane %v2047, 1
      %v2050 = vsel %vm434, %v2045, %v2049
      %v2052 = vshrl.u32 %v1888, 16
      %v2054 = vshll.u32 %v1888, 16
      %v2056 = vrot.slane %v2054, 1
      %v2057 = vor.u32 %v2052, %v2056
      %v2059 = vshll.u32 %v1936, 16
      %v2061 = vrot.slane %v2059, 1
      %v2062 = vsel %vm434, %v2057, %v2061
      %v2064 = vshrl.u32 %v1889, 16
      %v2066 = vshll.u32 %v1889, 16
      %v2068 = vrot.slane %v2066, 1
      %v2069 = vor.u32 %v2064, %v2068
      %v2071 = vshll.u32 %v1937, 16
      %v2073 = vrot.slane %v2071, 1
      %v2074 = vsel %vm434, %v2069, %v2073
      %v2076 = vshrl.u32 %v1890, 16
      %v2078 = vshll.u32 %v1890, 16
      %v2080 = vrot.slane %v2078, 1
      %v2081 = vor.u32 %v2076, %v2080
      %v2083 = vshll.u32 %v1938, 16
      %v2085 = vrot.slane %v2083, 1
      %v2086 = vsel %vm434, %v2081, %v2085
      %v2088 = vshrl.u32 %v1891, 16
      %v2090 = vshll.u32 %v1891, 16
      %v2092 = vrot.slane %v2090, 1
      %v2093 = vor.u32 %v2088, %v2092
      %v2095 = vshll.u32 %v1939, 16
      %v2097 = vrot.slane %v2095, 1
      %v2098 = vsel %vm434, %v2093, %v2097
      %v2100 = vshrl.u32 %v1892, 16
      %v2102 = vshll.u32 %v1892, 16
      %v2104 = vrot.slane %v2102, 1
      %v2105 = vor.u32 %v2100, %v2104
      %v2107 = vshll.u32 %v1940, 16
      %v2109 = vrot.slane %v2107, 1
      %v2110 = vsel %vm434, %v2105, %v2109
      %v2112 = vshrl.u32 %v1893, 16
      %v2114 = vshll.u32 %v1893, 16
      %v2116 = vrot.slane %v2114, 1
      %v2117 = vor.u32 %v2112, %v2116
      %v2119 = vshll.u32 %v1941, 16
      %v2121 = vrot.slane %v2119, 1
      %v2122 = vsel %vm434, %v2117, %v2121
      %v2124 = vshrl.u32 %v1894, 16
      %v2126 = vshll.u32 %v1894, 16
      %v2128 = vrot.slane %v2126, 1
      %v2129 = vor.u32 %v2124, %v2128
      %v2131 = vshll.u32 %v1942, 16
      %v2133 = vrot.slane %v2131, 1
      %v2134 = vsel %vm434, %v2129, %v2133
      %2135 = vrot.lane.b32.xlu0 %v1954, 4
      %v2136 = vpop.permute.xlu0 %2135
      %2137 = vrot.lane.b32.xlu0 %v1966, 4
      %v2138 = vpop.permute.xlu0 %2137
      %2139 = vrot.lane.b32.xlu0 %v1978, 4
      %v2140 = vpop.permute.xlu0 %2139
      %2141 = vrot.lane.b32.xlu0 %v1990, 4
      %v2142 = vpop.permute.xlu0 %2141
      %2143 = vrot.lane.b32.xlu0 %v2002, 4
      %v2144 = vpop.permute.xlu0 %2143
      %2145 = vrot.lane.b32.xlu0 %v2014, 4
      %v2146 = vpop.permute.xlu0 %2145
      %2147 = vrot.lane.b32.xlu0 %v2026, 4
      %v2148 = vpop.permute.xlu0 %2147
      %2149 = vrot.lane.b32.xlu0 %v2038, 4
      %v2150 = vpop.permute.xlu0 %2149
      %2151 = vrot.lane.b32.xlu0 %v2050, 4
      %v2152 = vpop.permute.xlu0 %2151
      %2153 = vrot.lane.b32.xlu0 %v2062, 4
      %v2154 = vpop.permute.xlu0 %2153
      %2155 = vrot.lane.b32.xlu0 %v2074, 4
      %v2156 = vpop.permute.xlu0 %2155
      %2157 = vrot.lane.b32.xlu0 %v2086, 4
      %v2158 = vpop.permute.xlu0 %2157
      %2159 = vrot.lane.b32.xlu0 %v2098, 4
      %v2160 = vpop.permute.xlu0 %2159
      %2161 = vrot.lane.b32.xlu0 %v2110, 4
      %v2162 = vpop.permute.xlu0 %2161
      %2163 = vrot.lane.b32.xlu0 %v2122, 4
      %v2164 = vpop.permute.xlu0 %2163
      %2165 = vrot.lane.b32.xlu0 %v2134, 4
      %v2166 = vpop.permute.xlu0 %2165
      %v2167 = vrot.slane %v1879, 1
      %v2168 = vrot.slane %v1927, 1
      %v2169 = vsel %vm659, %v2167, %v2168
      %v2170 = vrot.slane %v1880, 1
      %v2171 = vrot.slane %v1928, 1
      %v2172 = vsel %vm659, %v2170, %v2171
      %v2173 = vrot.slane %v1881, 1
      %v2174 = vrot.slane %v1929, 1
      %v2175 = vsel %vm659, %v2173, %v2174
      %v2176 = vrot.slane %v1882, 1
      %v2177 = vrot.slane %v1930, 1
      %v2178 = vsel %vm659, %v2176, %v2177
      %v2179 = vrot.slane %v1883, 1
      %v2180 = vrot.slane %v1931, 1
      %v2181 = vsel %vm659, %v2179, %v2180
      %v2182 = vrot.slane %v1884, 1
      %v2183 = vrot.slane %v1932, 1
      %v2184 = vsel %vm659, %v2182, %v2183
      %v2185 = vrot.slane %v1885, 1
      %v2186 = vrot.slane %v1933, 1
      %v2187 = vsel %vm659, %v2185, %v2186
      %v2188 = vrot.slane %v1886, 1
      %v2189 = vrot.slane %v1934, 1
      %v2190 = vsel %vm659, %v2188, %v2189
      %v2191 = vrot.slane %v1887, 1
      %v2192 = vrot.slane %v1935, 1
      %v2193 = vsel %vm659, %v2191, %v2192
      %v2194 = vrot.slane %v1888, 1
      %v2195 = vrot.slane %v1936, 1
      %v2196 = vsel %vm659, %v2194, %v2195
      %v2197 = vrot.slane %v1889, 1
      %v2198 = vrot.slane %v1937, 1
      %v2199 = vsel %vm659, %v2197, %v2198
      %v2200 = vrot.slane %v1890, 1
      %v2201 = vrot.slane %v1938, 1
      %v2202 = vsel %vm659, %v2200, %v2201
      %v2203 = vrot.slane %v1891, 1
      %v2204 = vrot.slane %v1939, 1
      %v2205 = vsel %vm659, %v2203, %v2204
      %v2206 = vrot.slane %v1892, 1
      %v2207 = vrot.slane %v1940, 1
      %v2208 = vsel %vm659, %v2206, %v2207
      %v2209 = vrot.slane %v1893, 1
      %v2210 = vrot.slane %v1941, 1
      %v2211 = vsel %vm659, %v2209, %v2210
      %v2212 = vrot.slane %v1894, 1
      %v2213 = vrot.slane %v1942, 1
      %v2214 = vsel %vm659, %v2212, %v2213
      %2215 = vrot.lane.b32.xlu0 %v2169, 8
      %v2216 = vpop.permute.xlu0 %2215
      %2217 = vrot.lane.b32.xlu0 %v2172, 8
      %v2218 = vpop.permute.xlu0 %2217
      %2219 = vrot.lane.b32.xlu0 %v2175, 8
      %v2220 = vpop.permute.xlu0 %2219
      %2221 = vrot.lane.b32.xlu0 %v2178, 8
      %v2222 = vpop.permute.xlu0 %2221
      %2223 = vrot.lane.b32.xlu0 %v2181, 8
      %v2224 = vpop.permute.xlu0 %2223
      %2225 = vrot.lane.b32.xlu0 %v2184, 8
      %v2226 = vpop.permute.xlu0 %2225
      %2227 = vrot.lane.b32.xlu0 %v2187, 8
      %v2228 = vpop.permute.xlu0 %2227
      %2229 = vrot.lane.b32.xlu0 %v2190, 8
      %v2230 = vpop.permute.xlu0 %2229
      %2231 = vrot.lane.b32.xlu0 %v2193, 8
      %v2232 = vpop.permute.xlu0 %2231
      %2233 = vrot.lane.b32.xlu0 %v2196, 8
      %v2234 = vpop.permute.xlu0 %2233
      %2235 = vrot.lane.b32.xlu0 %v2199, 8
      %v2236 = vpop.permute.xlu0 %2235
      %2237 = vrot.lane.b32.xlu0 %v2202, 8
      %v2238 = vpop.permute.xlu0 %2237
      %2239 = vrot.lane.b32.xlu0 %v2205, 8
      %v2240 = vpop.permute.xlu0 %2239
      %2241 = vrot.lane.b32.xlu0 %v2208, 8
      %v2242 = vpop.permute.xlu0 %2241
      %2243 = vrot.lane.b32.xlu0 %v2211, 8
      %v2244 = vpop.permute.xlu0 %2243
      %2245 = vrot.lane.b32.xlu0 %v2214, 8
      %v2246 = vpop.permute.xlu0 %2245
      %v2248 = vsel %vm740, %v1879, %v2136
      %v2250 = vsel %vm740, %v1880, %v2138
      %v2252 = vsel %vm740, %v1881, %v2140
      %v2254 = vsel %vm740, %v1882, %v2142
      %v2256 = vsel %vm740, %v1883, %v2144
      %v2258 = vsel %vm740, %v1884, %v2146
      %v2260 = vsel %vm740, %v1885, %v2148
      %v2262 = vsel %vm740, %v1886, %v2150
      %v2264 = vsel %vm740, %v1887, %v2152
      %v2266 = vsel %vm740, %v1888, %v2154
      %v2268 = vsel %vm740, %v1889, %v2156
      %v2270 = vsel %vm740, %v1890, %v2158
      %v2272 = vsel %vm740, %v1891, %v2160
      %v2274 = vsel %vm740, %v1892, %v2162
      %v2276 = vsel %vm740, %v1893, %v2164
      %v2278 = vsel %vm740, %v1894, %v2166
      %v2280 = vsel %vm773, %v2248, %v2216
      %v2282 = vsel %vm773, %v2250, %v2218
      %v2284 = vsel %vm773, %v2252, %v2220
      %v2286 = vsel %vm773, %v2254, %v2222
      %v2288 = vsel %vm773, %v2256, %v2224
      %v2290 = vsel %vm773, %v2258, %v2226
      %v2292 = vsel %vm773, %v2260, %v2228
      %v2294 = vsel %vm773, %v2262, %v2230
      %v2296 = vsel %vm773, %v2264, %v2232
      %v2298 = vsel %vm773, %v2266, %v2234
      %v2300 = vsel %vm773, %v2268, %v2236
      %v2302 = vsel %vm773, %v2270, %v2238
      %v2304 = vsel %vm773, %v2272, %v2240
      %v2306 = vsel %vm773, %v2274, %v2242
      %v2308 = vsel %vm773, %v2276, %v2244
      %v2310 = vsel %vm773, %v2278, %v2246
      %s2311 = scalar_lea.vmem %s229, 16
      %v2312 = vld [vmem:[%s2311] sm:$0xf]
      %v2313 = vld [vmem:[%s2311 + $0x4] sm:$0x3]
      %v2316 = vunpack.c.l.b16 %v2312
      %v2317 = vunpack.c.l.b16 %v2313
      %v2318 = vpack.c.b16 %v2317, %v2316
      %v2319 = vsel %vm1364, %v2280, 0
      %v2321 = vsel %vm1364, %v2282, 0
      %v2323 = vsel %vm1364, %v2284, 0
      %v2325 = vsel %vm1364, %v2286, 0
      %v2327 = vsel %vm1364, %v2288, 0
      %v2329 = vsel %vm1364, %v2290, 0
      %v2331 = vsel %vm1364, %v2292, 0
      %v2333 = vsel %vm1364, %v2294, 0
      %v2335 = vsel %vm1364, %v2296, 0
      %v2337 = vsel %vm1364, %v2298, 0
      %v2339 = vsel %vm1364, %v2300, 0
      %v2341 = vsel %vm1364, %v2302, 0
      %v2343 = vsel %vm1364, %v2304, 0
      %v2345 = vsel %vm1364, %v2306, 0
      %v2347 = vsel %vm1364, %v2308, 0
      %v2349 = vsel %vm1364, %v2310, 0
      %v2352 = vsel %vm1397, %v2318, 0
      %2354 = vmatprep.subr.bf16.mxu0 0
      %2355 = vmatpush1.bf16.msra.mxu0 %v2352
      %2356 = vmatprep.subr.bf16.mxu0 0
      %2357 = vmatpush1.bf16.msra.mxu0 0
      %2358 = vmatprep.subr.bf16.mxu0 0
      %2359 = vmatpush1.bf16.msra.mxu0 0
      %2360 = vmatprep.subr.bf16.mxu0 0
      %2361 = vmatpush1.bf16.msra.mxu0 0
      %2362 = vmatprep.subr.bf16.mxu0 0
      %2363 = vmatpush1.bf16.msra.mxu0 0
      %2364 = vmatprep.subr.bf16.mxu0 0
      %2365 = vmatpush1.bf16.msra.mxu0 0
      %2366 = vmatprep.subr.bf16.mxu0 0
      %2367 = vmatpush1.bf16.msra.mxu0 0
      %2368 = vmatprep.subr.bf16.mxu0 0
      %2369 = vmatpush1.bf16.msra.mxu0 0
      %2370 = vmatprep.subr.bf16.mxu0 0
      %2371 = vmatpush1.bf16.msra.mxu0 0
      %2372 = vmatprep.subr.bf16.mxu0 0
      %2373 = vmatpush1.bf16.msra.mxu0 0
      %2374 = vmatprep.subr.bf16.mxu0 0
      %2375 = vmatpush1.bf16.msra.mxu0 0
      %2376 = vmatprep.subr.bf16.mxu0 0
      %2377 = vmatpush1.bf16.msra.mxu0 0
      %2378 = vmatprep.subr.bf16.mxu0 0
      %2379 = vmatpush1.bf16.msra.mxu0 0
      %2380 = vmatprep.subr.bf16.mxu0 0
      %2381 = vmatpush1.bf16.msra.mxu0 0
      %2382 = vmatprep.subr.bf16.mxu0 0
      %2383 = vmatpush1.bf16.msra.mxu0 0
      %2384 = vmatprep.subr.bf16.mxu0 0
      %2385 = vmatpush1.bf16.msra.mxu0 0
      %2386 = vmatprep.mubr.bf16.mxu0 0
      %2387 = vmatmul.mubr.bf16.gmra.mrb[0].mxu0 %v2319
      %v2388 = vpop.f32.mrb[0].mxu0
      %v2389 = vadd.f32 0.0, %v2388
      %v2390 = vpop.f32.mrb[0].mxu0
      %v2391 = vpop.f32.mrb[0].mxu0
      %v2392 = vadd.f32 0.0, %v2391
      %v2393 = vpop.f32.mrb[0].mxu0
      %2394 = vmatprep.mubr.bf16.mxu0 0
      %2395 = vmatmul.mubr.bf16.gmra.mrb[0].mxu0 %v2321
      %v2396 = vpop.f32.mrb[0].mxu0
      %v2397 = vadd.f32 0.0, %v2396
      %v2398 = vpop.f32.mrb[0].mxu0
      %v2399 = vpop.f32.mrb[0].mxu0
      %v2400 = vadd.f32 0.0, %v2399
      %v2401 = vpop.f32.mrb[0].mxu0
      %2402 = vmatprep.mubr.bf16.mxu0 0
      %2403 = vmatmul.mubr.bf16.gmra.mrb[0].mxu0 %v2323
      %v2404 = vpop.f32.mrb[0].mxu0
      %v2405 = vadd.f32 0.0, %v2404
      %v2406 = vpop.f32.mrb[0].mxu0
      %v2407 = vpop.f32.mrb[0].mxu0
      %v2408 = vadd.f32 0.0, %v2407
      %v2409 = vpop.f32.mrb[0].mxu0
      %2410 = vmatprep.mubr.bf16.mxu0 0
      %2411 = vmatmul.mubr.bf16.gmra.mrb[0].mxu0 %v2325
      %v2412 = vpop.f32.mrb[0].mxu0
      %v2413 = vadd.f32 0.0, %v2412
      %v2414 = vpop.f32.mrb[0].mxu0
      %v2415 = vpop.f32.mrb[0].mxu0
      %v2416 = vadd.f32 0.0, %v2415
      %v2417 = vpop.f32.mrb[0].mxu0
      %2418 = vmatprep.mubr.bf16.mxu0 0
      %2419 = vmatmul.mubr.bf16.gmra.mrb[0].mxu0 %v2327
      %v2420 = vpop.f32.mrb[0].mxu0
      %v2421 = vadd.f32 0.0, %v2420
      %v2422 = vpop.f32.mrb[0].mxu0
      %v2423 = vpop.f32.mrb[0].mxu0
      %v2424 = vadd.f32 0.0, %v2423
      %v2425 = vpop.f32.mrb[0].mxu0
      %2426 = vmatprep.mubr.bf16.mxu0 0
      %2427 = vmatmul.mubr.bf16.gmra.mrb[0].mxu0 %v2329
      %v2428 = vpop.f32.mrb[0].mxu0
      %v2429 = vadd.f32 0.0, %v2428
      %v2430 = vpop.f32.mrb[0].mxu0
      %v2431 = vpop.f32.mrb[0].mxu0
      %v2432 = vadd.f32 0.0, %v2431
      %v2433 = vpop.f32.mrb[0].mxu0
      %2434 = vmatprep.mubr.bf16.mxu0 0
      %2435 = vmatmul.mubr.bf16.gmra.mrb[0].mxu0 %v2331
      %v2436 = vpop.f32.mrb[0].mxu0
      %v2437 = vadd.f32 0.0, %v2436
      %v2438 = vpop.f32.mrb[0].mxu0
      %v2439 = vpop.f32.mrb[0].mxu0
      %v2440 = vadd.f32 0.0, %v2439
      %v2441 = vpop.f32.mrb[0].mxu0
      %2442 = vmatprep.mubr.bf16.mxu0 0
      %2443 = vmatmul.mubr.bf16.gmra.mrb[0].mxu0 %v2333
      %v2444 = vpop.f32.mrb[0].mxu0
      %v2445 = vadd.f32 0.0, %v2444
      %v2446 = vpop.f32.mrb[0].mxu0
      %v2447 = vpop.f32.mrb[0].mxu0
      %v2448 = vadd.f32 0.0, %v2447
      %v2449 = vpop.f32.mrb[0].mxu0
      %2450 = vmatprep.mubr.bf16.mxu0 0
      %2451 = vmatmul.mubr.bf16.gmra.mrb[0].mxu0 %v2335
      %v2452 = vpop.f32.mrb[0].mxu0
      %v2453 = vadd.f32 0.0, %v2452
      %v2454 = vpop.f32.mrb[0].mxu0
      %v2455 = vpop.f32.mrb[0].mxu0
      %v2456 = vadd.f32 0.0, %v2455
      %v2457 = vpop.f32.mrb[0].mxu0
      %2458 = vmatprep.mubr.bf16.mxu0 0
      %2459 = vmatmul.mubr.bf16.gmra.mrb[0].mxu0 %v2337
      %v2460 = vpop.f32.mrb[0].mxu0
      %v2461 = vadd.f32 0.0, %v2460
      %v2462 = vpop.f32.mrb[0].mxu0
      %v2463 = vpop.f32.mrb[0].mxu0
      %v2464 = vadd.f32 0.0, %v2463
      %v2465 = vpop.f32.mrb[0].mxu0
      %2466 = vmatprep.mubr.bf16.mxu0 0
      %2467 = vmatmul.mubr.bf16.gmra.mrb[0].mxu0 %v2339
      %v2468 = vpop.f32.mrb[0].mxu0
      %v2469 = vadd.f32 0.0, %v2468
      %v2470 = vpop.f32.mrb[0].mxu0
      %v2471 = vpop.f32.mrb[0].mxu0
      %v2472 = vadd.f32 0.0, %v2471
      %v2473 = vpop.f32.mrb[0].mxu0
      %2474 = vmatprep.mubr.bf16.mxu0 0
      %2475 = vmatmul.mubr.bf16.gmra.mrb[0].mxu0 %v2341
      %v2476 = vpop.f32.mrb[0].mxu0
      %v2477 = vadd.f32 0.0, %v2476
      %v2478 = vpop.f32.mrb[0].mxu0
      %v2479 = vpop.f32.mrb[0].mxu0
      %v2480 = vadd.f32 0.0, %v2479
      %v2481 = vpop.f32.mrb[0].mxu0
      %2482 = vmatprep.mubr.bf16.mxu0 0
      %2483 = vmatmul.mubr.bf16.gmra.mrb[0].mxu0 %v2343
      %v2484 = vpop.f32.mrb[0].mxu0
      %v2485 = vadd.f32 0.0, %v2484
      %v2486 = vpop.f32.mrb[0].mxu0
      %v2487 = vpop.f32.mrb[0].mxu0
      %v2488 = vadd.f32 0.0, %v2487
      %v2489 = vpop.f32.mrb[0].mxu0
      %2490 = vmatprep.mubr.bf16.mxu0 0
      %2491 = vmatmul.mubr.bf16.gmra.mrb[0].mxu0 %v2345
      %v2492 = vpop.f32.mrb[0].mxu0
      %v2493 = vadd.f32 0.0, %v2492
      %v2494 = vpop.f32.mrb[0].mxu0
      %v2495 = vpop.f32.mrb[0].mxu0
      %v2496 = vadd.f32 0.0, %v2495
      %v2497 = vpop.f32.mrb[0].mxu0
      %2498 = vmatprep.mubr.bf16.mxu0 0
      %2499 = vmatmul.mubr.bf16.gmra.mrb[0].mxu0 %v2347
      %v2500 = vpop.f32.mrb[0].mxu0
      %v2501 = vadd.f32 0.0, %v2500
      %v2502 = vpop.f32.mrb[0].mxu0
      %v2503 = vpop.f32.mrb[0].mxu0
      %v2504 = vadd.f32 0.0, %v2503
      %v2505 = vpop.f32.mrb[0].mxu0
      %2506 = vmatprep.mubr.bf16.mxu0 0
      %2507 = vmatmul.mubr.bf16.gmra.mrb[0].mxu0 %v2349
      %v2508 = vpop.f32.mrb[0].mxu0
      %v2509 = vadd.f32 0.0, %v2508
      %v2510 = vpop.f32.mrb[0].mxu0
      %v2511 = vpop.f32.mrb[0].mxu0
      %v2512 = vadd.f32 0.0, %v2511
      %v2513 = vpop.f32.mrb[0].mxu0
      %2514 = vdwg.mxu0
      %v2515 = vadd.f32 %v1637, %v2389
      %v2516 = vadd.f32 %v1640, %v2392
      %v2517 = vadd.f32 %v1645, %v2397
      %v2518 = vadd.f32 %v1648, %v2400
      %v2519 = vadd.f32 %v1653, %v2405
      %v2520 = vadd.f32 %v1656, %v2408
      %v2521 = vadd.f32 %v1661, %v2413
      %v2522 = vadd.f32 %v1664, %v2416
      %v2523 = vadd.f32 %v1669, %v2421
      %v2524 = vadd.f32 %v1672, %v2424
      %v2525 = vadd.f32 %v1677, %v2429
      %v2526 = vadd.f32 %v1680, %v2432
      %v2527 = vadd.f32 %v1685, %v2437
      %v2528 = vadd.f32 %v1688, %v2440
      %v2529 = vadd.f32 %v1693, %v2445
      %v2530 = vadd.f32 %v1696, %v2448
      %v2531 = vadd.f32 %v1701, %v2453
      %v2532 = vadd.f32 %v1704, %v2456
      %v2533 = vadd.f32 %v1709, %v2461
      %v2534 = vadd.f32 %v1712, %v2464
      %v2535 = vadd.f32 %v1717, %v2469
      %v2536 = vadd.f32 %v1720, %v2472
      %v2537 = vadd.f32 %v1725, %v2477
      %v2538 = vadd.f32 %v1728, %v2480
      %v2539 = vadd.f32 %v1733, %v2485
      %v2540 = vadd.f32 %v1736, %v2488
      %v2541 = vadd.f32 %v1741, %v2493
      %v2542 = vadd.f32 %v1744, %v2496
      %v2543 = vadd.f32 %v1749, %v2501
      %v2544 = vadd.f32 %v1752, %v2504
      %v2545 = vadd.f32 %v1757, %v2509
      %v2546 = vadd.f32 %v1760, %v2512
      %v2547 = vpack.c.bf16 %v2516, %v2515
      %v2548 = vpack.c.bf16 %v2518, %v2517
      %v2549 = vpack.c.bf16 %v2520, %v2519
      %v2550 = vpack.c.bf16 %v2522, %v2521
      %v2551 = vpack.c.bf16 %v2524, %v2523
      %v2552 = vpack.c.bf16 %v2526, %v2525
      %v2553 = vpack.c.bf16 %v2528, %v2527
      %v2554 = vpack.c.bf16 %v2530, %v2529
      %v2555 = vpack.c.bf16 %v2532, %v2531
      %v2556 = vpack.c.bf16 %v2534, %v2533
      %v2557 = vpack.c.bf16 %v2536, %v2535
      %v2558 = vpack.c.bf16 %v2538, %v2537
      %v2559 = vpack.c.bf16 %v2540, %v2539
      %v2560 = vpack.c.bf16 %v2542, %v2541
      %v2561 = vpack.c.bf16 %v2544, %v2543
      %v2562 = vpack.c.bf16 %v2546, %v2545
      %v2579 = vunpack.c.l.b16 %v2547
      %v2580 = vunpack.c.h.b16 %v2547
      %v2581 = vunpack.c.l.b16 %v2548
      %v2582 = vunpack.c.h.b16 %v2548
      %v2583 = vunpack.c.l.b16 %v2549
      %v2584 = vunpack.c.h.b16 %v2549
      %v2585 = vunpack.c.l.b16 %v2550
      %v2586 = vunpack.c.h.b16 %v2550
      %v2587 = vunpack.c.l.b16 %v2551
      %v2588 = vunpack.c.h.b16 %v2551
      %v2589 = vunpack.c.l.b16 %v2552
      %v2590 = vunpack.c.h.b16 %v2552
      %v2591 = vunpack.c.l.b16 %v2553
      %v2592 = vunpack.c.h.b16 %v2553
      %v2593 = vunpack.c.l.b16 %v2554
      %v2594 = vunpack.c.h.b16 %v2554
      %v2595 = vunpack.c.l.b16 %v2555
      %v2596 = vunpack.c.h.b16 %v2555
      %v2597 = vunpack.c.l.b16 %v2556
      %v2598 = vunpack.c.h.b16 %v2556
      %v2599 = vunpack.c.l.b16 %v2557
      %v2600 = vunpack.c.h.b16 %v2557
      %v2601 = vunpack.c.l.b16 %v2558
      %v2602 = vunpack.c.h.b16 %v2558
      %v2603 = vunpack.c.l.b16 %v2559
      %v2604 = vunpack.c.h.b16 %v2559
      %v2605 = vunpack.c.l.b16 %v2560
      %v2606 = vunpack.c.h.b16 %v2560
      %v2607 = vunpack.c.l.b16 %v2561
      %v2608 = vunpack.c.h.b16 %v2561
      %v2609 = vunpack.c.l.b16 %v2562
      %v2610 = vunpack.c.h.b16 %v2562
      %v2611 = vpack.c.b16 %v2579, %v2579
      %v2612 = vpack.c.b16 %v2580, %v2580
      %v2613 = vpack.c.b16 %v2581, %v2581
      %v2614 = vpack.c.b16 %v2582, %v2582
      %v2615 = vpack.c.b16 %v2583, %v2583
      %v2616 = vpack.c.b16 %v2584, %v2584
      %v2617 = vpack.c.b16 %v2585, %v2585
      %v2618 = vpack.c.b16 %v2586, %v2586
      %v2619 = vpack.c.b16 %v2587, %v2587
      %v2620 = vpack.c.b16 %v2588, %v2588
      %v2621 = vpack.c.b16 %v2589, %v2589
      %v2622 = vpack.c.b16 %v2590, %v2590
      %v2623 = vpack.c.b16 %v2591, %v2591
      %v2624 = vpack.c.b16 %v2592, %v2592
      %v2625 = vpack.c.b16 %v2593, %v2593
      %v2626 = vpack.c.b16 %v2594, %v2594
      %v2627 = vpack.c.b16 %v2595, %v2595
      %v2628 = vpack.c.b16 %v2596, %v2596
      %v2629 = vpack.c.b16 %v2597, %v2597
      %v2630 = vpack.c.b16 %v2598, %v2598
      %v2631 = vpack.c.b16 %v2599, %v2599
      %v2632 = vpack.c.b16 %v2600, %v2600
      %v2633 = vpack.c.b16 %v2601, %v2601
      %v2634 = vpack.c.b16 %v2602, %v2602
      %v2635 = vpack.c.b16 %v2603, %v2603
      %v2636 = vpack.c.b16 %v2604, %v2604
      %v2637 = vpack.c.b16 %v2605, %v2605
      %v2638 = vpack.c.b16 %v2606, %v2606
      %v2639 = vpack.c.b16 %v2607, %v2607
      %v2640 = vpack.c.b16 %v2608, %v2608
      %v2641 = vpack.c.b16 %v2609, %v2609
      %v2642 = vpack.c.b16 %v2610, %v2610
      %2675 = vst [vmem:[%s241] sm:$0xf] %v2611
      %2676 = vst [vmem:[%s241 + $0x4] sm:$0xf] %v2612
      %2677 = vst [vmem:[%s241 + $0x8] sm:$0xf] %v2613
      %2678 = vst [vmem:[%s241 + $0xc] sm:$0xf] %v2614
      %2679 = vst [vmem:[%s241 + $0x10] sm:$0xf] %v2615
      %2680 = vst [vmem:[%s241 + $0x14] sm:$0xf] %v2616
      %2681 = vst [vmem:[%s241 + $0x18] sm:$0xf] %v2617
      %2682 = vst [vmem:[%s241 + $0x1c] sm:$0xf] %v2618
      %2683 = vst [vmem:[%s241 + $0x20] sm:$0xf] %v2619
      %2684 = vst [vmem:[%s241 + $0x24] sm:$0xf] %v2620
      %2685 = vst [vmem:[%s241 + $0x28] sm:$0xf] %v2621
      %2686 = vst [vmem:[%s241 + $0x2c] sm:$0xf] %v2622
      %2687 = vst [vmem:[%s241 + $0x30] sm:$0xf] %v2623
      %2688 = vst [vmem:[%s241 + $0x34] sm:$0xf] %v2624
      %2689 = vst [vmem:[%s241 + $0x38] sm:$0xf] %v2625
      %2690 = vst [vmem:[%s241 + $0x3c] sm:$0xf] %v2626
      %2691 = vst [vmem:[%s241 + $0x40] sm:$0xf] %v2627
      %2692 = vst [vmem:[%s241 + $0x44] sm:$0xf] %v2628
      %2693 = vst [vmem:[%s241 + $0x48] sm:$0xf] %v2629
      %2694 = vst [vmem:[%s241 + $0x4c] sm:$0xf] %v2630
      %2695 = vst [vmem:[%s241 + $0x50] sm:$0xf] %v2631
      %2696 = vst [vmem:[%s241 + $0x54] sm:$0xf] %v2632
      %2697 = vst [vmem:[%s241 + $0x58] sm:$0xf] %v2633
      %2698 = vst [vmem:[%s241 + $0x5c] sm:$0xf] %v2634
      %2699 = vst [vmem:[%s241 + $0x60] sm:$0xf] %v2635
      %2700 = vst [vmem:[%s241 + $0x64] sm:$0xf] %v2636
      %2701 = vst [vmem:[%s241 + $0x68] sm:$0xf] %v2637
      %2702 = vst [vmem:[%s241 + $0x6c] sm:$0xf] %v2638
      %2703 = vst [vmem:[%s241 + $0x70] sm:$0xf] %v2639
      %2704 = vst [vmem:[%s241 + $0x74] sm:$0xf] %v2640
      %2705 = vst [vmem:[%s241 + $0x78] sm:$0xf] %v2641
      %2706 = vst [vmem:[%s241 + $0x7c] sm:$0xf] %v2642
      %v2707 = vadd.f32 %v2515, %v2516
      %v2708 = vadd.f32 %v2707, %v2517
      %v2709 = vadd.f32 %v2708, %v2518
      %v2710 = vadd.f32 %v2709, %v2519
      %v2711 = vadd.f32 %v2710, %v2520
      %v2712 = vadd.f32 %v2711, %v2521
      %v2713 = vadd.f32 %v2712, %v2522
      %v2714 = vadd.f32 %v2713, %v2523
      %v2715 = vadd.f32 %v2714, %v2524
      %v2716 = vadd.f32 %v2715, %v2525
      %v2717 = vadd.f32 %v2716, %v2526
      %v2718 = vadd.f32 %v2717, %v2527
      %v2719 = vadd.f32 %v2718, %v2528
      %v2720 = vadd.f32 %v2719, %v2529
      %v2721 = vadd.f32 %v2720, %v2530
      %v2722 = vadd.f32 %v2721, %v2531
      %v2723 = vadd.f32 %v2722, %v2532
      %v2724 = vadd.f32 %v2723, %v2533
      %v2725 = vadd.f32 %v2724, %v2534
      %v2726 = vadd.f32 %v2725, %v2535
      %v2727 = vadd.f32 %v2726, %v2536
      %v2728 = vadd.f32 %v2727, %v2537
      %v2729 = vadd.f32 %v2728, %v2538
      %v2730 = vadd.f32 %v2729, %v2539
      %v2731 = vadd.f32 %v2730, %v2540
      %v2732 = vadd.f32 %v2731, %v2541
      %v2733 = vadd.f32 %v2732, %v2542
      %v2734 = vadd.f32 %v2733, %v2543
      %v2735 = vadd.f32 %v2734, %v2544
      %v2736 = vadd.f32 %v2735, %v2545
      %v2737 = vadd.f32 %v2736, %v2546
      %v2738 = vrot.slane %v2737, 4
      %v2739 = vadd.f32 %v2737, %v2738
      %v2740 = vrot.slane %v2739, 2
      %v2741 = vadd.f32 %v2739, %v2740
      %v2742 = vrot.slane %v2741, 1
      %v2743 = vadd.f32 %v2741, %v2742
      %v2744 = vmul.f32 %v2515, %v2515
      %v2745 = vmul.f32 %v2516, %v2516
      %v2746 = vmul.f32 %v2517, %v2517
      %v2747 = vmul.f32 %v2518, %v2518
      %v2748 = vmul.f32 %v2519, %v2519
      %v2749 = vmul.f32 %v2520, %v2520
      %v2750 = vmul.f32 %v2521, %v2521
      %v2751 = vmul.f32 %v2522, %v2522
      %v2752 = vmul.f32 %v2523, %v2523
      %v2753 = vmul.f32 %v2524, %v2524
      %v2754 = vmul.f32 %v2525, %v2525
      %v2755 = vmul.f32 %v2526, %v2526
      %v2756 = vmul.f32 %v2527, %v2527
      %v2757 = vmul.f32 %v2528, %v2528
      %v2758 = vmul.f32 %v2529, %v2529
      %v2759 = vmul.f32 %v2530, %v2530
      %v2760 = vmul.f32 %v2531, %v2531
      %v2761 = vmul.f32 %v2532, %v2532
      %v2762 = vmul.f32 %v2533, %v2533
      %v2763 = vmul.f32 %v2534, %v2534
      %v2764 = vmul.f32 %v2535, %v2535
      %v2765 = vmul.f32 %v2536, %v2536
      %v2766 = vmul.f32 %v2537, %v2537
      %v2767 = vmul.f32 %v2538, %v2538
      %v2768 = vmul.f32 %v2539, %v2539
      %v2769 = vmul.f32 %v2540, %v2540
      %v2770 = vmul.f32 %v2541, %v2541
      %v2771 = vmul.f32 %v2542, %v2542
      %v2772 = vmul.f32 %v2543, %v2543
      %v2773 = vmul.f32 %v2544, %v2544
      %v2774 = vmul.f32 %v2545, %v2545
      %v2775 = vmul.f32 %v2546, %v2546
      %v2776 = vadd.f32 %v2744, %v2745
      %v2777 = vadd.f32 %v2776, %v2746
      %v2778 = vadd.f32 %v2777, %v2747
      %v2779 = vadd.f32 %v2778, %v2748
      %v2780 = vadd.f32 %v2779, %v2749
      %v2781 = vadd.f32 %v2780, %v2750
      %v2782 = vadd.f32 %v2781, %v2751
      %v2783 = vadd.f32 %v2782, %v2752
      %v2784 = vadd.f32 %v2783, %v2753
      %v2785 = vadd.f32 %v2784, %v2754
      %v2786 = vadd.f32 %v2785, %v2755
      %v2787 = vadd.f32 %v2786, %v2756
      %v2788 = vadd.f32 %v2787, %v2757
      %v2789 = vadd.f32 %v2788, %v2758
      %v2790 = vadd.f32 %v2789, %v2759
      %v2791 = vadd.f32 %v2790, %v2760
      %v2792 = vadd.f32 %v2791, %v2761
      %v2793 = vadd.f32 %v2792, %v2762
      %v2794 = vadd.f32 %v2793, %v2763
      %v2795 = vadd.f32 %v2794, %v2764
      %v2796 = vadd.f32 %v2795, %v2765
      %v2797 = vadd.f32 %v2796, %v2766
      %v2798 = vadd.f32 %v2797, %v2767
      %v2799 = vadd.f32 %v2798, %v2768
      %v2800 = vadd.f32 %v2799, %v2769
      %v2801 = vadd.f32 %v2800, %v2770
      %v2802 = vadd.f32 %v2801, %v2771
      %v2803 = vadd.f32 %v2802, %v2772
      %v2804 = vadd.f32 %v2803, %v2773
      %v2805 = vadd.f32 %v2804, %v2774
      %v2806 = vadd.f32 %v2805, %v2775
      %v2807 = vrot.slane %v2806, 4
      %v2808 = vadd.f32 %v2806, %v2807
      %v2809 = vrot.slane %v2808, 2
      %v2810 = vadd.f32 %v2808, %v2809
      %v2811 = vrot.slane %v2810, 1
      %v2812 = vadd.f32 %v2810, %v2811
      %vm2813 = vcmask 1040384
      %v2814 = vsel %vm2813, %v2743, %v2812
      %2815 = vst [vmem:[%s252] sm:$0x3] %v2814
      %s2816 = smul.u32 32, %s22
      %p2817 = scmp.lt.s32.totalorder %s20, 1
      %s2818 = scalar_select %p2817, %s20, 1
      %p2819 = scmp.lt.s32.totalorder %s2816, 31
      %s2820 = scalar_select %p2819, %s2816, 31
      %p2821 = scmp.lt.s32.totalorder %s21, 0
      %s2822 = scalar_select %p2821, %s21, 0
      %s2823 = sadd.s32 %s2822, %s2820
      %s2824 = smul.addr %s2818, 32
      %s2825 = sadd.s32 %s2823, %s2824
      %s2826 = smul.addr %s2825, 4
      %s2827 = scalar_lea.vmem %s2, %s2826
      %p2828 = scmp.lt.s32.totalorder %s20, 1
      %s2829 = scalar_select %p2828, %s20, 1
      %p2830 = scmp.lt.s32.totalorder %s22, 0
      %s2831 = scalar_select %p2830, %s22, 0
      %p2832 = scmp.lt.s32.totalorder %s21, 0
      %s2833 = scalar_select %p2832, %s21, 0
      %s2834 = sadd.s32 %s2833, %s2831
      %s2835 = sadd.s32 %s2834, %s2829
      %s2836 = smul.addr %s2835, 2
      %s2837 = scalar_lea.vmem %s3, %s2836
      // Predicated region
      $region29: #{basic_conv2d_nhwc.2} parent=27 // pred_check
        %p2838 = pneg %p108
      $region30: #{basic_conv2d_nhwc.2} parent=27 // pred_check_branch
        %2840 = sbr.rel (%p2838) target = $region32
      $region31: #{basic_conv2d_nhwc.2} parent=27 // pred_region
        %s2841 = smul.u32 32, %s22
      $region32: #{basic_conv2d_nhwc.2} parent=27 // pred_fallthru
        _
      // Predicated region
      $region33: #{basic_conv2d_nhwc.2} parent=27 // pred_check
        %p2842 = pneg %p138
      $region34: #{basic_conv2d_nhwc.2} parent=27 // pred_check_branch
        %2844 = sbr.rel (%p2842) target = $region36
      $region35: #{basic_conv2d_nhwc.2} parent=27 // pred_region
        _
      $region36: #{basic_conv2d_nhwc.2} parent=27 // pred_fallthru
        _
    $region28: #{basic_conv2d_nhwc.2} parent=5 // pred_fallthru
      _
    %p2845 = scmp.le.s32.totalorder 2, %s10
    // Predicated region
    $region37: #{basic_conv2d_nhwc.2} parent=5 // pred_check
      %p2846 = pneg %p2845
    $region38: #{basic_conv2d_nhwc.2} parent=5 // pred_check_branch
      %2848 = sbr.rel (%p2846) target = $region40
    $region39: #{basic_conv2d_nhwc.2} parent=5 // pred_region
      %s2849 = ssub.s32 %s10, 2
      // Predicated region
      $region41: #{basic_conv2d_nhwc.2} parent=39 // pred_check
        %p2850 = pneg %p114
      $region42: #{basic_conv2d_nhwc.2} parent=39 // pred_check_branch
        %2852 = sbr.rel (%p2850) target = $region44
      $region43: #{basic_conv2d_nhwc.2} parent=39 // pred_region
        %s2853 = smul.u32 32, %s25
        %p2854 = scmp.lt.s32.totalorder %s23, 1
        %s2855 = scalar_select %p2854, %s23, 1
        %p2856 = scmp.lt.s32.totalorder %s2853, 31
        %s2857 = scalar_select %p2856, %s2853, 31
        %p2858 = scmp.lt.s32.totalorder %s24, 0
        %s2859 = scalar_select %p2858, %s24, 0
        %s2860 = sadd.s32 %s2859, %s2857
        %s2861 = smul.addr %s2855, 32
        %s2862 = sadd.s32 %s2860, %s2861
        %s2863 = smul.addr %s2862, 4
        %s2864 = scalar_lea.vmem %s2, %s2863
      $region44: #{basic_conv2d_nhwc.2} parent=39 // pred_fallthru
        _
      // Predicated region
      $region45: #{basic_conv2d_nhwc.2} parent=39 // pred_check
        %p2865 = pneg %p144
      $region46: #{basic_conv2d_nhwc.2} parent=39 // pred_check_branch
        %2867 = sbr.rel (%p2865) target = $region48
      $region47: #{basic_conv2d_nhwc.2} parent=39 // pred_region
        %p2868 = scmp.lt.s32.totalorder %s23, 1
        %s2869 = scalar_select %p2868, %s23, 1
        %p2870 = scmp.lt.s32.totalorder %s25, 0
        %s2871 = scalar_select %p2870, %s25, 0
        %p2872 = scmp.lt.s32.totalorder %s24, 0
        %s2873 = scalar_select %p2872, %s24, 0
        %s2874 = sadd.s32 %s2873, %s2871
        %s2875 = sadd.s32 %s2874, %s2869
        %s2876 = smul.addr %s2875, 2
        %s2877 = scalar_lea.vmem %s3, %s2876
      $region48: #{basic_conv2d_nhwc.2} parent=39 // pred_fallthru
        _
    $region40: #{basic_conv2d_nhwc.2} parent=5 // pred_fallthru
      _
  $region6: #{basic_conv2d_nhwc.2} parent=0 // loop_footer
    %s14 = sadd.s32 1, %s10
  $region7: #{basic_conv2d_nhwc.2} parent=0 // loop_footer_branch
    %9 = sbr.rel target = $region3
  $region8: #{basic_conv2d_nhwc.2} parent=0 // loop_exit
    _

</llo_original>
